<compile_context>
chip_gen: v6e
topology: v6e:2x2x1
jax: 0.10.0
libtpu: 0.0.40
codegen_flags: <defaults>
</compile_context>

<pallas_src>
import functools

import jax
import jax.numpy as jnp
from jax.experimental import pallas as pl
from jax.experimental.pallas import tpu as pltpu

_BN_EPS = 1e-5


# --------------------------------------------------------------------------
# In-kernel activation helpers (EUP: exp + approximate reciprocal)
# --------------------------------------------------------------------------
def _sigmoid_k(v):
    return pl.reciprocal(1.0 + jnp.exp(-v), approx=True)


def _silu_k(v):
    return v * _sigmoid_k(v)


# --------------------------------------------------------------------------
# Fused MBConv kernel: one grid step == one sample, everything in VMEM.
# BN scales are pre-folded into the conv weights; only biases are added here.
# --------------------------------------------------------------------------
def _mbconv_kernel(*refs, expand, use_residual, H, W, Ho, Wo, KH, KW, stride, pad):
    refs = list(refs)
    x_ref = refs.pop(0)
    if expand:
        w_e_ref, bias_e_ref = refs.pop(0), refs.pop(0)
    w_dw_ref, bias_dw_ref = refs.pop(0), refs.pop(0)
    w1_ref, b1_ref = refs.pop(0), refs.pop(0)
    w2_ref, b2_ref = refs.pop(0), refs.pop(0)
    w_p_ref, bias_p_ref = refs.pop(0), refs.pop(0)
    o_ref = refs.pop(0)
    if expand:
        xpad_ref, patches_ref = refs.pop(0), refs.pop(0)
    hpad_ref = refs.pop(0)

    cin = x_ref.shape[1]

    # NCHW (spatially flattened) block -> (H*W, Cin) via one 2D XLU transpose.
    x_hwc = jnp.transpose(x_ref[0])                        # (H*W, Cin)

    # ---- 1) expansion: 3x3/s1/p1 conv as ONE im2col matmul (+bias) + SiLU --
    if expand:
        xpad_ref[...] = jnp.zeros_like(xpad_ref)
        xpad_ref[pl.ds(1, H), pl.ds(1, W), :] = x_hwc.reshape(H, W, cin)
        for kh in range(3):
            for kw in range(3):
                patch = xpad_ref[pl.ds(kh, H), pl.ds(kw, W), :]
                patches_ref[:, pl.ds((kh * 3 + kw) * cin, cin)] = (
                    patch.reshape(H * W, cin))
        y = jnp.dot(patches_ref[...], w_e_ref[...],
                    preferred_element_type=jnp.float32)    # (H*W, hidden)
        h = _silu_k(y + bias_e_ref[...])
    else:
        h = x_hwc

    hidden = h.shape[-1]

    # ---- 2) depthwise KxK conv (stride s, pad p) (+bias) + SiLU ------------
    hpad_ref[...] = jnp.zeros_like(hpad_ref)
    hpad_ref[pl.ds(pad, H), pl.ds(pad, W), :] = h.reshape(H, W, hidden)
    w_dw = w_dw_ref[...]                                   # (KH, KW, hidden)
    acc = jnp.zeros((Ho, Wo, hidden), jnp.float32)
    for kh in range(KH):
        for kw in range(KW):
            if stride == 1:
                patch = hpad_ref[pl.ds(kh, Ho), pl.ds(kw, Wo), :]
            else:
                # TODO(synk): if the Mosaic dump shows relayout copies here,
                # switch to an (Ho, s, Wo, s) reshape + phase-0 indexing.
                patch = hpad_ref[pl.ds(kh, Ho, stride), pl.ds(kw, Wo, stride), :]
            acc = acc + patch * w_dw[kh, kw]
    a = _silu_k(acc.reshape(Ho * Wo, hidden) + bias_dw_ref[...])  # (Ho*Wo, hidden)

    # ---- 3) squeeze-excitation (1/(Ho*Wo) folded into w1; pool per-sample) -
    pooled = jnp.sum(a, axis=0, keepdims=True)                     # (1, hidden)
    s = _silu_k(jnp.dot(pooled, w1_ref[...],
                        preferred_element_type=jnp.float32) + b1_ref[...])
    g = _sigmoid_k(jnp.dot(s, w2_ref[...],
                           preferred_element_type=jnp.float32) + b2_ref[...])
    a = a * g                                              # (Ho*Wo, hidden)

    # ---- 4) 1x1 projection (+bias) (+ residual; stochastic depth == id) ----
    y = jnp.dot(a, w_p_ref[...], preferred_element_type=jnp.float32)  # (Ho*Wo, cout)
    y = y + bias_p_ref[...]
    if use_residual:
        y = y + x_hwc
    # lane-dense (cout, Ho*Wo) store -> NCHW once reshaped outside.
    o_ref[0] = jnp.transpose(y).astype(o_ref.dtype)


# --------------------------------------------------------------------------
# Parameter setup (deterministic, synthetic) and wrapper
# --------------------------------------------------------------------------
def _bn_params(key, c):
    k1, k2, k3, k4 = jax.random.split(key, 4)
    return dict(
        gamma=jax.random.uniform(k1, (c,), jnp.float32, 0.5, 1.5),
        beta=0.1 * jax.random.normal(k2, (c,), jnp.float32),
        mean=0.1 * jax.random.normal(k3, (c,), jnp.float32),
        var=jax.random.uniform(k4, (c,), jnp.float32, 0.5, 1.5),
    )


def _fold_bn(bn):
    scale = bn['gamma'] / jnp.sqrt(bn['var'] + _BN_EPS)
    bias = bn['beta'] - bn['mean'] * scale
    return scale, bias


def init_params(key, cfg):
    cin, cout = cfg['in_channels'], cfg['out_channels']
    hidden = cin * cfg['expand_ratio']
    reduced = cin // cfg['reduction']
    k = cfg['kernel_size']
    ks = jax.random.split(key, 10)
    p = {}
    if hidden != cin:  # expand_conv is always 3x3, stride 1, pad 1
        p['w_e'] = 0.1 * jax.random.normal(ks[0], (3, 3, cin, hidden), jnp.float32)
        p['bn_e'] = _bn_params(ks[1], hidden)
    p['w_dw'] = 0.1 * jax.random.normal(ks[2], (k, k, hidden), jnp.float32)
    p['bn_dw'] = _bn_params(ks[3], hidden)
    p['w1'] = 0.1 * jax.random.normal(ks[4], (hidden, reduced), jnp.float32)
    p['b1'] = 0.1 * jax.random.normal(ks[5], (reduced,), jnp.float32)
    p['w2'] = 0.1 * jax.random.normal(ks[6], (reduced, hidden), jnp.float32)
    p['b2'] = 0.1 * jax.random.normal(ks[7], (hidden,), jnp.float32)
    p['w_p'] = 0.1 * jax.random.normal(ks[8], (hidden, cout), jnp.float32)
    p['bn_p'] = _bn_params(ks[9], cout)
    return p


def inverted_residual_forward(params, x_nchw, cfg):
    cin, cout = cfg['in_channels'], cfg['out_channels']
    hidden = cin * cfg['expand_ratio']
    k, s, pad = cfg['kernel_size'], cfg['stride'], cfg['padding']
    expand = hidden != cin
    use_residual = (cin == cout) and (s == 1)
    N, _, H, W = x_nchw.shape
    Ho = (H + 2 * pad - k) // s + 1
    Wo = (W + 2 * pad - k) // s + 1

    x_r = x_nchw.astype(jnp.float32).reshape(N, cin, H * W)   # free reshape

    args = [x_r]
    scratch = []
    if expand:
        scale_e, bias_e = _fold_bn(params['bn_e'])
        # Fold BN scale into the conv weight (per output channel), then im2col.
        w_e = (params['w_e'] * scale_e).reshape(9 * cin, hidden)
        args += [w_e, bias_e.reshape(1, hidden)]
        scratch += [pltpu.VMEM((H + 2, W + 2, cin), jnp.float32),   # padded input
                    pltpu.VMEM((H * W, 9 * cin), jnp.float32)]      # im2col patches
    scale_dw, bias_dw = _fold_bn(params['bn_dw'])
    scale_p, bias_p = _fold_bn(params['bn_p'])
    reduced = params['w1'].shape[1]
    w_dw = params['w_dw'] * scale_dw                         # BN scale folded
    w1 = params['w1'] * (1.0 / (Ho * Wo))                    # SE mean divisor folded
    w_p = params['w_p'] * scale_p                            # BN scale folded
    args += [w_dw, bias_dw.reshape(1, hidden),
             w1, params['b1'].reshape(1, reduced),
             params['w2'], params['b2'].reshape(1, hidden),
             w_p, bias_p.reshape(1, cout)]
    scratch += [pltpu.VMEM((H + 2 * pad, W + 2 * pad, hidden), jnp.float32)]

    in_specs = [pl.BlockSpec((1, cin, H * W), lambda n: (n, 0, 0))]
    in_specs += [pl.BlockSpec(a.shape, lambda n, _nd=a.ndim: (0,) * _nd)
                 for a in args[1:]]
    out_spec = pl.BlockSpec((1, cout, Ho * Wo), lambda n: (n, 0, 0))

    kernel = functools.partial(
        _mbconv_kernel, expand=expand, use_residual=use_residual,
        H=H, W=W, Ho=Ho, Wo=Wo, KH=k, KW=k, stride=s, pad=pad)

    out = pl.pallas_call(
        kernel,
        out_shape=jax.ShapeDtypeStruct((N, cout, Ho * Wo), jnp.float32),
        grid_spec=pltpu.PrefetchScalarGridSpec(
            num_scalar_prefetch=0,
            grid=(N,),
            in_specs=in_specs,
            out_specs=out_spec,
            scratch_shapes=scratch),
        compiler_params=pltpu.CompilerParams(
            dimension_semantics=("parallel",),
            vmem_limit_bytes=32 * 1024 * 1024),
    )(*args)

    return out.reshape(N, cout, Ho, Wo)                    # free reshape -> NCHW


# --------------------------------------------------------------------------
# Pure-JAX reference (numerical sanity check; uses the UNfolded parameters)
# --------------------------------------------------------------------------
def reference_forward(params, x_nchw, cfg):
    cin, cout = cfg['in_channels'], cfg['out_channels']
    hidden = cin * cfg['expand_ratio']
    k, s, pad = cfg['kernel_size'], cfg['stride'], cfg['padding']
    expand = hidden != cin
    use_residual = (cin == cout) and (s == 1)
    dn = ('NHWC', 'HWIO', 'NHWC')

    def bn(v, p):
        scale, bias = _fold_bn(p)
        return v * scale + bias

    def silu(v):
        return v * jax.nn.sigmoid(v)

    x = jnp.transpose(x_nchw, (0, 2, 3, 1)).astype(jnp.float32)
    inputs = x
    if expand:
        y = jax.lax.conv_general_dilated(x, params['w_e'], (1, 1),
                                         [(1, 1), (1, 1)], dimension_numbers=dn)
        x = silu(bn(y, params['bn_e']))
    y = jax.lax.conv_general_dilated(x, params['w_dw'][:, :, None, :], (s, s),
                                     [(pad, pad), (pad, pad)],
                                     dimension_numbers=dn,
                                     feature_group_count=hidden)
    x = silu(bn(y, params['bn_dw']))
    pooled = jnp.mean(x, axis=(1, 2))
    se = silu(pooled @ params['w1'] + params['b1'])
    g = jax.nn.sigmoid(se @ params['w2'] + params['b2'])
    x = x * g[:, None, None, :]
    y = bn(jnp.einsum('nhwc,co->nhwo', x, params['w_p']), params['bn_p'])
    if use_residual:
        y = y + inputs
    return jnp.transpose(y, (0, 3, 1, 2))


# --------------------------------------------------------------------------
if __name__ == "__main__":
    cfg = dict(in_channels=8, out_channels=8, kernel_size=3, stride=1,
               padding=1, expand_ratio=4, reduction=4)

    root = jax.random.PRNGKey(0)
    k_params, k_input = jax.random.split(root, 2)
    params = init_params(k_params, cfg)

    x = jax.random.normal(k_input, (2, cfg['in_channels'], 16, 16), jnp.float32)

    fwd = jax.jit(functools.partial(inverted_residual_forward, cfg=cfg))
    out = jax.block_until_ready(fwd(params, x))

    ref = reference_forward(params, x, cfg)
    assert out.shape == ref.shape == (2, cfg['out_channels'], 16, 16)
    # Tolerance covers the EUP approximate reciprocal used inside sigmoid/SiLU.
    max_err = float(jnp.max(jnp.abs(out - ref)))
    assert jnp.allclose(out, ref, atol=2e-3, rtol=2e-3), max_err

    print("KERNEL_OK")
</pallas_src>

<mosaic_0001>
module attributes {stable_mosaic.version = 11 : i64} {
  func.func @_mbconv_kernel(%arg0: i32, %arg1: memref<1x8x256xf32, #tpu.memory_space<vmem>>, %arg2: memref<72x32xf32, #tpu.memory_space<vmem>>, %arg3: memref<1x32xf32, #tpu.memory_space<vmem>>, %arg4: memref<3x3x32xf32, #tpu.memory_space<vmem>>, %arg5: memref<1x32xf32, #tpu.memory_space<vmem>>, %arg6: memref<32x2xf32, #tpu.memory_space<vmem>>, %arg7: memref<1x2xf32, #tpu.memory_space<vmem>>, %arg8: memref<2x32xf32, #tpu.memory_space<vmem>>, %arg9: memref<1x32xf32, #tpu.memory_space<vmem>>, %arg10: memref<32x8xf32, #tpu.memory_space<vmem>>, %arg11: memref<1x8xf32, #tpu.memory_space<vmem>>, %arg12: memref<1x8x256xf32, #tpu.memory_space<vmem>>, %arg13: memref<18x18x8xf32, #tpu.memory_space<vmem>>, %arg14: memref<256x72xf32, #tpu.memory_space<vmem>>, %arg15: memref<18x18x32xf32, #tpu.memory_space<vmem>>) attributes {dimension_semantics = [#tpu.dimension_semantics<parallel>], iteration_bounds = array<i64: 2>, scalar_prefetch = 0 : i64, scratch_operands = 3 : i64, tpu.core_type = #tpu.core_type<tc>, window_params = [{transform_indices = @transform_0, window_bounds = array<i64: 1, 8, 256>}, {pipeline_mode = #tpu.pipeline_mode<synchronous>, transform_indices = @transform_1, window_bounds = array<i64: 72, 32>}, {pipeline_mode = #tpu.pipeline_mode<synchronous>, transform_indices = @transform_2, window_bounds = array<i64: 1, 32>}, {pipeline_mode = #tpu.pipeline_mode<synchronous>, transform_indices = @transform_3, window_bounds = array<i64: 3, 3, 32>}, {pipeline_mode = #tpu.pipeline_mode<synchronous>, transform_indices = @transform_4, window_bounds = array<i64: 1, 32>}, {pipeline_mode = #tpu.pipeline_mode<synchronous>, transform_indices = @transform_5, window_bounds = array<i64: 32, 2>}, {pipeline_mode = #tpu.pipeline_mode<synchronous>, transform_indices = @transform_6, window_bounds = array<i64: 1, 2>}, {pipeline_mode = #tpu.pipeline_mode<synchronous>, transform_indices = @transform_7, window_bounds = array<i64: 2, 32>}, {pipeline_mode = #tpu.pipeline_mode<synchronous>, transform_indices = @transform_8, window_bounds = array<i64: 1, 32>}, {pipeline_mode = #tpu.pipeline_mode<synchronous>, transform_indices = @transform_9, window_bounds = array<i64: 32, 8>}, {pipeline_mode = #tpu.pipeline_mode<synchronous>, transform_indices = @transform_10, window_bounds = array<i64: 1, 8>}, {transform_indices = @transform_11, window_bounds = array<i64: 1, 8, 256>}]} {
    %c0 = arith.constant 0 : index
    %c0_0 = arith.constant 0 : index
    %c0_1 = arith.constant 0 : index
    %0 = vector.load %arg1[%c0, %c0_0, %c0_1] : memref<1x8x256xf32, #tpu.memory_space<vmem>>, vector<1x8x256xf32>
    %1 = vector.shape_cast %0 : vector<1x8x256xf32> to vector<8x256xf32>
    %2 = tpu.transpose %1, [1, 0] : vector<8x256xf32> -> vector<256x8xf32>
    %cst = arith.constant 0.000000e+00 : f32
    %3 = vector.broadcast %cst : f32 to vector<18x18x8xf32>
    %c0_2 = arith.constant 0 : index
    %c0_3 = arith.constant 0 : index
    %c0_4 = arith.constant 0 : index
    %4 = vector.load %arg13[%c0_2, %c0_3, %c0_4] : memref<18x18x8xf32, #tpu.memory_space<vmem>>, vector<18x18x8xf32>
    tpu.vector_store %arg13[%c0_2, %c0_3, %c0_4], %3 {strides = array<i32>} : memref<18x18x8xf32, #tpu.memory_space<vmem>>, vector<18x18x8xf32>,
    %5 = vector.shape_cast %2 : vector<256x8xf32> to vector<16x16x8xf32>
    %c1 = arith.constant 1 : index
    %c1_5 = arith.constant 1 : index
    %c0_6 = arith.constant 0 : index
    %6 = vector.load %arg13[%c1, %c1_5, %c0_6] : memref<18x18x8xf32, #tpu.memory_space<vmem>>, vector<16x16x8xf32>
    tpu.vector_store %arg13[%c1, %c1_5, %c0_6], %5 {strides = array<i32>} : memref<18x18x8xf32, #tpu.memory_space<vmem>>, vector<16x16x8xf32>,
    %c0_7 = arith.constant 0 : index
    %c0_8 = arith.constant 0 : index
    %c0_9 = arith.constant 0 : index
    %7 = vector.load %arg13[%c0_7, %c0_8, %c0_9] : memref<18x18x8xf32, #tpu.memory_space<vmem>>, vector<16x16x8xf32>
    %8 = vector.shape_cast %7 : vector<16x16x8xf32> to vector<256x8xf32>
    %c0_10 = arith.constant 0 : index
    %c0_11 = arith.constant 0 : index
    %9 = vector.load %arg14[%c0_10, %c0_11] : memref<256x72xf32, #tpu.memory_space<vmem>>, vector<256x8xf32>
    tpu.vector_store %arg14[%c0_10, %c0_11], %8 {strides = array<i32>} : memref<256x72xf32, #tpu.memory_space<vmem>>, vector<256x8xf32>,
    %c0_12 = arith.constant 0 : index
    %c1_13 = arith.constant 1 : index
    %c0_14 = arith.constant 0 : index
    %10 = vector.load %arg13[%c0_12, %c1_13, %c0_14] : memref<18x18x8xf32, #tpu.memory_space<vmem>>, vector<16x16x8xf32>
    %11 = vector.shape_cast %10 : vector<16x16x8xf32> to vector<256x8xf32>
    %c0_15 = arith.constant 0 : index
    %c8 = arith.constant 8 : index
    %12 = vector.load %arg14[%c0_15, %c8] : memref<256x72xf32, #tpu.memory_space<vmem>>, vector<256x8xf32>
    tpu.vector_store %arg14[%c0_15, %c8], %11 {strides = array<i32>} : memref<256x72xf32, #tpu.memory_space<vmem>>, vector<256x8xf32>,
    %c0_16 = arith.constant 0 : index
    %c2 = arith.constant 2 : index
    %c0_17 = arith.constant 0 : index
    %13 = vector.load %arg13[%c0_16, %c2, %c0_17] : memref<18x18x8xf32, #tpu.memory_space<vmem>>, vector<16x16x8xf32>
    %14 = vector.shape_cast %13 : vector<16x16x8xf32> to vector<256x8xf32>
    %c0_18 = arith.constant 0 : index
    %c16 = arith.constant 16 : index
    %15 = vector.load %arg14[%c0_18, %c16] : memref<256x72xf32, #tpu.memory_space<vmem>>, vector<256x8xf32>
    tpu.vector_store %arg14[%c0_18, %c16], %14 {strides = array<i32>} : memref<256x72xf32, #tpu.memory_space<vmem>>, vector<256x8xf32>,
    %c1_19 = arith.constant 1 : index
    %c0_20 = arith.constant 0 : index
    %c0_21 = arith.constant 0 : index
    %16 = vector.load %arg13[%c1_19, %c0_20, %c0_21] : memref<18x18x8xf32, #tpu.memory_space<vmem>>, vector<16x16x8xf32>
    %17 = vector.shape_cast %16 : vector<16x16x8xf32> to vector<256x8xf32>
    %c0_22 = arith.constant 0 : index
    %c24 = arith.constant 24 : index
    %18 = vector.load %arg14[%c0_22, %c24] : memref<256x72xf32, #tpu.memory_space<vmem>>, vector<256x8xf32>
    tpu.vector_store %arg14[%c0_22, %c24], %17 {strides = array<i32>} : memref<256x72xf32, #tpu.memory_space<vmem>>, vector<256x8xf32>,
    %c1_23 = arith.constant 1 : index
    %c1_24 = arith.constant 1 : index
    %c0_25 = arith.constant 0 : index
    %19 = vector.load %arg13[%c1_23, %c1_24, %c0_25] : memref<18x18x8xf32, #tpu.memory_space<vmem>>, vector<16x16x8xf32>
    %20 = vector.shape_cast %19 : vector<16x16x8xf32> to vector<256x8xf32>
    %c0_26 = arith.constant 0 : index
    %c32 = arith.constant 32 : index
    %21 = vector.load %arg14[%c0_26, %c32] : memref<256x72xf32, #tpu.memory_space<vmem>>, vector<256x8xf32>
    tpu.vector_store %arg14[%c0_26, %c32], %20 {strides = array<i32>} : memref<256x72xf32, #tpu.memory_space<vmem>>, vector<256x8xf32>,
    %c1_27 = arith.constant 1 : index
    %c2_28 = arith.constant 2 : index
    %c0_29 = arith.constant 0 : index
    %22 = vector.load %arg13[%c1_27, %c2_28, %c0_29] : memref<18x18x8xf32, #tpu.memory_space<vmem>>, vector<16x16x8xf32>
    %23 = vector.shape_cast %22 : vector<16x16x8xf32> to vector<256x8xf32>
    %c0_30 = arith.constant 0 : index
    %c40 = arith.constant 40 : index
    %24 = vector.load %arg14[%c0_30, %c40] : memref<256x72xf32, #tpu.memory_space<vmem>>, vector<256x8xf32>
    tpu.vector_store %arg14[%c0_30, %c40], %23 {strides = array<i32>} : memref<256x72xf32, #tpu.memory_space<vmem>>, vector<256x8xf32>,
    %c2_31 = arith.constant 2 : index
    %c0_32 = arith.constant 0 : index
    %c0_33 = arith.constant 0 : index
    %25 = vector.load %arg13[%c2_31, %c0_32, %c0_33] : memref<18x18x8xf32, #tpu.memory_space<vmem>>, vector<16x16x8xf32>
    %26 = vector.shape_cast %25 : vector<16x16x8xf32> to vector<256x8xf32>
    %c0_34 = arith.constant 0 : index
    %c48 = arith.constant 48 : index
    %27 = vector.load %arg14[%c0_34, %c48] : memref<256x72xf32, #tpu.memory_space<vmem>>, vector<256x8xf32>
    tpu.vector_store %arg14[%c0_34, %c48], %26 {strides = array<i32>} : memref<256x72xf32, #tpu.memory_space<vmem>>, vector<256x8xf32>,
    %c2_35 = arith.constant 2 : index
    %c1_36 = arith.constant 1 : index
    %c0_37 = arith.constant 0 : index
    %28 = vector.load %arg13[%c2_35, %c1_36, %c0_37] : memref<18x18x8xf32, #tpu.memory_space<vmem>>, vector<16x16x8xf32>
    %29 = vector.shape_cast %28 : vector<16x16x8xf32> to vector<256x8xf32>
    %c0_38 = arith.constant 0 : index
    %c56 = arith.constant 56 : index
    %30 = vector.load %arg14[%c0_38, %c56] : memref<256x72xf32, #tpu.memory_space<vmem>>, vector<256x8xf32>
    tpu.vector_store %arg14[%c0_38, %c56], %29 {strides = array<i32>} : memref<256x72xf32, #tpu.memory_space<vmem>>, vector<256x8xf32>,
    %c2_39 = arith.constant 2 : index
    %c2_40 = arith.constant 2 : index
    %c0_41 = arith.constant 0 : index
    %31 = vector.load %arg13[%c2_39, %c2_40, %c0_41] : memref<18x18x8xf32, #tpu.memory_space<vmem>>, vector<16x16x8xf32>
    %32 = vector.shape_cast %31 : vector<16x16x8xf32> to vector<256x8xf32>
    %c0_42 = arith.constant 0 : index
    %c64 = arith.constant 64 : index
    %33 = vector.load %arg14[%c0_42, %c64] : memref<256x72xf32, #tpu.memory_space<vmem>>, vector<256x8xf32>
    tpu.vector_store %arg14[%c0_42, %c64], %32 {strides = array<i32>} : memref<256x72xf32, #tpu.memory_space<vmem>>, vector<256x8xf32>,
    %c0_43 = arith.constant 0 : index
    %c0_44 = arith.constant 0 : index
    %34 = vector.load %arg14[%c0_43, %c0_44] : memref<256x72xf32, #tpu.memory_space<vmem>>, vector<256x72xf32>
    %c0_45 = arith.constant 0 : index
    %c0_46 = arith.constant 0 : index
    %35 = vector.load %arg2[%c0_45, %c0_46] : memref<72x32xf32, #tpu.memory_space<vmem>>, vector<72x32xf32>
    %cst_47 = arith.constant dense<0.000000e+00> : vector<256x32xf32>
    %36 = tpu.matmul %34, %35, %cst_47 {dimension_numbers = #tpu.dot_dimension_numbers<[1], [0], [0], [1], [0, 0, 1, 1], [], []>} : vector<256x72xf32>, vector<72x32xf32>, vector<256x32xf32> -> vector<256x32xf32>
    %c0_48 = arith.constant 0 : index
    %c0_49 = arith.constant 0 : index
    %37 = vector.load %arg3[%c0_48, %c0_49] : memref<1x32xf32, #tpu.memory_space<vmem>>, vector<1x32xf32>
    %38 = vector.broadcast %37 : vector<1x32xf32> to vector<256x32xf32>
    %39 = arith.addf %36, %38 : vector<256x32xf32>
    %cst_50 = arith.constant 0.000000e+00 : f32
    %40 = vector.broadcast %cst_50 : f32 to vector<256x32xf32>
    %41 = arith.subf %40, %39 : vector<256x32xf32>
    %42 = math.exp %41 : vector<256x32xf32>
    %cst_51 = arith.constant 1.000000e+00 : f32
    %43 = vector.broadcast %cst_51 : f32 to vector<256x32xf32>
    %44 = arith.addf %43, %42 : vector<256x32xf32>
    %45 = tpu.reciprocal %44 {approx = true} : vector<256x32xf32> -> vector<256x32xf32>
    %46 = arith.mulf %39, %45 : vector<256x32xf32>
    %cst_52 = arith.constant 0.000000e+00 : f32
    %47 = vector.broadcast %cst_52 : f32 to vector<18x18x32xf32>
    %c0_53 = arith.constant 0 : index
    %c0_54 = arith.constant 0 : index
    %c0_55 = arith.constant 0 : index
    %48 = vector.load %arg15[%c0_53, %c0_54, %c0_55] : memref<18x18x32xf32, #tpu.memory_space<vmem>>, vector<18x18x32xf32>
    tpu.vector_store %arg15[%c0_53, %c0_54, %c0_55], %47 {strides = array<i32>} : memref<18x18x32xf32, #tpu.memory_space<vmem>>, vector<18x18x32xf32>,
    %49 = vector.shape_cast %46 : vector<256x32xf32> to vector<16x16x32xf32>
    %c1_56 = arith.constant 1 : index
    %c1_57 = arith.constant 1 : index
    %c0_58 = arith.constant 0 : index
    %50 = vector.load %arg15[%c1_56, %c1_57, %c0_58] : memref<18x18x32xf32, #tpu.memory_space<vmem>>, vector<16x16x32xf32>
    tpu.vector_store %arg15[%c1_56, %c1_57, %c0_58], %49 {strides = array<i32>} : memref<18x18x32xf32, #tpu.memory_space<vmem>>, vector<16x16x32xf32>,
    %c0_59 = arith.constant 0 : index
    %c0_60 = arith.constant 0 : index
    %c0_61 = arith.constant 0 : index
    %51 = vector.load %arg4[%c0_59, %c0_60, %c0_61] : memref<3x3x32xf32, #tpu.memory_space<vmem>>, vector<3x3x32xf32>
    %cst_62 = arith.constant 0.000000e+00 : f32
    %52 = vector.broadcast %cst_62 : f32 to vector<16x16x32xf32>
    %c0_63 = arith.constant 0 : index
    %c0_64 = arith.constant 0 : index
    %c0_65 = arith.constant 0 : index
    %53 = vector.load %arg15[%c0_63, %c0_64, %c0_65] : memref<18x18x32xf32, #tpu.memory_space<vmem>>, vector<16x16x32xf32>
    %54 = vector.extract_strided_slice %51 {offsets = [0, 0, 0], sizes = [1, 1, 32], strides = [1, 1, 1]} : vector<3x3x32xf32> to vector<1x1x32xf32>
    %55 = vector.shape_cast %54 : vector<1x1x32xf32> to vector<32xf32>
    %56 = vector.shape_cast %55 : vector<32xf32> to vector<1x1x32xf32>
    %57 = vector.broadcast %56 : vector<1x1x32xf32> to vector<16x16x32xf32>
    %58 = arith.mulf %53, %57 : vector<16x16x32xf32>
    %59 = arith.addf %52, %58 : vector<16x16x32xf32>
    %c0_66 = arith.constant 0 : index
    %c1_67 = arith.constant 1 : index
    %c0_68 = arith.constant 0 : index
    %60 = vector.load %arg15[%c0_66, %c1_67, %c0_68] : memref<18x18x32xf32, #tpu.memory_space<vmem>>, vector<16x16x32xf32>
    %61 = vector.extract_strided_slice %51 {offsets = [0, 1, 0], sizes = [1, 1, 32], strides = [1, 1, 1]} : vector<3x3x32xf32> to vector<1x1x32xf32>
    %62 = vector.shape_cast %61 : vector<1x1x32xf32> to vector<32xf32>
    %63 = vector.shape_cast %62 : vector<32xf32> to vector<1x1x32xf32>
    %64 = vector.broadcast %63 : vector<1x1x32xf32> to vector<16x16x32xf32>
    %65 = arith.mulf %60, %64 : vector<16x16x32xf32>
    %66 = arith.addf %59, %65 : vector<16x16x32xf32>
    %c0_69 = arith.constant 0 : index
    %c2_70 = arith.constant 2 : index
    %c0_71 = arith.constant 0 : index
    %67 = vector.load %arg15[%c0_69, %c2_70, %c0_71] : memref<18x18x32xf32, #tpu.memory_space<vmem>>, vector<16x16x32xf32>
    %68 = vector.extract_strided_slice %51 {offsets = [0, 2, 0], sizes = [1, 1, 32], strides = [1, 1, 1]} : vector<3x3x32xf32> to vector<1x1x32xf32>
    %69 = vector.shape_cast %68 : vector<1x1x32xf32> to vector<32xf32>
    %70 = vector.shape_cast %69 : vector<32xf32> to vector<1x1x32xf32>
    %71 = vector.broadcast %70 : vector<1x1x32xf32> to vector<16x16x32xf32>
    %72 = arith.mulf %67, %71 : vector<16x16x32xf32>
    %73 = arith.addf %66, %72 : vector<16x16x32xf32>
    %c1_72 = arith.constant 1 : index
    %c0_73 = arith.constant 0 : index
    %c0_74 = arith.constant 0 : index
    %74 = vector.load %arg15[%c1_72, %c0_73, %c0_74] : memref<18x18x32xf32, #tpu.memory_space<vmem>>, vector<16x16x32xf32>
    %75 = vector.extract_strided_slice %51 {offsets = [1, 0, 0], sizes = [1, 1, 32], strides = [1, 1, 1]} : vector<3x3x32xf32> to vector<1x1x32xf32>
    %76 = vector.shape_cast %75 : vector<1x1x32xf32> to vector<32xf32>
    %77 = vector.shape_cast %76 : vector<32xf32> to vector<1x1x32xf32>
    %78 = vector.broadcast %77 : vector<1x1x32xf32> to vector<16x16x32xf32>
    %79 = arith.mulf %74, %78 : vector<16x16x32xf32>
    %80 = arith.addf %73, %79 : vector<16x16x32xf32>
    %c1_75 = arith.constant 1 : index
    %c1_76 = arith.constant 1 : index
    %c0_77 = arith.constant 0 : index
    %81 = vector.load %arg15[%c1_75, %c1_76, %c0_77] : memref<18x18x32xf32, #tpu.memory_space<vmem>>, vector<16x16x32xf32>
    %82 = vector.extract_strided_slice %51 {offsets = [1, 1, 0], sizes = [1, 1, 32], strides = [1, 1, 1]} : vector<3x3x32xf32> to vector<1x1x32xf32>
    %83 = vector.shape_cast %82 : vector<1x1x32xf32> to vector<32xf32>
    %84 = vector.shape_cast %83 : vector<32xf32> to vector<1x1x32xf32>
    %85 = vector.broadcast %84 : vector<1x1x32xf32> to vector<16x16x32xf32>
    %86 = arith.mulf %81, %85 : vector<16x16x32xf32>
    %87 = arith.addf %80, %86 : vector<16x16x32xf32>
    %c1_78 = arith.constant 1 : index
    %c2_79 = arith.constant 2 : index
    %c0_80 = arith.constant 0 : index
    %88 = vector.load %arg15[%c1_78, %c2_79, %c0_80] : memref<18x18x32xf32, #tpu.memory_space<vmem>>, vector<16x16x32xf32>
    %89 = vector.extract_strided_slice %51 {offsets = [1, 2, 0], sizes = [1, 1, 32], strides = [1, 1, 1]} : vector<3x3x32xf32> to vector<1x1x32xf32>
    %90 = vector.shape_cast %89 : vector<1x1x32xf32> to vector<32xf32>
    %91 = vector.shape_cast %90 : vector<32xf32> to vector<1x1x32xf32>
    %92 = vector.broadcast %91 : vector<1x1x32xf32> to vector<16x16x32xf32>
    %93 = arith.mulf %88, %92 : vector<16x16x32xf32>
    %94 = arith.addf %87, %93 : vector<16x16x32xf32>
    %c2_81 = arith.constant 2 : index
    %c0_82 = arith.constant 0 : index
    %c0_83 = arith.constant 0 : index
    %95 = vector.load %arg15[%c2_81, %c0_82, %c0_83] : memref<18x18x32xf32, #tpu.memory_space<vmem>>, vector<16x16x32xf32>
    %96 = vector.extract_strided_slice %51 {offsets = [2, 0, 0], sizes = [1, 1, 32], strides = [1, 1, 1]} : vector<3x3x32xf32> to vector<1x1x32xf32>
    %97 = vector.shape_cast %96 : vector<1x1x32xf32> to vector<32xf32>
    %98 = vector.shape_cast %97 : vector<32xf32> to vector<1x1x32xf32>
    %99 = vector.broadcast %98 : vector<1x1x32xf32> to vector<16x16x32xf32>
    %100 = arith.mulf %95, %99 : vector<16x16x32xf32>
    %101 = arith.addf %94, %100 : vector<16x16x32xf32>
    %c2_84 = arith.constant 2 : index
    %c1_85 = arith.constant 1 : index
    %c0_86 = arith.constant 0 : index
    %102 = vector.load %arg15[%c2_84, %c1_85, %c0_86] : memref<18x18x32xf32, #tpu.memory_space<vmem>>, vector<16x16x32xf32>
    %103 = vector.extract_strided_slice %51 {offsets = [2, 1, 0], sizes = [1, 1, 32], strides = [1, 1, 1]} : vector<3x3x32xf32> to vector<1x1x32xf32>
    %104 = vector.shape_cast %103 : vector<1x1x32xf32> to vector<32xf32>
    %105 = vector.shape_cast %104 : vector<32xf32> to vector<1x1x32xf32>
    %106 = vector.broadcast %105 : vector<1x1x32xf32> to vector<16x16x32xf32>
    %107 = arith.mulf %102, %106 : vector<16x16x32xf32>
    %108 = arith.addf %101, %107 : vector<16x16x32xf32>
    %c2_87 = arith.constant 2 : index
    %c2_88 = arith.constant 2 : index
    %c0_89 = arith.constant 0 : index
    %109 = vector.load %arg15[%c2_87, %c2_88, %c0_89] : memref<18x18x32xf32, #tpu.memory_space<vmem>>, vector<16x16x32xf32>
    %110 = vector.extract_strided_slice %51 {offsets = [2, 2, 0], sizes = [1, 1, 32], strides = [1, 1, 1]} : vector<3x3x32xf32> to vector<1x1x32xf32>
    %111 = vector.shape_cast %110 : vector<1x1x32xf32> to vector<32xf32>
    %112 = vector.shape_cast %111 : vector<32xf32> to vector<1x1x32xf32>
    %113 = vector.broadcast %112 : vector<1x1x32xf32> to vector<16x16x32xf32>
    %114 = arith.mulf %109, %113 : vector<16x16x32xf32>
    %115 = arith.addf %108, %114 : vector<16x16x32xf32>
    %116 = vector.shape_cast %115 : vector<16x16x32xf32> to vector<256x32xf32>
    %c0_90 = arith.constant 0 : index
    %c0_91 = arith.constant 0 : index
    %117 = vector.load %arg5[%c0_90, %c0_91] : memref<1x32xf32, #tpu.memory_space<vmem>>, vector<1x32xf32>
    %118 = vector.broadcast %117 : vector<1x32xf32> to vector<256x32xf32>
    %119 = arith.addf %116, %118 : vector<256x32xf32>
    %cst_92 = arith.constant 0.000000e+00 : f32
    %120 = vector.broadcast %cst_92 : f32 to vector<256x32xf32>
    %121 = arith.subf %120, %119 : vector<256x32xf32>
    %122 = math.exp %121 : vector<256x32xf32>
    %cst_93 = arith.constant 1.000000e+00 : f32
    %123 = vector.broadcast %cst_93 : f32 to vector<256x32xf32>
    %124 = arith.addf %123, %122 : vector<256x32xf32>
    %125 = tpu.reciprocal %124 {approx = true} : vector<256x32xf32> -> vector<256x32xf32>
    %126 = arith.mulf %119, %125 : vector<256x32xf32>
    %cst_94 = arith.constant dense<0.000000e+00> : vector<32xf32>
    %127 = vector.multi_reduction <add>, %126, %cst_94 [0] : vector<256x32xf32> to vector<32xf32>
    %128 = vector.shape_cast %127 : vector<32xf32> to vector<1x32xf32>
    %c0_95 = arith.constant 0 : index
    %c0_96 = arith.constant 0 : index
    %129 = vector.load %arg6[%c0_95, %c0_96] : memref<32x2xf32, #tpu.memory_space<vmem>>, vector<32x2xf32>
    %cst_97 = arith.constant dense<0.000000e+00> : vector<1x2xf32>
    %130 = tpu.matmul %128, %129, %cst_97 {dimension_numbers = #tpu.dot_dimension_numbers<[1], [0], [0], [1], [0, 0, 1, 1], [], []>} : vector<1x32xf32>, vector<32x2xf32>, vector<1x2xf32> -> vector<1x2xf32>
    %c0_98 = arith.constant 0 : index
    %c0_99 = arith.constant 0 : index
    %131 = vector.load %arg7[%c0_98, %c0_99] : memref<1x2xf32, #tpu.memory_space<vmem>>, vector<1x2xf32>
    %132 = arith.addf %130, %131 : vector<1x2xf32>
    %cst_100 = arith.constant 0.000000e+00 : f32
    %133 = vector.broadcast %cst_100 : f32 to vector<1x2xf32>
    %134 = arith.subf %133, %132 : vector<1x2xf32>
    %135 = math.exp %134 : vector<1x2xf32>
    %cst_101 = arith.constant 1.000000e+00 : f32
    %136 = vector.broadcast %cst_101 : f32 to vector<1x2xf32>
    %137 = arith.addf %136, %135 : vector<1x2xf32>
    %138 = tpu.reciprocal %137 {approx = true} : vector<1x2xf32> -> vector<1x2xf32>
    %139 = arith.mulf %132, %138 : vector<1x2xf32>
    %c0_102 = arith.constant 0 : index
    %c0_103 = arith.constant 0 : index
    %140 = vector.load %arg8[%c0_102, %c0_103] : memref<2x32xf32, #tpu.memory_space<vmem>>, vector<2x32xf32>
    %cst_104 = arith.constant dense<0.000000e+00> : vector<1x32xf32>
    %141 = tpu.matmul %139, %140, %cst_104 {dimension_numbers = #tpu.dot_dimension_numbers<[1], [0], [0], [1], [0, 0, 1, 1], [], []>} : vector<1x2xf32>, vector<2x32xf32>, vector<1x32xf32> -> vector<1x32xf32>
    %c0_105 = arith.constant 0 : index
    %c0_106 = arith.constant 0 : index
    %142 = vector.load %arg9[%c0_105, %c0_106] : memref<1x32xf32, #tpu.memory_space<vmem>>, vector<1x32xf32>
    %143 = arith.addf %141, %142 : vector<1x32xf32>
    %cst_107 = arith.constant 0.000000e+00 : f32
    %144 = vector.broadcast %cst_107 : f32 to vector<1x32xf32>
    %145 = arith.subf %144, %143 : vector<1x32xf32>
    %146 = math.exp %145 : vector<1x32xf32>
    %cst_108 = arith.constant 1.000000e+00 : f32
    %147 = vector.broadcast %cst_108 : f32 to vector<1x32xf32>
    %148 = arith.addf %147, %146 : vector<1x32xf32>
    %149 = tpu.reciprocal %148 {approx = true} : vector<1x32xf32> -> vector<1x32xf32>
    %150 = vector.broadcast %149 : vector<1x32xf32> to vector<256x32xf32>
    %151 = arith.mulf %126, %150 : vector<256x32xf32>
    %c0_109 = arith.constant 0 : index
    %c0_110 = arith.constant 0 : index
    %152 = vector.load %arg10[%c0_109, %c0_110] : memref<32x8xf32, #tpu.memory_space<vmem>>, vector<32x8xf32>
    %cst_111 = arith.constant dense<0.000000e+00> : vector<256x8xf32>
    %153 = tpu.matmul %151, %152, %cst_111 {dimension_numbers = #tpu.dot_dimension_numbers<[1], [0], [0], [1], [0, 0, 1, 1], [], []>} : vector<256x32xf32>, vector<32x8xf32>, vector<256x8xf32> -> vector<256x8xf32>
    %c0_112 = arith.constant 0 : index
    %c0_113 = arith.constant 0 : index
    %154 = vector.load %arg11[%c0_112, %c0_113] : memref<1x8xf32, #tpu.memory_space<vmem>>, vector<1x8xf32>
    %155 = vector.broadcast %154 : vector<1x8xf32> to vector<256x8xf32>
    %156 = arith.addf %153, %155 : vector<256x8xf32>
    %157 = arith.addf %156, %2 : vector<256x8xf32>
    %158 = tpu.transpose %157, [1, 0] : vector<256x8xf32> -> vector<8x256xf32>
    %c0_114 = arith.constant 0 : index
    %c0_115 = arith.constant 0 : index
    %c0_116 = arith.constant 0 : index
    %159 = vector.load %arg12[%c0_114, %c0_115, %c0_116] : memref<1x8x256xf32, #tpu.memory_space<vmem>>, vector<1x8x256xf32>
    %160 = vector.shape_cast %159 : vector<1x8x256xf32> to vector<8x256xf32>
    %161 = vector.shape_cast %158 : vector<8x256xf32> to vector<1x8x256xf32>
    tpu.vector_store %arg12[%c0_114, %c0_115, %c0_116], %161 {strides = array<i32>} : memref<1x8x256xf32, #tpu.memory_space<vmem>>, vector<1x8x256xf32>,
    return
  }
  func.func @transform_0(%arg0: i32) -> (i32, i32, i32) {
    %c0_i32 = arith.constant 0 : i32
    %c0_i32_0 = arith.constant 0 : i32
    %c0_i32_1 = arith.constant 0 : i32
    return %arg0, %c0_i32, %c0_i32_0 : i32, i32, i32
  }
  func.func @transform_1(%arg0: i32) -> (i32, i32) {
    %c0_i32 = arith.constant 0 : i32
    %c0_i32_0 = arith.constant 0 : i32
    %c0_i32_1 = arith.constant 0 : i32
    return %c0_i32, %c0_i32_0 : i32, i32
  }
  func.func @transform_2(%arg0: i32) -> (i32, i32) {
    %c0_i32 = arith.constant 0 : i32
    %c0_i32_0 = arith.constant 0 : i32
    %c0_i32_1 = arith.constant 0 : i32
    return %c0_i32, %c0_i32_0 : i32, i32
  }
  func.func @transform_3(%arg0: i32) -> (i32, i32, i32) {
    %c0_i32 = arith.constant 0 : i32
    %c0_i32_0 = arith.constant 0 : i32
    %c0_i32_1 = arith.constant 0 : i32
    %c0_i32_2 = arith.constant 0 : i32
    return %c0_i32, %c0_i32_0, %c0_i32_1 : i32, i32, i32
  }
  func.func @transform_4(%arg0: i32) -> (i32, i32) {
    %c0_i32 = arith.constant 0 : i32
    %c0_i32_0 = arith.constant 0 : i32
    %c0_i32_1 = arith.constant 0 : i32
    return %c0_i32, %c0_i32_0 : i32, i32
  }
  func.func @transform_5(%arg0: i32) -> (i32, i32) {
    %c0_i32 = arith.constant 0 : i32
    %c0_i32_0 = arith.constant 0 : i32
    %c0_i32_1 = arith.constant 0 : i32
    return %c0_i32, %c0_i32_0 : i32, i32
  }
  func.func @transform_6(%arg0: i32) -> (i32, i32) {
    %c0_i32 = arith.constant 0 : i32
    %c0_i32_0 = arith.constant 0 : i32
    %c0_i32_1 = arith.constant 0 : i32
    return %c0_i32, %c0_i32_0 : i32, i32
  }
  func.func @transform_7(%arg0: i32) -> (i32, i32) {
    %c0_i32 = arith.constant 0 : i32
    %c0_i32_0 = arith.constant 0 : i32
    %c0_i32_1 = arith.constant 0 : i32
    return %c0_i32, %c0_i32_0 : i32, i32
  }
  func.func @transform_8(%arg0: i32) -> (i32, i32) {
    %c0_i32 = arith.constant 0 : i32
    %c0_i32_0 = arith.constant 0 : i32
    %c0_i32_1 = arith.constant 0 : i32
    return %c0_i32, %c0_i32_0 : i32, i32
  }
  func.func @transform_9(%arg0: i32) -> (i32, i32) {
    %c0_i32 = arith.constant 0 : i32
    %c0_i32_0 = arith.constant 0 : i32
    %c0_i32_1 = arith.constant 0 : i32
    return %c0_i32, %c0_i32_0 : i32, i32
  }
  func.func @transform_10(%arg0: i32) -> (i32, i32) {
    %c0_i32 = arith.constant 0 : i32
    %c0_i32_0 = arith.constant 0 : i32
    %c0_i32_1 = arith.constant 0 : i32
    return %c0_i32, %c0_i32_0 : i32, i32
  }
  func.func @transform_11(%arg0: i32) -> (i32, i32, i32) {
    %c0_i32 = arith.constant 0 : i32
    %c0_i32_0 = arith.constant 0 : i32
    %c0_i32_1 = arith.constant 0 : i32
    return %arg0, %c0_i32, %c0_i32_0 : i32, i32, i32
  }
}

</mosaic_0001>

<llo_original>
// kernel: inverted_residual_forward.1
$region0: #{inverted_residual_forward.1}
  #allocation0 [shape = 'u32[]', space=smem, size = 0x4, offset = 0x4, fixed_abs, tag = 'smem constant byte address 0x4 - core index']
  #allocation1 [shape = 'u32[144,128]{1,0:T(1,128)}', space=vmem, size = 0x12000, scoped, tag = 'internal scratch']
  #allocation2 [shape = 'f32[18,18,8]{2,1,0:T(8,128)}', space=vmem, size = 0x36000, scoped, tag = 'scratch operand']
  #allocation3 [shape = 'f32[256,72]{1,0:T(8,128)}', space=vmem, size = 0x20000, scoped, tag = 'scratch operand']
  #allocation4 [shape = 'f32[18,18,32]{2,1,0:T(8,128)}', space=vmem, size = 0x36000, scoped, tag = 'scratch operand']
  %s0 = inlined_call_operand.vmem [shape: f32[2,8,256], index: 0, kind: input, shape index: {}]
  %s1 = inlined_call_operand.vmem [shape: f32[72,32], index: 1, kind: input, shape index: {}]
  %s2 = inlined_call_operand.vmem [shape: f32[1,32], index: 2, kind: input, shape index: {}]
  %s3 = inlined_call_operand.vmem [shape: f32[3,3,32], index: 3, kind: input, shape index: {}]
  %s4 = inlined_call_operand.vmem [shape: f32[1,32], index: 4, kind: input, shape index: {}]
  %s5 = inlined_call_operand.vmem [shape: f32[32,2], index: 5, kind: input, shape index: {}]
  %s6 = inlined_call_operand.vmem [shape: f32[1,2], index: 6, kind: input, shape index: {}]
  %s7 = inlined_call_operand.vmem [shape: f32[2,32], index: 7, kind: input, shape index: {}]
  %s8 = inlined_call_operand.vmem [shape: f32[1,32], index: 8, kind: input, shape index: {}]
  %s9 = inlined_call_operand.vmem [shape: f32[32,8], index: 9, kind: input, shape index: {}]
  %s10 = inlined_call_operand.vmem [shape: f32[1,8], index: 10, kind: input, shape index: {}]
  %s11 = inlined_call_operand.vmem [shape: f32[2,8,256], index: 11, kind: output, shape index: {}]
  %s12 = sld [smem:[#allocation0]]
  $region77: #{inverted_residual_forward.1} parent=0
    _
  %s14 = ssub.s32 1, %s12
  %s15 = scalar_select 0, %s14, %s12
  loop: start=0, step=1, limit=4
  $region2: #{inverted_residual_forward.1} parent=0 // loop_pre_header
    _
  $region3: #{inverted_residual_forward.1} parent=0 // loop_header
    %s17 = sphi 0, %s21
    %p18 = scmp.ge.s32.totalorder %s17, 4
    %s27 = sphi 0, %s29
    %s30 = sphi 0, %s27
    %s31 = sphi 0, %s30
    %s47 = sphi 0, %s31
    %s51 = sphi 0, %s51
    %s53 = sphi 0, %s51
    %s54 = sphi 0, %s53
    %s68 = sphi 0, %s54
    %s72 = sphi 0, %s72
    %s74 = sphi 0, %s72
    %s75 = sphi 0, %s74
    %s89 = sphi 0, %s75
    %s93 = sphi 0, %s93
    %s95 = sphi 0, %s93
    %s96 = sphi 0, %s95
    %s110 = sphi 0, %s96
    %s114 = sphi 0, %s114
    %s116 = sphi 0, %s114
    %s117 = sphi 0, %s116
    %s131 = sphi 0, %s117
    %s135 = sphi 0, %s135
    %s137 = sphi 0, %s135
    %s138 = sphi 0, %s137
    %s152 = sphi 0, %s138
    %s156 = sphi 0, %s156
    %s158 = sphi 0, %s156
    %s159 = sphi 0, %s158
    %s173 = sphi 0, %s159
    %s177 = sphi 0, %s177
    %s179 = sphi 0, %s177
    %s180 = sphi 0, %s179
    %s194 = sphi 0, %s180
    %s198 = sphi 0, %s198
    %s200 = sphi 0, %s198
    %s201 = sphi 0, %s200
    %s215 = sphi 0, %s201
    %s219 = sphi 0, %s219
    %s221 = sphi 0, %s219
    %s222 = sphi 0, %s221
    %s236 = sphi 0, %s222
    %s240 = sphi 0, %s240
    %s242 = sphi 0, %s240
    %s243 = sphi 0, %s242
    %s257 = sphi 0, %s243
    %s263 = sphi 0, %s265
    %s266 = sphi 0, %s263
    %s267 = sphi 0, %s266
    %s283 = sphi 0, %s267
  $region4: #{inverted_residual_forward.1} parent=0 // loop_header_branch
    %20 = sbr.rel (%p18) target = $region8
  $region5: #{inverted_residual_forward.1} parent=0 // loop_body
    %s22 = ssub.s32 %s17, 1
    %s23 = ssub.s32 %s17, 2
    %s24 = sadd.s32 %s17, 1
    %s25 = ssub.s32 %s17, %s24
    %p26 = scmp.eq.s32.totalorder %s25, 0
    %s28 = sadd.s32 %s27, 1
    %s29 = scalar_select %p26, %s27, %s28
    %p32 = pneg %p26
    %p33 = scmp.eq.s32.totalorder %s17, 1
    %p34 = por %p32, %p33
    %p35 = scmp.ne.s32.totalorder %s27, %s30
    %p36 = scmp.eq.s32.totalorder %s17, 0
    %p37 = por %p35, %p36
    %p38 = scmp.ne.s32.totalorder %s27, %s30
    %p39 = scmp.eq.s32.totalorder %s22, 1
    %p40 = por %p38, %p39
    %p41 = scmp.ne.s32.totalorder %s30, %s31
    %p42 = scmp.eq.s32.totalorder %s22, 0
    %p43 = por %p41, %p42
    %p44 = scmp.ne.s32.totalorder %s30, %s31
    %p45 = scmp.eq.s32.totalorder %s23, 1
    %p46 = por %p44, %p45
    %p48 = scmp.ne.s32.totalorder %s31, %s47
    %p49 = scmp.eq.s32.totalorder %s23, 0
    %p50 = por %p48, %p49
    %s52 = sadd.s32 %s51, 1
    %p55 = scmp.eq.s32.totalorder %s17, 1
    %p56 = scmp.ne.s32.totalorder %s51, %s53
    %p57 = scmp.eq.s32.totalorder %s17, 0
    %p58 = por %p56, %p57
    %p59 = scmp.ne.s32.totalorder %s51, %s53
    %p60 = scmp.eq.s32.totalorder %s22, 1
    %p61 = por %p59, %p60
    %p62 = scmp.ne.s32.totalorder %s53, %s54
    %p63 = scmp.eq.s32.totalorder %s22, 0
    %p64 = por %p62, %p63
    %p65 = scmp.ne.s32.totalorder %s53, %s54
    %p66 = scmp.eq.s32.totalorder %s23, 1
    %p67 = por %p65, %p66
    %p69 = scmp.ne.s32.totalorder %s54, %s68
    %p70 = scmp.eq.s32.totalorder %s23, 0
    %p71 = por %p69, %p70
    %s73 = sadd.s32 %s72, 1
    %p76 = scmp.eq.s32.totalorder %s17, 1
    %p77 = scmp.ne.s32.totalorder %s72, %s74
    %p78 = scmp.eq.s32.totalorder %s17, 0
    %p79 = por %p77, %p78
    %p80 = scmp.ne.s32.totalorder %s72, %s74
    %p81 = scmp.eq.s32.totalorder %s22, 1
    %p82 = por %p80, %p81
    %p83 = scmp.ne.s32.totalorder %s74, %s75
    %p84 = scmp.eq.s32.totalorder %s22, 0
    %p85 = por %p83, %p84
    %p86 = scmp.ne.s32.totalorder %s74, %s75
    %p87 = scmp.eq.s32.totalorder %s23, 1
    %p88 = por %p86, %p87
    %p90 = scmp.ne.s32.totalorder %s75, %s89
    %p91 = scmp.eq.s32.totalorder %s23, 0
    %p92 = por %p90, %p91
    %s94 = sadd.s32 %s93, 1
    %p97 = scmp.eq.s32.totalorder %s17, 1
    %p98 = scmp.ne.s32.totalorder %s93, %s95
    %p99 = scmp.eq.s32.totalorder %s17, 0
    %p100 = por %p98, %p99
    %p101 = scmp.ne.s32.totalorder %s93, %s95
    %p102 = scmp.eq.s32.totalorder %s22, 1
    %p103 = por %p101, %p102
    %p104 = scmp.ne.s32.totalorder %s95, %s96
    %p105 = scmp.eq.s32.totalorder %s22, 0
    %p106 = por %p104, %p105
    %p107 = scmp.ne.s32.totalorder %s95, %s96
    %p108 = scmp.eq.s32.totalorder %s23, 1
    %p109 = por %p107, %p108
    %p111 = scmp.ne.s32.totalorder %s96, %s110
    %p112 = scmp.eq.s32.totalorder %s23, 0
    %p113 = por %p111, %p112
    %s115 = sadd.s32 %s114, 1
    %p118 = scmp.eq.s32.totalorder %s17, 1
    %p119 = scmp.ne.s32.totalorder %s114, %s116
    %p120 = scmp.eq.s32.totalorder %s17, 0
    %p121 = por %p119, %p120
    %p122 = scmp.ne.s32.totalorder %s114, %s116
    %p123 = scmp.eq.s32.totalorder %s22, 1
    %p124 = por %p122, %p123
    %p125 = scmp.ne.s32.totalorder %s116, %s117
    %p126 = scmp.eq.s32.totalorder %s22, 0
    %p127 = por %p125, %p126
    %p128 = scmp.ne.s32.totalorder %s116, %s117
    %p129 = scmp.eq.s32.totalorder %s23, 1
    %p130 = por %p128, %p129
    %p132 = scmp.ne.s32.totalorder %s117, %s131
    %p133 = scmp.eq.s32.totalorder %s23, 0
    %p134 = por %p132, %p133
    %s136 = sadd.s32 %s135, 1
    %p139 = scmp.eq.s32.totalorder %s17, 1
    %p140 = scmp.ne.s32.totalorder %s135, %s137
    %p141 = scmp.eq.s32.totalorder %s17, 0
    %p142 = por %p140, %p141
    %p143 = scmp.ne.s32.totalorder %s135, %s137
    %p144 = scmp.eq.s32.totalorder %s22, 1
    %p145 = por %p143, %p144
    %p146 = scmp.ne.s32.totalorder %s137, %s138
    %p147 = scmp.eq.s32.totalorder %s22, 0
    %p148 = por %p146, %p147
    %p149 = scmp.ne.s32.totalorder %s137, %s138
    %p150 = scmp.eq.s32.totalorder %s23, 1
    %p151 = por %p149, %p150
    %p153 = scmp.ne.s32.totalorder %s138, %s152
    %p154 = scmp.eq.s32.totalorder %s23, 0
    %p155 = por %p153, %p154
    %s157 = sadd.s32 %s156, 1
    %p160 = scmp.eq.s32.totalorder %s17, 1
    %p161 = scmp.ne.s32.totalorder %s156, %s158
    %p162 = scmp.eq.s32.totalorder %s17, 0
    %p163 = por %p161, %p162
    %p164 = scmp.ne.s32.totalorder %s156, %s158
    %p165 = scmp.eq.s32.totalorder %s22, 1
    %p166 = por %p164, %p165
    %p167 = scmp.ne.s32.totalorder %s158, %s159
    %p168 = scmp.eq.s32.totalorder %s22, 0
    %p169 = por %p167, %p168
    %p170 = scmp.ne.s32.totalorder %s158, %s159
    %p171 = scmp.eq.s32.totalorder %s23, 1
    %p172 = por %p170, %p171
    %p174 = scmp.ne.s32.totalorder %s159, %s173
    %p175 = scmp.eq.s32.totalorder %s23, 0
    %p176 = por %p174, %p175
    %s178 = sadd.s32 %s177, 1
    %p181 = scmp.eq.s32.totalorder %s17, 1
    %p182 = scmp.ne.s32.totalorder %s177, %s179
    %p183 = scmp.eq.s32.totalorder %s17, 0
    %p184 = por %p182, %p183
    %p185 = scmp.ne.s32.totalorder %s177, %s179
    %p186 = scmp.eq.s32.totalorder %s22, 1
    %p187 = por %p185, %p186
    %p188 = scmp.ne.s32.totalorder %s179, %s180
    %p189 = scmp.eq.s32.totalorder %s22, 0
    %p190 = por %p188, %p189
    %p191 = scmp.ne.s32.totalorder %s179, %s180
    %p192 = scmp.eq.s32.totalorder %s23, 1
    %p193 = por %p191, %p192
    %p195 = scmp.ne.s32.totalorder %s180, %s194
    %p196 = scmp.eq.s32.totalorder %s23, 0
    %p197 = por %p195, %p196
    %s199 = sadd.s32 %s198, 1
    %p202 = scmp.eq.s32.totalorder %s17, 1
    %p203 = scmp.ne.s32.totalorder %s198, %s200
    %p204 = scmp.eq.s32.totalorder %s17, 0
    %p205 = por %p203, %p204
    %p206 = scmp.ne.s32.totalorder %s198, %s200
    %p207 = scmp.eq.s32.totalorder %s22, 1
    %p208 = por %p206, %p207
    %p209 = scmp.ne.s32.totalorder %s200, %s201
    %p210 = scmp.eq.s32.totalorder %s22, 0
    %p211 = por %p209, %p210
    %p212 = scmp.ne.s32.totalorder %s200, %s201
    %p213 = scmp.eq.s32.totalorder %s23, 1
    %p214 = por %p212, %p213
    %p216 = scmp.ne.s32.totalorder %s201, %s215
    %p217 = scmp.eq.s32.totalorder %s23, 0
    %p218 = por %p216, %p217
    %s220 = sadd.s32 %s219, 1
    %p223 = scmp.eq.s32.totalorder %s17, 1
    %p224 = scmp.ne.s32.totalorder %s219, %s221
    %p225 = scmp.eq.s32.totalorder %s17, 0
    %p226 = por %p224, %p225
    %p227 = scmp.ne.s32.totalorder %s219, %s221
    %p228 = scmp.eq.s32.totalorder %s22, 1
    %p229 = por %p227, %p228
    %p230 = scmp.ne.s32.totalorder %s221, %s222
    %p231 = scmp.eq.s32.totalorder %s22, 0
    %p232 = por %p230, %p231
    %p233 = scmp.ne.s32.totalorder %s221, %s222
    %p234 = scmp.eq.s32.totalorder %s23, 1
    %p235 = por %p233, %p234
    %p237 = scmp.ne.s32.totalorder %s222, %s236
    %p238 = scmp.eq.s32.totalorder %s23, 0
    %p239 = por %p237, %p238
    %s241 = sadd.s32 %s240, 1
    %p244 = scmp.eq.s32.totalorder %s17, 1
    %p245 = scmp.ne.s32.totalorder %s240, %s242
    %p246 = scmp.eq.s32.totalorder %s17, 0
    %p247 = por %p245, %p246
    %p248 = scmp.ne.s32.totalorder %s240, %s242
    %p249 = scmp.eq.s32.totalorder %s22, 1
    %p250 = por %p248, %p249
    %p251 = scmp.ne.s32.totalorder %s242, %s243
    %p252 = scmp.eq.s32.totalorder %s22, 0
    %p253 = por %p251, %p252
    %p254 = scmp.ne.s32.totalorder %s242, %s243
    %p255 = scmp.eq.s32.totalorder %s23, 1
    %p256 = por %p254, %p255
    %p258 = scmp.ne.s32.totalorder %s243, %s257
    %p259 = scmp.eq.s32.totalorder %s23, 0
    %p260 = por %p258, %p259
    %s261 = ssub.s32 %s17, %s24
    %p262 = scmp.eq.s32.totalorder %s261, 0
    %s264 = sadd.s32 %s263, 1
    %s265 = scalar_select %p262, %s263, %s264
    %p268 = pneg %p262
    %p269 = scmp.eq.s32.totalorder %s17, 1
    %p270 = por %p268, %p269
    %p271 = scmp.ne.s32.totalorder %s263, %s266
    %p272 = scmp.eq.s32.totalorder %s17, 0
    %p273 = por %p271, %p272
    %p274 = scmp.ne.s32.totalorder %s263, %s266
    %p275 = scmp.eq.s32.totalorder %s22, 1
    %p276 = por %p274, %p275
    %p277 = scmp.ne.s32.totalorder %s266, %s267
    %p278 = scmp.eq.s32.totalorder %s22, 0
    %p279 = por %p277, %p278
    %p280 = scmp.ne.s32.totalorder %s266, %s267
    %p281 = scmp.eq.s32.totalorder %s23, 1
    %p282 = por %p280, %p281
    %p284 = scmp.ne.s32.totalorder %s267, %s283
    %p285 = scmp.eq.s32.totalorder %s23, 0
    %p286 = por %p284, %p285
    %p287 = scmp.le.s32.totalorder 1, %s17
    %p288 = scmp.lt.s32.totalorder %s17, 3
    %p289 = pnand %p287, %p288
    %p290 = pneg %p289
    // Predicated region
    $region9: #{inverted_residual_forward.1} parent=5 // pred_check
      _
    $region10: #{inverted_residual_forward.1} parent=5 // pred_check_branch
      %292 = sbr.rel (%p289) target = $region12
    $region11: #{inverted_residual_forward.1} parent=5 // pred_region
      %s293 = ssub.s32 %s17, 1
      // Predicated region
      $region13: #{inverted_residual_forward.1} parent=11 // pred_check
        %p294 = pneg %p64
      $region14: #{inverted_residual_forward.1} parent=11 // pred_check_branch
        %296 = sbr.rel (%p294) target = $region16
      $region15: #{inverted_residual_forward.1} parent=11 // pred_region
        _
      $region16: #{inverted_residual_forward.1} parent=11 // pred_fallthru
        _
      // Predicated region
      $region17: #{inverted_residual_forward.1} parent=11 // pred_check
        %p297 = pneg %p85
      $region18: #{inverted_residual_forward.1} parent=11 // pred_check_branch
        %299 = sbr.rel (%p297) target = $region20
      $region19: #{inverted_residual_forward.1} parent=11 // pred_region
        _
      $region20: #{inverted_residual_forward.1} parent=11 // pred_fallthru
        _
      // Predicated region
      $region21: #{inverted_residual_forward.1} parent=11 // pred_check
        %p300 = pneg %p106
      $region22: #{inverted_residual_forward.1} parent=11 // pred_check_branch
        %302 = sbr.rel (%p300) target = $region24
      $region23: #{inverted_residual_forward.1} parent=11 // pred_region
        _
      $region24: #{inverted_residual_forward.1} parent=11 // pred_fallthru
        _
      // Predicated region
      $region25: #{inverted_residual_forward.1} parent=11 // pred_check
        %p303 = pneg %p127
      $region26: #{inverted_residual_forward.1} parent=11 // pred_check_branch
        %305 = sbr.rel (%p303) target = $region28
      $region27: #{inverted_residual_forward.1} parent=11 // pred_region
        _
      $region28: #{inverted_residual_forward.1} parent=11 // pred_fallthru
        _
      // Predicated region
      $region29: #{inverted_residual_forward.1} parent=11 // pred_check
        %p306 = pneg %p148
      $region30: #{inverted_residual_forward.1} parent=11 // pred_check_branch
        %308 = sbr.rel (%p306) target = $region32
      $region31: #{inverted_residual_forward.1} parent=11 // pred_region
        _
      $region32: #{inverted_residual_forward.1} parent=11 // pred_fallthru
        _
      // Predicated region
      $region33: #{inverted_residual_forward.1} parent=11 // pred_check
        %p309 = pneg %p169
      $region34: #{inverted_residual_forward.1} parent=11 // pred_check_branch
        %311 = sbr.rel (%p309) target = $region36
      $region35: #{inverted_residual_forward.1} parent=11 // pred_region
        _
      $region36: #{inverted_residual_forward.1} parent=11 // pred_fallthru
        _
      // Predicated region
      $region37: #{inverted_residual_forward.1} parent=11 // pred_check
        %p312 = pneg %p190
      $region38: #{inverted_residual_forward.1} parent=11 // pred_check_branch
        %314 = sbr.rel (%p312) target = $region40
      $region39: #{inverted_residual_forward.1} parent=11 // pred_region
        _
      $region40: #{inverted_residual_forward.1} parent=11 // pred_fallthru
        _
      // Predicated region
      $region41: #{inverted_residual_forward.1} parent=11 // pred_check
        %p315 = pneg %p211
      $region42: #{inverted_residual_forward.1} parent=11 // pred_check_branch
        %317 = sbr.rel (%p315) target = $region44
      $region43: #{inverted_residual_forward.1} parent=11 // pred_region
        _
      $region44: #{inverted_residual_forward.1} parent=11 // pred_fallthru
        _
      // Predicated region
      $region45: #{inverted_residual_forward.1} parent=11 // pred_check
        %p318 = pneg %p232
      $region46: #{inverted_residual_forward.1} parent=11 // pred_check_branch
        %320 = sbr.rel (%p318) target = $region48
      $region47: #{inverted_residual_forward.1} parent=11 // pred_region
        _
      $region48: #{inverted_residual_forward.1} parent=11 // pred_fallthru
        _
      // Predicated region
      $region49: #{inverted_residual_forward.1} parent=11 // pred_check
        %p321 = pneg %p253
      $region50: #{inverted_residual_forward.1} parent=11 // pred_check_branch
        %323 = sbr.rel (%p321) target = $region52
      $region51: #{inverted_residual_forward.1} parent=11 // pred_region
        _
      $region52: #{inverted_residual_forward.1} parent=11 // pred_fallthru
        _
    $region12: #{inverted_residual_forward.1} parent=5 // pred_fallthru
      _
    %p324 = scmp.lt.s32.totalorder %s17, 2
    // Predicated region
    $region53: #{inverted_residual_forward.1} parent=5 // pred_check
      %p325 = pneg %p324
    $region54: #{inverted_residual_forward.1} parent=5 // pred_check_branch
      %327 = sbr.rel (%p325) target = $region56
    $region55: #{inverted_residual_forward.1} parent=5 // pred_region
      // Predicated region
      $region57: #{inverted_residual_forward.1} parent=55 // pred_check
        %p328 = pneg %p37
      $region58: #{inverted_residual_forward.1} parent=55 // pred_check_branch
        %330 = sbr.rel (%p328) target = $region60
      $region59: #{inverted_residual_forward.1} parent=55 // pred_region
        %p331 = scmp.lt.s32.totalorder %s17, 1
        %s332 = scalar_select %p331, %s17, 1
        %s333 = smul.addr %s332, 2
        %s334 = smul.addr %s333, 8
        %s335 = scalar_lea.vmem %s0, %s334
      $region60: #{inverted_residual_forward.1} parent=55 // pred_fallthru
        _
    $region56: #{inverted_residual_forward.1} parent=5 // pred_fallthru
      _
    %p336 = scmp.le.s32.totalorder 1, %s17
    %p337 = scmp.lt.s32.totalorder %s17, 3
    %p338 = pnand %p336, %p337
    %p339 = pneg %p338
    // Predicated region
    $region61: #{inverted_residual_forward.1} parent=5 // pred_check
      _
    $region62: #{inverted_residual_forward.1} parent=5 // pred_check_branch
      %341 = sbr.rel (%p338) target = $region64
    $region63: #{inverted_residual_forward.1} parent=5 // pred_region
      %s342 = ssub.s32 %s17, 1
      %p343 = scmp.lt.s32.totalorder %s22, 1
      %s344 = scalar_select %p343, %s22, 1
      %s345 = smul.addr %s344, 2
      %s346 = smul.addr %s345, 8
      %s347 = scalar_lea.vmem %s0, %s346
      %p348 = pneg %p43
      %p349 = pneg %p40
      %p350 = pneg %p64
      %p351 = pneg %p61
      %p352 = pneg %p85
      %p353 = pneg %p82
      %p354 = pneg %p106
      %p355 = pneg %p103
      %p356 = pneg %p127
      %p357 = pneg %p124
      %p358 = pneg %p148
      %p359 = pneg %p145
      %p360 = pneg %p169
      %p361 = pneg %p166
      %p362 = pneg %p190
      %p363 = pneg %p187
      %p364 = pneg %p211
      %p365 = pneg %p208
      %p366 = pneg %p232
      %p367 = pneg %p229
      %p368 = pneg %p253
      %p369 = pneg %p250
      %p370 = pneg %p279
      %p371 = pneg %p276
      %p372 = scmp.lt.s32.totalorder %s22, 1
      %s373 = scalar_select %p372, %s22, 1
      %s374 = smul.addr %s373, 2
      %s375 = smul.addr %s374, 8
      %s376 = scalar_lea.vmem %s11, %s375
      %p377 = scmp.lt.s32.totalorder %s22, 1
      %s378 = scalar_select %p377, %s22, 1
      %s379 = smul.addr %s378, 2
      %s380 = smul.addr %s379, 8
      %s381 = scalar_lea.vmem %s0, %s380
      %p382 = scmp.lt.s32.totalorder %s22, 1
      %s383 = scalar_select %p382, %s22, 1
      %s384 = smul.addr %s383, 2
      %s385 = smul.addr %s384, 8
      %s386 = scalar_lea.vmem %s11, %s385
      %v387 = vld [vmem:[%s381] sm:$0xff]
      %v388 = vld [vmem:[%s381 + $0x8] sm:$0xff]
      %389 = vxpose.xlu0.b32.start [1/16] %v387, 128
      %390 = vxpose.xlu0.b32.cont [2/16] 0.0, 128
      %391 = vxpose.xlu0.b32.cont [3/16] 0.0, 128
      %392 = vxpose.xlu0.b32.cont [4/16] 0.0, 128
      %393 = vxpose.xlu0.b32.cont [5/16] 0.0, 128
      %394 = vxpose.xlu0.b32.cont [6/16] 0.0, 128
      %395 = vxpose.xlu0.b32.cont [7/16] 0.0, 128
      %396 = vxpose.xlu0.b32.cont [8/16] 0.0, 128
      %397 = vxpose.xlu0.b32.cont [9/16] 0.0, 128
      %398 = vxpose.xlu0.b32.cont [10/16] 0.0, 128
      %399 = vxpose.xlu0.b32.cont [11/16] 0.0, 128
      %400 = vxpose.xlu0.b32.cont [12/16] 0.0, 128
      %401 = vxpose.xlu0.b32.cont [13/16] 0.0, 128
      %402 = vxpose.xlu0.b32.cont [14/16] 0.0, 128
      %403 = vxpose.xlu0.b32.cont [15/16] 0.0, 128
      %404 = vxpose.xlu0.b32.end [16/16] 0.0, 128
      %v405 = vpop.trf.xlu0
      %v406 = vpop.trf.xlu0
      %v407 = vpop.trf.xlu0
      %v408 = vpop.trf.xlu0
      %v409 = vpop.trf.xlu0
      %v410 = vpop.trf.xlu0
      %v411 = vpop.trf.xlu0
      %v412 = vpop.trf.xlu0
      %v413 = vpop.trf.xlu0
      %v414 = vpop.trf.xlu0
      %v415 = vpop.trf.xlu0
      %v416 = vpop.trf.xlu0
      %v417 = vpop.trf.xlu0
      %v418 = vpop.trf.xlu0
      %v419 = vpop.trf.xlu0
      %v420 = vpop.trf.xlu0
      %421 = vxpose.xlu0.b32.start [1/16] %v388, 128
      %422 = vxpose.xlu0.b32.cont [2/16] 0.0, 128
      %423 = vxpose.xlu0.b32.cont [3/16] 0.0, 128
      %424 = vxpose.xlu0.b32.cont [4/16] 0.0, 128
      %425 = vxpose.xlu0.b32.cont [5/16] 0.0, 128
      %426 = vxpose.xlu0.b32.cont [6/16] 0.0, 128
      %427 = vxpose.xlu0.b32.cont [7/16] 0.0, 128
      %428 = vxpose.xlu0.b32.cont [8/16] 0.0, 128
      %429 = vxpose.xlu0.b32.cont [9/16] 0.0, 128
      %430 = vxpose.xlu0.b32.cont [10/16] 0.0, 128
      %431 = vxpose.xlu0.b32.cont [11/16] 0.0, 128
      %432 = vxpose.xlu0.b32.cont [12/16] 0.0, 128
      %433 = vxpose.xlu0.b32.cont [13/16] 0.0, 128
      %434 = vxpose.xlu0.b32.cont [14/16] 0.0, 128
      %435 = vxpose.xlu0.b32.cont [15/16] 0.0, 128
      %436 = vxpose.xlu0.b32.end [16/16] 0.0, 128
      %v437 = vpop.trf.xlu0
      %v438 = vpop.trf.xlu0
      %v439 = vpop.trf.xlu0
      %v440 = vpop.trf.xlu0
      %v441 = vpop.trf.xlu0
      %v442 = vpop.trf.xlu0
      %v443 = vpop.trf.xlu0
      %v444 = vpop.trf.xlu0
      %v445 = vpop.trf.xlu0
      %v446 = vpop.trf.xlu0
      %v447 = vpop.trf.xlu0
      %v448 = vpop.trf.xlu0
      %v449 = vpop.trf.xlu0
      %v450 = vpop.trf.xlu0
      %v451 = vpop.trf.xlu0
      %v452 = vpop.trf.xlu0
      %vm453 = vcmask 64512
      %454 = vst.msk [vmem:[#allocation2] sm:$0xff] %vm453, 0.0
      %455 = vst.msk [vmem:[#allocation2 + $0x8] sm:$0xff] %vm453, 0.0
      %vm456 = vcmask 58368
      %457 = vst.msk [vmem:[#allocation2 + $0x10] sm:$0x3] %vm456, 0.0
      %458 = vst.msk [vmem:[#allocation2 + $0x18] sm:$0xff] %vm453, 0.0
      %459 = vst.msk [vmem:[#allocation2 + $0x20] sm:$0xff] %vm453, 0.0
      %460 = vst.msk [vmem:[#allocation2 + $0x28] sm:$0x3] %vm456, 0.0
      %461 = vst.msk [vmem:[#allocation2 + $0x30] sm:$0xff] %vm453, 0.0
      %462 = vst.msk [vmem:[#allocation2 + $0x38] sm:$0xff] %vm453, 0.0
      %463 = vst.msk [vmem:[#allocation2 + $0x40] sm:$0x3] %vm456, 0.0
      %464 = vst.msk [vmem:[#allocation2 + $0x48] sm:$0xff] %vm453, 0.0
      %465 = vst.msk [vmem:[#allocation2 + $0x50] sm:$0xff] %vm453, 0.0
      %466 = vst.msk [vmem:[#allocation2 + $0x58] sm:$0x3] %vm456, 0.0
      %467 = vst.msk [vmem:[#allocation2 + $0x60] sm:$0xff] %vm453, 0.0
      %468 = vst.msk [vmem:[#allocation2 + $0x68] sm:$0xff] %vm453, 0.0
      %469 = vst.msk [vmem:[#allocation2 + $0x70] sm:$0x3] %vm456, 0.0
      %470 = vst.msk [vmem:[#allocation2 + $0x78] sm:$0xff] %vm453, 0.0
      %471 = vst.msk [vmem:[#allocation2 + $0x80] sm:$0xff] %vm453, 0.0
      %472 = vst.msk [vmem:[#allocation2 + $0x88] sm:$0x3] %vm456, 0.0
      %473 = vst.msk [vmem:[#allocation2 + $0x90] sm:$0xff] %vm453, 0.0
      %474 = vst.msk [vmem:[#allocation2 + $0x98] sm:$0xff] %vm453, 0.0
      %475 = vst.msk [vmem:[#allocation2 + $0xa0] sm:$0x3] %vm456, 0.0
      %476 = vst.msk [vmem:[#allocation2 + $0xa8] sm:$0xff] %vm453, 0.0
      %477 = vst.msk [vmem:[#allocation2 + $0xb0] sm:$0xff] %vm453, 0.0
      %478 = vst.msk [vmem:[#allocation2 + $0xb8] sm:$0x3] %vm456, 0.0
      %479 = vst.msk [vmem:[#allocation2 + $0xc0] sm:$0xff] %vm453, 0.0
      %480 = vst.msk [vmem:[#allocation2 + $0xc8] sm:$0xff] %vm453, 0.0
      %481 = vst.msk [vmem:[#allocation2 + $0xd0] sm:$0x3] %vm456, 0.0
      %482 = vst.msk [vmem:[#allocation2 + $0xd8] sm:$0xff] %vm453, 0.0
      %483 = vst.msk [vmem:[#allocation2 + $0xe0] sm:$0xff] %vm453, 0.0
      %484 = vst.msk [vmem:[#allocation2 + $0xe8] sm:$0x3] %vm456, 0.0
      %485 = vst.msk [vmem:[#allocation2 + $0xf0] sm:$0xff] %vm453, 0.0
      %486 = vst.msk [vmem:[#allocation2 + $0xf8] sm:$0xff] %vm453, 0.0
      %487 = vst.msk [vmem:[#allocation2 + $0x100] sm:$0x3] %vm456, 0.0
      %488 = vst.msk [vmem:[#allocation2 + $0x108] sm:$0xff] %vm453, 0.0
      %489 = vst.msk [vmem:[#allocation2 + $0x110] sm:$0xff] %vm453, 0.0
      %490 = vst.msk [vmem:[#allocation2 + $0x118] sm:$0x3] %vm456, 0.0
      %491 = vst.msk [vmem:[#allocation2 + $0x120] sm:$0xff] %vm453, 0.0
      %492 = vst.msk [vmem:[#allocation2 + $0x128] sm:$0xff] %vm453, 0.0
      %493 = vst.msk [vmem:[#allocation2 + $0x130] sm:$0x3] %vm456, 0.0
      %494 = vst.msk [vmem:[#allocation2 + $0x138] sm:$0xff] %vm453, 0.0
      %495 = vst.msk [vmem:[#allocation2 + $0x140] sm:$0xff] %vm453, 0.0
      %496 = vst.msk [vmem:[#allocation2 + $0x148] sm:$0x3] %vm456, 0.0
      %497 = vst.msk [vmem:[#allocation2 + $0x150] sm:$0xff] %vm453, 0.0
      %498 = vst.msk [vmem:[#allocation2 + $0x158] sm:$0xff] %vm453, 0.0
      %499 = vst.msk [vmem:[#allocation2 + $0x160] sm:$0x3] %vm456, 0.0
      %500 = vst.msk [vmem:[#allocation2 + $0x168] sm:$0xff] %vm453, 0.0
      %501 = vst.msk [vmem:[#allocation2 + $0x170] sm:$0xff] %vm453, 0.0
      %502 = vst.msk [vmem:[#allocation2 + $0x178] sm:$0x3] %vm456, 0.0
      %503 = vst.msk [vmem:[#allocation2 + $0x180] sm:$0xff] %vm453, 0.0
      %504 = vst.msk [vmem:[#allocation2 + $0x188] sm:$0xff] %vm453, 0.0
      %505 = vst.msk [vmem:[#allocation2 + $0x190] sm:$0x3] %vm456, 0.0
      %506 = vst.msk [vmem:[#allocation2 + $0x198] sm:$0xff] %vm453, 0.0
      %507 = vst.msk [vmem:[#allocation2 + $0x1a0] sm:$0xff] %vm453, 0.0
      %508 = vst.msk [vmem:[#allocation2 + $0x1a8] sm:$0x3] %vm456, 0.0
      %s509 = scalar_lea.vmem [#allocation2], 24
      %510 = vst.msk [vmem:[%s509 + $0x1] sm:$0xff] %vm453, %v405
      %511 = vst.msk [vmem:[%s509 + $0x9] sm:$0xff] %vm453, %v406
      %512 = vst.msk [vmem:[%s509 + $0x19] sm:$0xff] %vm453, %v407
      %513 = vst.msk [vmem:[%s509 + $0x21] sm:$0xff] %vm453, %v408
      %514 = vst.msk [vmem:[%s509 + $0x31] sm:$0xff] %vm453, %v409
      %515 = vst.msk [vmem:[%s509 + $0x39] sm:$0xff] %vm453, %v410
      %516 = vst.msk [vmem:[%s509 + $0x49] sm:$0xff] %vm453, %v411
      %517 = vst.msk [vmem:[%s509 + $0x51] sm:$0xff] %vm453, %v412
      %518 = vst.msk [vmem:[%s509 + $0x61] sm:$0xff] %vm453, %v413
      %519 = vst.msk [vmem:[%s509 + $0x69] sm:$0xff] %vm453, %v414
      %520 = vst.msk [vmem:[%s509 + $0x79] sm:$0xff] %vm453, %v415
      %521 = vst.msk [vmem:[%s509 + $0x81] sm:$0xff] %vm453, %v416
      %522 = vst.msk [vmem:[%s509 + $0x91] sm:$0xff] %vm453, %v417
      %523 = vst.msk [vmem:[%s509 + $0x99] sm:$0xff] %vm453, %v418
      %524 = vst.msk [vmem:[%s509 + $0xa9] sm:$0xff] %vm453, %v419
      %525 = vst.msk [vmem:[%s509 + $0xb1] sm:$0xff] %vm453, %v420
      %526 = vst.msk [vmem:[%s509 + $0xc1] sm:$0xff] %vm453, %v437
      %527 = vst.msk [vmem:[%s509 + $0xc9] sm:$0xff] %vm453, %v438
      %528 = vst.msk [vmem:[%s509 + $0xd9] sm:$0xff] %vm453, %v439
      %529 = vst.msk [vmem:[%s509 + $0xe1] sm:$0xff] %vm453, %v440
      %530 = vst.msk [vmem:[%s509 + $0xf1] sm:$0xff] %vm453, %v441
      %531 = vst.msk [vmem:[%s509 + $0xf9] sm:$0xff] %vm453, %v442
      %532 = vst.msk [vmem:[%s509 + $0x109] sm:$0xff] %vm453, %v443
      %533 = vst.msk [vmem:[%s509 + $0x111] sm:$0xff] %vm453, %v444
      %534 = vst.msk [vmem:[%s509 + $0x121] sm:$0xff] %vm453, %v445
      %535 = vst.msk [vmem:[%s509 + $0x129] sm:$0xff] %vm453, %v446
      %536 = vst.msk [vmem:[%s509 + $0x139] sm:$0xff] %vm453, %v447
      %537 = vst.msk [vmem:[%s509 + $0x141] sm:$0xff] %vm453, %v448
      %538 = vst.msk [vmem:[%s509 + $0x151] sm:$0xff] %vm453, %v449
      %539 = vst.msk [vmem:[%s509 + $0x159] sm:$0xff] %vm453, %v450
      %540 = vst.msk [vmem:[%s509 + $0x169] sm:$0xff] %vm453, %v451
      %541 = vst.msk [vmem:[%s509 + $0x171] sm:$0xff] %vm453, %v452
      %v542 = vld [vmem:[#allocation2] sm:$0xff]
      %v543 = vld [vmem:[#allocation2 + $0x8] sm:$0xff]
      %v544 = vld [vmem:[#allocation2 + $0x18] sm:$0xff]
      %v545 = vld [vmem:[#allocation2 + $0x20] sm:$0xff]
      %v546 = vld [vmem:[#allocation2 + $0x30] sm:$0xff]
      %v547 = vld [vmem:[#allocation2 + $0x38] sm:$0xff]
      %v548 = vld [vmem:[#allocation2 + $0x48] sm:$0xff]
      %v549 = vld [vmem:[#allocation2 + $0x50] sm:$0xff]
      %v550 = vld [vmem:[#allocation2 + $0x60] sm:$0xff]
      %v551 = vld [vmem:[#allocation2 + $0x68] sm:$0xff]
      %v552 = vld [vmem:[#allocation2 + $0x78] sm:$0xff]
      %v553 = vld [vmem:[#allocation2 + $0x80] sm:$0xff]
      %v554 = vld [vmem:[#allocation2 + $0x90] sm:$0xff]
      %v555 = vld [vmem:[#allocation2 + $0x98] sm:$0xff]
      %v556 = vld [vmem:[#allocation2 + $0xa8] sm:$0xff]
      %v557 = vld [vmem:[#allocation2 + $0xb0] sm:$0xff]
      %v558 = vld [vmem:[#allocation2 + $0xc0] sm:$0xff]
      %v559 = vld [vmem:[#allocation2 + $0xc8] sm:$0xff]
      %v560 = vld [vmem:[#allocation2 + $0xd8] sm:$0xff]
      %v561 = vld [vmem:[#allocation2 + $0xe0] sm:$0xff]
      %v562 = vld [vmem:[#allocation2 + $0xf0] sm:$0xff]
      %v563 = vld [vmem:[#allocation2 + $0xf8] sm:$0xff]
      %v564 = vld [vmem:[#allocation2 + $0x108] sm:$0xff]
      %v565 = vld [vmem:[#allocation2 + $0x110] sm:$0xff]
      %v566 = vld [vmem:[#allocation2 + $0x120] sm:$0xff]
      %v567 = vld [vmem:[#allocation2 + $0x128] sm:$0xff]
      %v568 = vld [vmem:[#allocation2 + $0x138] sm:$0xff]
      %v569 = vld [vmem:[#allocation2 + $0x140] sm:$0xff]
      %v570 = vld [vmem:[#allocation2 + $0x150] sm:$0xff]
      %v571 = vld [vmem:[#allocation2 + $0x158] sm:$0xff]
      %v572 = vld [vmem:[#allocation2 + $0x168] sm:$0xff]
      %v573 = vld [vmem:[#allocation2 + $0x170] sm:$0xff]
      %574 = vst.msk [vmem:[#allocation3] sm:$0xff] %vm453, %v542
      %575 = vst.msk [vmem:[#allocation3 + $0x8] sm:$0xff] %vm453, %v543
      %576 = vst.msk [vmem:[#allocation3 + $0x10] sm:$0xff] %vm453, %v544
      %577 = vst.msk [vmem:[#allocation3 + $0x18] sm:$0xff] %vm453, %v545
      %578 = vst.msk [vmem:[#allocation3 + $0x20] sm:$0xff] %vm453, %v546
      %579 = vst.msk [vmem:[#allocation3 + $0x28] sm:$0xff] %vm453, %v547
      %580 = vst.msk [vmem:[#allocation3 + $0x30] sm:$0xff] %vm453, %v548
      %581 = vst.msk [vmem:[#allocation3 + $0x38] sm:$0xff] %vm453, %v549
      %582 = vst.msk [vmem:[#allocation3 + $0x40] sm:$0xff] %vm453, %v550
      %583 = vst.msk [vmem:[#allocation3 + $0x48] sm:$0xff] %vm453, %v551
      %584 = vst.msk [vmem:[#allocation3 + $0x50] sm:$0xff] %vm453, %v552
      %585 = vst.msk [vmem:[#allocation3 + $0x58] sm:$0xff] %vm453, %v553
      %586 = vst.msk [vmem:[#allocation3 + $0x60] sm:$0xff] %vm453, %v554
      %587 = vst.msk [vmem:[#allocation3 + $0x68] sm:$0xff] %vm453, %v555
      %588 = vst.msk [vmem:[#allocation3 + $0x70] sm:$0xff] %vm453, %v556
      %589 = vst.msk [vmem:[#allocation3 + $0x78] sm:$0xff] %vm453, %v557
      %590 = vst.msk [vmem:[#allocation3 + $0x80] sm:$0xff] %vm453, %v558
      %591 = vst.msk [vmem:[#allocation3 + $0x88] sm:$0xff] %vm453, %v559
      %592 = vst.msk [vmem:[#allocation3 + $0x90] sm:$0xff] %vm453, %v560
      %593 = vst.msk [vmem:[#allocation3 + $0x98] sm:$0xff] %vm453, %v561
      %594 = vst.msk [vmem:[#allocation3 + $0xa0] sm:$0xff] %vm453, %v562
      %595 = vst.msk [vmem:[#allocation3 + $0xa8] sm:$0xff] %vm453, %v563
      %596 = vst.msk [vmem:[#allocation3 + $0xb0] sm:$0xff] %vm453, %v564
      %597 = vst.msk [vmem:[#allocation3 + $0xb8] sm:$0xff] %vm453, %v565
      %598 = vst.msk [vmem:[#allocation3 + $0xc0] sm:$0xff] %vm453, %v566
      %599 = vst.msk [vmem:[#allocation3 + $0xc8] sm:$0xff] %vm453, %v567
      %600 = vst.msk [vmem:[#allocation3 + $0xd0] sm:$0xff] %vm453, %v568
      %601 = vst.msk [vmem:[#allocation3 + $0xd8] sm:$0xff] %vm453, %v569
      %602 = vst.msk [vmem:[#allocation3 + $0xe0] sm:$0xff] %vm453, %v570
      %603 = vst.msk [vmem:[#allocation3 + $0xe8] sm:$0xff] %vm453, %v571
      %604 = vst.msk [vmem:[#allocation3 + $0xf0] sm:$0xff] %vm453, %v572
      %605 = vst.msk [vmem:[#allocation3 + $0xf8] sm:$0xff] %vm453, %v573
      %v606 = vld [vmem:[#allocation2 + $0x1] sm:$0xff]
      %v607 = vld [vmem:[#allocation2 + $0x9] sm:$0xff]
      %v608 = vld [vmem:[#allocation2 + $0x19] sm:$0xff]
      %v609 = vld [vmem:[#allocation2 + $0x21] sm:$0xff]
      %v610 = vld [vmem:[#allocation2 + $0x31] sm:$0xff]
      %v611 = vld [vmem:[#allocation2 + $0x39] sm:$0xff]
      %v612 = vld [vmem:[#allocation2 + $0x49] sm:$0xff]
      %v613 = vld [vmem:[#allocation2 + $0x51] sm:$0xff]
      %v614 = vld [vmem:[#allocation2 + $0x61] sm:$0xff]
      %v615 = vld [vmem:[#allocation2 + $0x69] sm:$0xff]
      %v616 = vld [vmem:[#allocation2 + $0x79] sm:$0xff]
      %v617 = vld [vmem:[#allocation2 + $0x81] sm:$0xff]
      %v618 = vld [vmem:[#allocation2 + $0x91] sm:$0xff]
      %v619 = vld [vmem:[#allocation2 + $0x99] sm:$0xff]
      %v620 = vld [vmem:[#allocation2 + $0xa9] sm:$0xff]
      %v621 = vld [vmem:[#allocation2 + $0xb1] sm:$0xff]
      %v622 = vld [vmem:[#allocation2 + $0xc1] sm:$0xff]
      %v623 = vld [vmem:[#allocation2 + $0xc9] sm:$0xff]
      %v624 = vld [vmem:[#allocation2 + $0xd9] sm:$0xff]
      %v625 = vld [vmem:[#allocation2 + $0xe1] sm:$0xff]
      %v626 = vld [vmem:[#allocation2 + $0xf1] sm:$0xff]
      %v627 = vld [vmem:[#allocation2 + $0xf9] sm:$0xff]
      %v628 = vld [vmem:[#allocation2 + $0x109] sm:$0xff]
      %v629 = vld [vmem:[#allocation2 + $0x111] sm:$0xff]
      %v630 = vld [vmem:[#allocation2 + $0x121] sm:$0xff]
      %v631 = vld [vmem:[#allocation2 + $0x129] sm:$0xff]
      %v632 = vld [vmem:[#allocation2 + $0x139] sm:$0xff]
      %v633 = vld [vmem:[#allocation2 + $0x141] sm:$0xff]
      %v634 = vld [vmem:[#allocation2 + $0x151] sm:$0xff]
      %v635 = vld [vmem:[#allocation2 + $0x159] sm:$0xff]
      %v636 = vld [vmem:[#allocation2 + $0x169] sm:$0xff]
      %v637 = vld [vmem:[#allocation2 + $0x171] sm:$0xff]
      %670 = vrot.lane.b32.xlu0 %v606, 8
      %v671 = vpop.permute.xlu0 %670
      %672 = vrot.lane.b32.xlu0 %v607, 8
      %v673 = vpop.permute.xlu0 %672
      %674 = vrot.lane.b32.xlu0 %v608, 8
      %v675 = vpop.permute.xlu0 %674
      %676 = vrot.lane.b32.xlu0 %v609, 8
      %v677 = vpop.permute.xlu0 %676
      %678 = vrot.lane.b32.xlu0 %v610, 8
      %v679 = vpop.permute.xlu0 %678
      %680 = vrot.lane.b32.xlu0 %v611, 8
      %v681 = vpop.permute.xlu0 %680
      %682 = vrot.lane.b32.xlu0 %v612, 8
      %v683 = vpop.permute.xlu0 %682
      %684 = vrot.lane.b32.xlu0 %v613, 8
      %v685 = vpop.permute.xlu0 %684
      %686 = vrot.lane.b32.xlu0 %v614, 8
      %v687 = vpop.permute.xlu0 %686
      %688 = vrot.lane.b32.xlu0 %v615, 8
      %v689 = vpop.permute.xlu0 %688
      %690 = vrot.lane.b32.xlu0 %v616, 8
      %v691 = vpop.permute.xlu0 %690
      %692 = vrot.lane.b32.xlu0 %v617, 8
      %v693 = vpop.permute.xlu0 %692
      %694 = vrot.lane.b32.xlu0 %v618, 8
      %v695 = vpop.permute.xlu0 %694
      %696 = vrot.lane.b32.xlu0 %v619, 8
      %v697 = vpop.permute.xlu0 %696
      %698 = vrot.lane.b32.xlu0 %v620, 8
      %v699 = vpop.permute.xlu0 %698
      %700 = vrot.lane.b32.xlu0 %v621, 8
      %v701 = vpop.permute.xlu0 %700
      %702 = vrot.lane.b32.xlu0 %v622, 8
      %v703 = vpop.permute.xlu0 %702
      %704 = vrot.lane.b32.xlu0 %v623, 8
      %v705 = vpop.permute.xlu0 %704
      %706 = vrot.lane.b32.xlu0 %v624, 8
      %v707 = vpop.permute.xlu0 %706
      %708 = vrot.lane.b32.xlu0 %v625, 8
      %v709 = vpop.permute.xlu0 %708
      %710 = vrot.lane.b32.xlu0 %v626, 8
      %v711 = vpop.permute.xlu0 %710
      %712 = vrot.lane.b32.xlu0 %v627, 8
      %v713 = vpop.permute.xlu0 %712
      %714 = vrot.lane.b32.xlu0 %v628, 8
      %v715 = vpop.permute.xlu0 %714
      %716 = vrot.lane.b32.xlu0 %v629, 8
      %v717 = vpop.permute.xlu0 %716
      %718 = vrot.lane.b32.xlu0 %v630, 8
      %v719 = vpop.permute.xlu0 %718
      %720 = vrot.lane.b32.xlu0 %v631, 8
      %v721 = vpop.permute.xlu0 %720
      %722 = vrot.lane.b32.xlu0 %v632, 8
      %v723 = vpop.permute.xlu0 %722
      %724 = vrot.lane.b32.xlu0 %v633, 8
      %v725 = vpop.permute.xlu0 %724
      %726 = vrot.lane.b32.xlu0 %v634, 8
      %v727 = vpop.permute.xlu0 %726
      %728 = vrot.lane.b32.xlu0 %v635, 8
      %v729 = vpop.permute.xlu0 %728
      %730 = vrot.lane.b32.xlu0 %v636, 8
      %v731 = vpop.permute.xlu0 %730
      %732 = vrot.lane.b32.xlu0 %v637, 8
      %v733 = vpop.permute.xlu0 %732
      %vm766 = vcmask 130112
      %767 = vst.msk [vmem:[#allocation3] sm:$0xff] %vm766, %v671
      %768 = vst.msk [vmem:[#allocation3 + $0x8] sm:$0xff] %vm766, %v673
      %769 = vst.msk [vmem:[#allocation3 + $0x10] sm:$0xff] %vm766, %v675
      %770 = vst.msk [vmem:[#allocation3 + $0x18] sm:$0xff] %vm766, %v677
      %771 = vst.msk [vmem:[#allocation3 + $0x20] sm:$0xff] %vm766, %v679
      %772 = vst.msk [vmem:[#allocation3 + $0x28] sm:$0xff] %vm766, %v681
      %773 = vst.msk [vmem:[#allocation3 + $0x30] sm:$0xff] %vm766, %v683
      %774 = vst.msk [vmem:[#allocation3 + $0x38] sm:$0xff] %vm766, %v685
      %775 = vst.msk [vmem:[#allocation3 + $0x40] sm:$0xff] %vm766, %v687
      %776 = vst.msk [vmem:[#allocation3 + $0x48] sm:$0xff] %vm766, %v689
      %777 = vst.msk [vmem:[#allocation3 + $0x50] sm:$0xff] %vm766, %v691
      %778 = vst.msk [vmem:[#allocation3 + $0x58] sm:$0xff] %vm766, %v693
      %779 = vst.msk [vmem:[#allocation3 + $0x60] sm:$0xff] %vm766, %v695
      %780 = vst.msk [vmem:[#allocation3 + $0x68] sm:$0xff] %vm766, %v697
      %781 = vst.msk [vmem:[#allocation3 + $0x70] sm:$0xff] %vm766, %v699
      %782 = vst.msk [vmem:[#allocation3 + $0x78] sm:$0xff] %vm766, %v701
      %783 = vst.msk [vmem:[#allocation3 + $0x80] sm:$0xff] %vm766, %v703
      %784 = vst.msk [vmem:[#allocation3 + $0x88] sm:$0xff] %vm766, %v705
      %785 = vst.msk [vmem:[#allocation3 + $0x90] sm:$0xff] %vm766, %v707
      %786 = vst.msk [vmem:[#allocation3 + $0x98] sm:$0xff] %vm766, %v709
      %787 = vst.msk [vmem:[#allocation3 + $0xa0] sm:$0xff] %vm766, %v711
      %788 = vst.msk [vmem:[#allocation3 + $0xa8] sm:$0xff] %vm766, %v713
      %789 = vst.msk [vmem:[#allocation3 + $0xb0] sm:$0xff] %vm766, %v715
      %790 = vst.msk [vmem:[#allocation3 + $0xb8] sm:$0xff] %vm766, %v717
      %791 = vst.msk [vmem:[#allocation3 + $0xc0] sm:$0xff] %vm766, %v719
      %792 = vst.msk [vmem:[#allocation3 + $0xc8] sm:$0xff] %vm766, %v721
      %793 = vst.msk [vmem:[#allocation3 + $0xd0] sm:$0xff] %vm766, %v723
      %794 = vst.msk [vmem:[#allocation3 + $0xd8] sm:$0xff] %vm766, %v725
      %795 = vst.msk [vmem:[#allocation3 + $0xe0] sm:$0xff] %vm766, %v727
      %796 = vst.msk [vmem:[#allocation3 + $0xe8] sm:$0xff] %vm766, %v729
      %797 = vst.msk [vmem:[#allocation3 + $0xf0] sm:$0xff] %vm766, %v731
      %798 = vst.msk [vmem:[#allocation3 + $0xf8] sm:$0xff] %vm766, %v733
      %v799 = vld [vmem:[#allocation2 + $0x2] sm:$0xff]
      %v800 = vld [vmem:[#allocation2 + $0xa] sm:$0xff]
      %v801 = vld [vmem:[#allocation2 + $0x1a] sm:$0xff]
      %v802 = vld [vmem:[#allocation2 + $0x22] sm:$0xff]
      %v803 = vld [vmem:[#allocation2 + $0x32] sm:$0xff]
      %v804 = vld [vmem:[#allocation2 + $0x3a] sm:$0xff]
      %v805 = vld [vmem:[#allocation2 + $0x4a] sm:$0xff]
      %v806 = vld [vmem:[#allocation2 + $0x52] sm:$0xff]
      %v807 = vld [vmem:[#allocation2 + $0x62] sm:$0xff]
      %v808 = vld [vmem:[#allocation2 + $0x6a] sm:$0xff]
      %v809 = vld [vmem:[#allocation2 + $0x7a] sm:$0xff]
      %v810 = vld [vmem:[#allocation2 + $0x82] sm:$0xff]
      %v811 = vld [vmem:[#allocation2 + $0x92] sm:$0xff]
      %v812 = vld [vmem:[#allocation2 + $0x9a] sm:$0xff]
      %v813 = vld [vmem:[#allocation2 + $0xaa] sm:$0xff]
      %v814 = vld [vmem:[#allocation2 + $0xb2] sm:$0xff]
      %v815 = vld [vmem:[#allocation2 + $0xc2] sm:$0xff]
      %v816 = vld [vmem:[#allocation2 + $0xca] sm:$0xff]
      %v817 = vld [vmem:[#allocation2 + $0xda] sm:$0xff]
      %v818 = vld [vmem:[#allocation2 + $0xe2] sm:$0xff]
      %v819 = vld [vmem:[#allocation2 + $0xf2] sm:$0xff]
      %v820 = vld [vmem:[#allocation2 + $0xfa] sm:$0xff]
      %v821 = vld [vmem:[#allocation2 + $0x10a] sm:$0xff]
      %v822 = vld [vmem:[#allocation2 + $0x112] sm:$0xff]
      %v823 = vld [vmem:[#allocation2 + $0x122] sm:$0xff]
      %v824 = vld [vmem:[#allocation2 + $0x12a] sm:$0xff]
      %v825 = vld [vmem:[#allocation2 + $0x13a] sm:$0xff]
      %v826 = vld [vmem:[#allocation2 + $0x142] sm:$0xff]
      %v827 = vld [vmem:[#allocation2 + $0x152] sm:$0xff]
      %v828 = vld [vmem:[#allocation2 + $0x15a] sm:$0xff]
      %v829 = vld [vmem:[#allocation2 + $0x16a] sm:$0xff]
      %v830 = vld [vmem:[#allocation2 + $0x172] sm:$0xff]
      %863 = vrot.lane.b32.xlu0 %v799, 16
      %v864 = vpop.permute.xlu0 %863
      %865 = vrot.lane.b32.xlu0 %v800, 16
      %v866 = vpop.permute.xlu0 %865
      %867 = vrot.lane.b32.xlu0 %v801, 16
      %v868 = vpop.permute.xlu0 %867
      %869 = vrot.lane.b32.xlu0 %v802, 16
      %v870 = vpop.permute.xlu0 %869
      %871 = vrot.lane.b32.xlu0 %v803, 16
      %v872 = vpop.permute.xlu0 %871
      %873 = vrot.lane.b32.xlu0 %v804, 16
      %v874 = vpop.permute.xlu0 %873
      %875 = vrot.lane.b32.xlu0 %v805, 16
      %v876 = vpop.permute.xlu0 %875
      %877 = vrot.lane.b32.xlu0 %v806, 16
      %v878 = vpop.permute.xlu0 %877
      %879 = vrot.lane.b32.xlu0 %v807, 16
      %v880 = vpop.permute.xlu0 %879
      %881 = vrot.lane.b32.xlu0 %v808, 16
      %v882 = vpop.permute.xlu0 %881
      %883 = vrot.lane.b32.xlu0 %v809, 16
      %v884 = vpop.permute.xlu0 %883
      %885 = vrot.lane.b32.xlu0 %v810, 16
      %v886 = vpop.permute.xlu0 %885
      %887 = vrot.lane.b32.xlu0 %v811, 16
      %v888 = vpop.permute.xlu0 %887
      %889 = vrot.lane.b32.xlu0 %v812, 16
      %v890 = vpop.permute.xlu0 %889
      %891 = vrot.lane.b32.xlu0 %v813, 16
      %v892 = vpop.permute.xlu0 %891
      %893 = vrot.lane.b32.xlu0 %v814, 16
      %v894 = vpop.permute.xlu0 %893
      %895 = vrot.lane.b32.xlu0 %v815, 16
      %v896 = vpop.permute.xlu0 %895
      %897 = vrot.lane.b32.xlu0 %v816, 16
      %v898 = vpop.permute.xlu0 %897
      %899 = vrot.lane.b32.xlu0 %v817, 16
      %v900 = vpop.permute.xlu0 %899
      %901 = vrot.lane.b32.xlu0 %v818, 16
      %v902 = vpop.permute.xlu0 %901
      %903 = vrot.lane.b32.xlu0 %v819, 16
      %v904 = vpop.permute.xlu0 %903
      %905 = vrot.lane.b32.xlu0 %v820, 16
      %v906 = vpop.permute.xlu0 %905
      %907 = vrot.lane.b32.xlu0 %v821, 16
      %v908 = vpop.permute.xlu0 %907
      %909 = vrot.lane.b32.xlu0 %v822, 16
      %v910 = vpop.permute.xlu0 %909
      %911 = vrot.lane.b32.xlu0 %v823, 16
      %v912 = vpop.permute.xlu0 %911
      %913 = vrot.lane.b32.xlu0 %v824, 16
      %v914 = vpop.permute.xlu0 %913
      %915 = vrot.lane.b32.xlu0 %v825, 16
      %v916 = vpop.permute.xlu0 %915
      %917 = vrot.lane.b32.xlu0 %v826, 16
      %v918 = vpop.permute.xlu0 %917
      %919 = vrot.lane.b32.xlu0 %v827, 16
      %v920 = vpop.permute.xlu0 %919
      %921 = vrot.lane.b32.xlu0 %v828, 16
      %v922 = vpop.permute.xlu0 %921
      %923 = vrot.lane.b32.xlu0 %v829, 16
      %v924 = vpop.permute.xlu0 %923
      %925 = vrot.lane.b32.xlu0 %v830, 16
      %v926 = vpop.permute.xlu0 %925
      %vm959 = vcmask 195712
      %960 = vst.msk [vmem:[#allocation3] sm:$0xff] %vm959, %v864
      %961 = vst.msk [vmem:[#allocation3 + $0x8] sm:$0xff] %vm959, %v866
      %962 = vst.msk [vmem:[#allocation3 + $0x10] sm:$0xff] %vm959, %v868
      %963 = vst.msk [vmem:[#allocation3 + $0x18] sm:$0xff] %vm959, %v870
      %964 = vst.msk [vmem:[#allocation3 + $0x20] sm:$0xff] %vm959, %v872
      %965 = vst.msk [vmem:[#allocation3 + $0x28] sm:$0xff] %vm959, %v874
      %966 = vst.msk [vmem:[#allocation3 + $0x30] sm:$0xff] %vm959, %v876
      %967 = vst.msk [vmem:[#allocation3 + $0x38] sm:$0xff] %vm959, %v878
      %968 = vst.msk [vmem:[#allocation3 + $0x40] sm:$0xff] %vm959, %v880
      %969 = vst.msk [vmem:[#allocation3 + $0x48] sm:$0xff] %vm959, %v882
      %970 = vst.msk [vmem:[#allocation3 + $0x50] sm:$0xff] %vm959, %v884
      %971 = vst.msk [vmem:[#allocation3 + $0x58] sm:$0xff] %vm959, %v886
      %972 = vst.msk [vmem:[#allocation3 + $0x60] sm:$0xff] %vm959, %v888
      %973 = vst.msk [vmem:[#allocation3 + $0x68] sm:$0xff] %vm959, %v890
      %974 = vst.msk [vmem:[#allocation3 + $0x70] sm:$0xff] %vm959, %v892
      %975 = vst.msk [vmem:[#allocation3 + $0x78] sm:$0xff] %vm959, %v894
      %976 = vst.msk [vmem:[#allocation3 + $0x80] sm:$0xff] %vm959, %v896
      %977 = vst.msk [vmem:[#allocation3 + $0x88] sm:$0xff] %vm959, %v898
      %978 = vst.msk [vmem:[#allocation3 + $0x90] sm:$0xff] %vm959, %v900
      %979 = vst.msk [vmem:[#allocation3 + $0x98] sm:$0xff] %vm959, %v902
      %980 = vst.msk [vmem:[#allocation3 + $0xa0] sm:$0xff] %vm959, %v904
      %981 = vst.msk [vmem:[#allocation3 + $0xa8] sm:$0xff] %vm959, %v906
      %982 = vst.msk [vmem:[#allocation3 + $0xb0] sm:$0xff] %vm959, %v908
      %983 = vst.msk [vmem:[#allocation3 + $0xb8] sm:$0xff] %vm959, %v910
      %984 = vst.msk [vmem:[#allocation3 + $0xc0] sm:$0xff] %vm959, %v912
      %985 = vst.msk [vmem:[#allocation3 + $0xc8] sm:$0xff] %vm959, %v914
      %986 = vst.msk [vmem:[#allocation3 + $0xd0] sm:$0xff] %vm959, %v916
      %987 = vst.msk [vmem:[#allocation3 + $0xd8] sm:$0xff] %vm959, %v918
      %988 = vst.msk [vmem:[#allocation3 + $0xe0] sm:$0xff] %vm959, %v920
      %989 = vst.msk [vmem:[#allocation3 + $0xe8] sm:$0xff] %vm959, %v922
      %990 = vst.msk [vmem:[#allocation3 + $0xf0] sm:$0xff] %vm959, %v924
      %991 = vst.msk [vmem:[#allocation3 + $0xf8] sm:$0xff] %vm959, %v926
      %v992 = vld [vmem:[%s509] sm:$0xff]
      %v993 = vld [vmem:[%s509 + $0x8] sm:$0xff]
      %v994 = vld [vmem:[%s509 + $0x18] sm:$0xff]
      %v995 = vld [vmem:[%s509 + $0x20] sm:$0xff]
      %v996 = vld [vmem:[%s509 + $0x30] sm:$0xff]
      %v997 = vld [vmem:[%s509 + $0x38] sm:$0xff]
      %v998 = vld [vmem:[%s509 + $0x48] sm:$0xff]
      %v999 = vld [vmem:[%s509 + $0x50] sm:$0xff]
      %v1000 = vld [vmem:[%s509 + $0x60] sm:$0xff]
      %v1001 = vld [vmem:[%s509 + $0x68] sm:$0xff]
      %v1002 = vld [vmem:[%s509 + $0x78] sm:$0xff]
      %v1003 = vld [vmem:[%s509 + $0x80] sm:$0xff]
      %v1004 = vld [vmem:[%s509 + $0x90] sm:$0xff]
      %v1005 = vld [vmem:[%s509 + $0x98] sm:$0xff]
      %v1006 = vld [vmem:[%s509 + $0xa8] sm:$0xff]
      %v1007 = vld [vmem:[%s509 + $0xb0] sm:$0xff]
      %v1008 = vld [vmem:[%s509 + $0xc0] sm:$0xff]
      %v1009 = vld [vmem:[%s509 + $0xc8] sm:$0xff]
      %v1010 = vld [vmem:[%s509 + $0xd8] sm:$0xff]
      %v1011 = vld [vmem:[%s509 + $0xe0] sm:$0xff]
      %v1012 = vld [vmem:[%s509 + $0xf0] sm:$0xff]
      %v1013 = vld [vmem:[%s509 + $0xf8] sm:$0xff]
      %v1014 = vld [vmem:[%s509 + $0x108] sm:$0xff]
      %v1015 = vld [vmem:[%s509 + $0x110] sm:$0xff]
      %v1016 = vld [vmem:[%s509 + $0x120] sm:$0xff]
      %v1017 = vld [vmem:[%s509 + $0x128] sm:$0xff]
      %v1018 = vld [vmem:[%s509 + $0x138] sm:$0xff]
      %v1019 = vld [vmem:[%s509 + $0x140] sm:$0xff]
      %v1020 = vld [vmem:[%s509 + $0x150] sm:$0xff]
      %v1021 = vld [vmem:[%s509 + $0x158] sm:$0xff]
      %v1022 = vld [vmem:[%s509 + $0x168] sm:$0xff]
      %v1023 = vld [vmem:[%s509 + $0x170] sm:$0xff]
      %1056 = vrot.lane.b32.xlu0 %v992, 24
      %v1057 = vpop.permute.xlu0 %1056
      %1058 = vrot.lane.b32.xlu0 %v993, 24
      %v1059 = vpop.permute.xlu0 %1058
      %1060 = vrot.lane.b32.xlu0 %v994, 24
      %v1061 = vpop.permute.xlu0 %1060
      %1062 = vrot.lane.b32.xlu0 %v995, 24
      %v1063 = vpop.permute.xlu0 %1062
      %1064 = vrot.lane.b32.xlu0 %v996, 24
      %v1065 = vpop.permute.xlu0 %1064
      %1066 = vrot.lane.b32.xlu0 %v997, 24
      %v1067 = vpop.permute.xlu0 %1066
      %1068 = vrot.lane.b32.xlu0 %v998, 24
      %v1069 = vpop.permute.xlu0 %1068
      %1070 = vrot.lane.b32.xlu0 %v999, 24
      %v1071 = vpop.permute.xlu0 %1070
      %1072 = vrot.lane.b32.xlu0 %v1000, 24
      %v1073 = vpop.permute.xlu0 %1072
      %1074 = vrot.lane.b32.xlu0 %v1001, 24
      %v1075 = vpop.permute.xlu0 %1074
      %1076 = vrot.lane.b32.xlu0 %v1002, 24
      %v1077 = vpop.permute.xlu0 %1076
      %1078 = vrot.lane.b32.xlu0 %v1003, 24
      %v1079 = vpop.permute.xlu0 %1078
      %1080 = vrot.lane.b32.xlu0 %v1004, 24
      %v1081 = vpop.permute.xlu0 %1080
      %1082 = vrot.lane.b32.xlu0 %v1005, 24
      %v1083 = vpop.permute.xlu0 %1082
      %1084 = vrot.lane.b32.xlu0 %v1006, 24
      %v1085 = vpop.permute.xlu0 %1084
      %1086 = vrot.lane.b32.xlu0 %v1007, 24
      %v1087 = vpop.permute.xlu0 %1086
      %1088 = vrot.lane.b32.xlu0 %v1008, 24
      %v1089 = vpop.permute.xlu0 %1088
      %1090 = vrot.lane.b32.xlu0 %v1009, 24
      %v1091 = vpop.permute.xlu0 %1090
      %1092 = vrot.lane.b32.xlu0 %v1010, 24
      %v1093 = vpop.permute.xlu0 %1092
      %1094 = vrot.lane.b32.xlu0 %v1011, 24
      %v1095 = vpop.permute.xlu0 %1094
      %1096 = vrot.lane.b32.xlu0 %v1012, 24
      %v1097 = vpop.permute.xlu0 %1096
      %1098 = vrot.lane.b32.xlu0 %v1013, 24
      %v1099 = vpop.permute.xlu0 %1098
      %1100 = vrot.lane.b32.xlu0 %v1014, 24
      %v1101 = vpop.permute.xlu0 %1100
      %1102 = vrot.lane.b32.xlu0 %v1015, 24
      %v1103 = vpop.permute.xlu0 %1102
      %1104 = vrot.lane.b32.xlu0 %v1016, 24
      %v1105 = vpop.permute.xlu0 %1104
      %1106 = vrot.lane.b32.xlu0 %v1017, 24
      %v1107 = vpop.permute.xlu0 %1106
      %1108 = vrot.lane.b32.xlu0 %v1018, 24
      %v1109 = vpop.permute.xlu0 %1108
      %1110 = vrot.lane.b32.xlu0 %v1019, 24
      %v1111 = vpop.permute.xlu0 %1110
      %1112 = vrot.lane.b32.xlu0 %v1020, 24
      %v1113 = vpop.permute.xlu0 %1112
      %1114 = vrot.lane.b32.xlu0 %v1021, 24
      %v1115 = vpop.permute.xlu0 %1114
      %1116 = vrot.lane.b32.xlu0 %v1022, 24
      %v1117 = vpop.permute.xlu0 %1116
      %1118 = vrot.lane.b32.xlu0 %v1023, 24
      %v1119 = vpop.permute.xlu0 %1118
      %vm1152 = vcmask 261312
      %1153 = vst.msk [vmem:[#allocation3] sm:$0xff] %vm1152, %v1057
      %1154 = vst.msk [vmem:[#allocation3 + $0x8] sm:$0xff] %vm1152, %v1059
      %1155 = vst.msk [vmem:[#allocation3 + $0x10] sm:$0xff] %vm1152, %v1061
      %1156 = vst.msk [vmem:[#allocation3 + $0x18] sm:$0xff] %vm1152, %v1063
      %1157 = vst.msk [vmem:[#allocation3 + $0x20] sm:$0xff] %vm1152, %v1065
      %1158 = vst.msk [vmem:[#allocation3 + $0x28] sm:$0xff] %vm1152, %v1067
      %1159 = vst.msk [vmem:[#allocation3 + $0x30] sm:$0xff] %vm1152, %v1069
      %1160 = vst.msk [vmem:[#allocation3 + $0x38] sm:$0xff] %vm1152, %v1071
      %1161 = vst.msk [vmem:[#allocation3 + $0x40] sm:$0xff] %vm1152, %v1073
      %1162 = vst.msk [vmem:[#allocation3 + $0x48] sm:$0xff] %vm1152, %v1075
      %1163 = vst.msk [vmem:[#allocation3 + $0x50] sm:$0xff] %vm1152, %v1077
      %1164 = vst.msk [vmem:[#allocation3 + $0x58] sm:$0xff] %vm1152, %v1079
      %1165 = vst.msk [vmem:[#allocation3 + $0x60] sm:$0xff] %vm1152, %v1081
      %1166 = vst.msk [vmem:[#allocation3 + $0x68] sm:$0xff] %vm1152, %v1083
      %1167 = vst.msk [vmem:[#allocation3 + $0x70] sm:$0xff] %vm1152, %v1085
      %1168 = vst.msk [vmem:[#allocation3 + $0x78] sm:$0xff] %vm1152, %v1087
      %1169 = vst.msk [vmem:[#allocation3 + $0x80] sm:$0xff] %vm1152, %v1089
      %1170 = vst.msk [vmem:[#allocation3 + $0x88] sm:$0xff] %vm1152, %v1091
      %1171 = vst.msk [vmem:[#allocation3 + $0x90] sm:$0xff] %vm1152, %v1093
      %1172 = vst.msk [vmem:[#allocation3 + $0x98] sm:$0xff] %vm1152, %v1095
      %1173 = vst.msk [vmem:[#allocation3 + $0xa0] sm:$0xff] %vm1152, %v1097
      %1174 = vst.msk [vmem:[#allocation3 + $0xa8] sm:$0xff] %vm1152, %v1099
      %1175 = vst.msk [vmem:[#allocation3 + $0xb0] sm:$0xff] %vm1152, %v1101
      %1176 = vst.msk [vmem:[#allocation3 + $0xb8] sm:$0xff] %vm1152, %v1103
      %1177 = vst.msk [vmem:[#allocation3 + $0xc0] sm:$0xff] %vm1152, %v1105
      %1178 = vst.msk [vmem:[#allocation3 + $0xc8] sm:$0xff] %vm1152, %v1107
      %1179 = vst.msk [vmem:[#allocation3 + $0xd0] sm:$0xff] %vm1152, %v1109
      %1180 = vst.msk [vmem:[#allocation3 + $0xd8] sm:$0xff] %vm1152, %v1111
      %1181 = vst.msk [vmem:[#allocation3 + $0xe0] sm:$0xff] %vm1152, %v1113
      %1182 = vst.msk [vmem:[#allocation3 + $0xe8] sm:$0xff] %vm1152, %v1115
      %1183 = vst.msk [vmem:[#allocation3 + $0xf0] sm:$0xff] %vm1152, %v1117
      %1184 = vst.msk [vmem:[#allocation3 + $0xf8] sm:$0xff] %vm1152, %v1119
      %v1185 = vld [vmem:[%s509 + $0x1] sm:$0xff]
      %v1186 = vld [vmem:[%s509 + $0x9] sm:$0xff]
      %v1187 = vld [vmem:[%s509 + $0x19] sm:$0xff]
      %v1188 = vld [vmem:[%s509 + $0x21] sm:$0xff]
      %v1189 = vld [vmem:[%s509 + $0x31] sm:$0xff]
      %v1190 = vld [vmem:[%s509 + $0x39] sm:$0xff]
      %v1191 = vld [vmem:[%s509 + $0x49] sm:$0xff]
      %v1192 = vld [vmem:[%s509 + $0x51] sm:$0xff]
      %v1193 = vld [vmem:[%s509 + $0x61] sm:$0xff]
      %v1194 = vld [vmem:[%s509 + $0x69] sm:$0xff]
      %v1195 = vld [vmem:[%s509 + $0x79] sm:$0xff]
      %v1196 = vld [vmem:[%s509 + $0x81] sm:$0xff]
      %v1197 = vld [vmem:[%s509 + $0x91] sm:$0xff]
      %v1198 = vld [vmem:[%s509 + $0x99] sm:$0xff]
      %v1199 = vld [vmem:[%s509 + $0xa9] sm:$0xff]
      %v1200 = vld [vmem:[%s509 + $0xb1] sm:$0xff]
      %v1201 = vld [vmem:[%s509 + $0xc1] sm:$0xff]
      %v1202 = vld [vmem:[%s509 + $0xc9] sm:$0xff]
      %v1203 = vld [vmem:[%s509 + $0xd9] sm:$0xff]
      %v1204 = vld [vmem:[%s509 + $0xe1] sm:$0xff]
      %v1205 = vld [vmem:[%s509 + $0xf1] sm:$0xff]
      %v1206 = vld [vmem:[%s509 + $0xf9] sm:$0xff]
      %v1207 = vld [vmem:[%s509 + $0x109] sm:$0xff]
      %v1208 = vld [vmem:[%s509 + $0x111] sm:$0xff]
      %v1209 = vld [vmem:[%s509 + $0x121] sm:$0xff]
      %v1210 = vld [vmem:[%s509 + $0x129] sm:$0xff]
      %v1211 = vld [vmem:[%s509 + $0x139] sm:$0xff]
      %v1212 = vld [vmem:[%s509 + $0x141] sm:$0xff]
      %v1213 = vld [vmem:[%s509 + $0x151] sm:$0xff]
      %v1214 = vld [vmem:[%s509 + $0x159] sm:$0xff]
      %v1215 = vld [vmem:[%s509 + $0x169] sm:$0xff]
      %v1216 = vld [vmem:[%s509 + $0x171] sm:$0xff]
      %1249 = vrot.lane.b32.xlu0 %v1185, 32
      %v1250 = vpop.permute.xlu0 %1249
      %1251 = vrot.lane.b32.xlu0 %v1186, 32
      %v1252 = vpop.permute.xlu0 %1251
      %1253 = vrot.lane.b32.xlu0 %v1187, 32
      %v1254 = vpop.permute.xlu0 %1253
      %1255 = vrot.lane.b32.xlu0 %v1188, 32
      %v1256 = vpop.permute.xlu0 %1255
      %1257 = vrot.lane.b32.xlu0 %v1189, 32
      %v1258 = vpop.permute.xlu0 %1257
      %1259 = vrot.lane.b32.xlu0 %v1190, 32
      %v1260 = vpop.permute.xlu0 %1259
      %1261 = vrot.lane.b32.xlu0 %v1191, 32
      %v1262 = vpop.permute.xlu0 %1261
      %1263 = vrot.lane.b32.xlu0 %v1192, 32
      %v1264 = vpop.permute.xlu0 %1263
      %1265 = vrot.lane.b32.xlu0 %v1193, 32
      %v1266 = vpop.permute.xlu0 %1265
      %1267 = vrot.lane.b32.xlu0 %v1194, 32
      %v1268 = vpop.permute.xlu0 %1267
      %1269 = vrot.lane.b32.xlu0 %v1195, 32
      %v1270 = vpop.permute.xlu0 %1269
      %1271 = vrot.lane.b32.xlu0 %v1196, 32
      %v1272 = vpop.permute.xlu0 %1271
      %1273 = vrot.lane.b32.xlu0 %v1197, 32
      %v1274 = vpop.permute.xlu0 %1273
      %1275 = vrot.lane.b32.xlu0 %v1198, 32
      %v1276 = vpop.permute.xlu0 %1275
      %1277 = vrot.lane.b32.xlu0 %v1199, 32
      %v1278 = vpop.permute.xlu0 %1277
      %1279 = vrot.lane.b32.xlu0 %v1200, 32
      %v1280 = vpop.permute.xlu0 %1279
      %1281 = vrot.lane.b32.xlu0 %v1201, 32
      %v1282 = vpop.permute.xlu0 %1281
      %1283 = vrot.lane.b32.xlu0 %v1202, 32
      %v1284 = vpop.permute.xlu0 %1283
      %1285 = vrot.lane.b32.xlu0 %v1203, 32
      %v1286 = vpop.permute.xlu0 %1285
      %1287 = vrot.lane.b32.xlu0 %v1204, 32
      %v1288 = vpop.permute.xlu0 %1287
      %1289 = vrot.lane.b32.xlu0 %v1205, 32
      %v1290 = vpop.permute.xlu0 %1289
      %1291 = vrot.lane.b32.xlu0 %v1206, 32
      %v1292 = vpop.permute.xlu0 %1291
      %1293 = vrot.lane.b32.xlu0 %v1207, 32
      %v1294 = vpop.permute.xlu0 %1293
      %1295 = vrot.lane.b32.xlu0 %v1208, 32
      %v1296 = vpop.permute.xlu0 %1295
      %1297 = vrot.lane.b32.xlu0 %v1209, 32
      %v1298 = vpop.permute.xlu0 %1297
      %1299 = vrot.lane.b32.xlu0 %v1210, 32
      %v1300 = vpop.permute.xlu0 %1299
      %1301 = vrot.lane.b32.xlu0 %v1211, 32
      %v1302 = vpop.permute.xlu0 %1301
      %1303 = vrot.lane.b32.xlu0 %v1212, 32
      %v1304 = vpop.permute.xlu0 %1303
      %1305 = vrot.lane.b32.xlu0 %v1213, 32
      %v1306 = vpop.permute.xlu0 %1305
      %1307 = vrot.lane.b32.xlu0 %v1214, 32
      %v1308 = vpop.permute.xlu0 %1307
      %1309 = vrot.lane.b32.xlu0 %v1215, 32
      %v1310 = vpop.permute.xlu0 %1309
      %1311 = vrot.lane.b32.xlu0 %v1216, 32
      %v1312 = vpop.permute.xlu0 %1311
      %vm1345 = vcmask 326912
      %1346 = vst.msk [vmem:[#allocation3] sm:$0xff] %vm1345, %v1250
      %1347 = vst.msk [vmem:[#allocation3 + $0x8] sm:$0xff] %vm1345, %v1252
      %1348 = vst.msk [vmem:[#allocation3 + $0x10] sm:$0xff] %vm1345, %v1254
      %1349 = vst.msk [vmem:[#allocation3 + $0x18] sm:$0xff] %vm1345, %v1256
      %1350 = vst.msk [vmem:[#allocation3 + $0x20] sm:$0xff] %vm1345, %v1258
      %1351 = vst.msk [vmem:[#allocation3 + $0x28] sm:$0xff] %vm1345, %v1260
      %1352 = vst.msk [vmem:[#allocation3 + $0x30] sm:$0xff] %vm1345, %v1262
      %1353 = vst.msk [vmem:[#allocation3 + $0x38] sm:$0xff] %vm1345, %v1264
      %1354 = vst.msk [vmem:[#allocation3 + $0x40] sm:$0xff] %vm1345, %v1266
      %1355 = vst.msk [vmem:[#allocation3 + $0x48] sm:$0xff] %vm1345, %v1268
      %1356 = vst.msk [vmem:[#allocation3 + $0x50] sm:$0xff] %vm1345, %v1270
      %1357 = vst.msk [vmem:[#allocation3 + $0x58] sm:$0xff] %vm1345, %v1272
      %1358 = vst.msk [vmem:[#allocation3 + $0x60] sm:$0xff] %vm1345, %v1274
      %1359 = vst.msk [vmem:[#allocation3 + $0x68] sm:$0xff] %vm1345, %v1276
      %1360 = vst.msk [vmem:[#allocation3 + $0x70] sm:$0xff] %vm1345, %v1278
      %1361 = vst.msk [vmem:[#allocation3 + $0x78] sm:$0xff] %vm1345, %v1280
      %1362 = vst.msk [vmem:[#allocation3 + $0x80] sm:$0xff] %vm1345, %v1282
      %1363 = vst.msk [vmem:[#allocation3 + $0x88] sm:$0xff] %vm1345, %v1284
      %1364 = vst.msk [vmem:[#allocation3 + $0x90] sm:$0xff] %vm1345, %v1286
      %1365 = vst.msk [vmem:[#allocation3 + $0x98] sm:$0xff] %vm1345, %v1288
      %1366 = vst.msk [vmem:[#allocation3 + $0xa0] sm:$0xff] %vm1345, %v1290
      %1367 = vst.msk [vmem:[#allocation3 + $0xa8] sm:$0xff] %vm1345, %v1292
      %1368 = vst.msk [vmem:[#allocation3 + $0xb0] sm:$0xff] %vm1345, %v1294
      %1369 = vst.msk [vmem:[#allocation3 + $0xb8] sm:$0xff] %vm1345, %v1296
      %1370 = vst.msk [vmem:[#allocation3 + $0xc0] sm:$0xff] %vm1345, %v1298
      %1371 = vst.msk [vmem:[#allocation3 + $0xc8] sm:$0xff] %vm1345, %v1300
      %1372 = vst.msk [vmem:[#allocation3 + $0xd0] sm:$0xff] %vm1345, %v1302
      %1373 = vst.msk [vmem:[#allocation3 + $0xd8] sm:$0xff] %vm1345, %v1304
      %1374 = vst.msk [vmem:[#allocation3 + $0xe0] sm:$0xff] %vm1345, %v1306
      %1375 = vst.msk [vmem:[#allocation3 + $0xe8] sm:$0xff] %vm1345, %v1308
      %1376 = vst.msk [vmem:[#allocation3 + $0xf0] sm:$0xff] %vm1345, %v1310
      %1377 = vst.msk [vmem:[#allocation3 + $0xf8] sm:$0xff] %vm1345, %v1312
      %v1378 = vld [vmem:[%s509 + $0x2] sm:$0xff]
      %v1379 = vld [vmem:[%s509 + $0xa] sm:$0xff]
      %v1380 = vld [vmem:[%s509 + $0x1a] sm:$0xff]
      %v1381 = vld [vmem:[%s509 + $0x22] sm:$0xff]
      %v1382 = vld [vmem:[%s509 + $0x32] sm:$0xff]
      %v1383 = vld [vmem:[%s509 + $0x3a] sm:$0xff]
      %v1384 = vld [vmem:[%s509 + $0x4a] sm:$0xff]
      %v1385 = vld [vmem:[%s509 + $0x52] sm:$0xff]
      %v1386 = vld [vmem:[%s509 + $0x62] sm:$0xff]
      %v1387 = vld [vmem:[%s509 + $0x6a] sm:$0xff]
      %v1388 = vld [vmem:[%s509 + $0x7a] sm:$0xff]
      %v1389 = vld [vmem:[%s509 + $0x82] sm:$0xff]
      %v1390 = vld [vmem:[%s509 + $0x92] sm:$0xff]
      %v1391 = vld [vmem:[%s509 + $0x9a] sm:$0xff]
      %v1392 = vld [vmem:[%s509 + $0xaa] sm:$0xff]
      %v1393 = vld [vmem:[%s509 + $0xb2] sm:$0xff]
      %v1394 = vld [vmem:[%s509 + $0xc2] sm:$0xff]
      %v1395 = vld [vmem:[%s509 + $0xca] sm:$0xff]
      %v1396 = vld [vmem:[%s509 + $0xda] sm:$0xff]
      %v1397 = vld [vmem:[%s509 + $0xe2] sm:$0xff]
      %v1398 = vld [vmem:[%s509 + $0xf2] sm:$0xff]
      %v1399 = vld [vmem:[%s509 + $0xfa] sm:$0xff]
      %v1400 = vld [vmem:[%s509 + $0x10a] sm:$0xff]
      %v1401 = vld [vmem:[%s509 + $0x112] sm:$0xff]
      %v1402 = vld [vmem:[%s509 + $0x122] sm:$0xff]
      %v1403 = vld [vmem:[%s509 + $0x12a] sm:$0xff]
      %v1404 = vld [vmem:[%s509 + $0x13a] sm:$0xff]
      %v1405 = vld [vmem:[%s509 + $0x142] sm:$0xff]
      %v1406 = vld [vmem:[%s509 + $0x152] sm:$0xff]
      %v1407 = vld [vmem:[%s509 + $0x15a] sm:$0xff]
      %v1408 = vld [vmem:[%s509 + $0x16a] sm:$0xff]
      %v1409 = vld [vmem:[%s509 + $0x172] sm:$0xff]
      %1442 = vrot.lane.b32.xlu0 %v1378, 40
      %v1443 = vpop.permute.xlu0 %1442
      %1444 = vrot.lane.b32.xlu0 %v1379, 40
      %v1445 = vpop.permute.xlu0 %1444
      %1446 = vrot.lane.b32.xlu0 %v1380, 40
      %v1447 = vpop.permute.xlu0 %1446
      %1448 = vrot.lane.b32.xlu0 %v1381, 40
      %v1449 = vpop.permute.xlu0 %1448
      %1450 = vrot.lane.b32.xlu0 %v1382, 40
      %v1451 = vpop.permute.xlu0 %1450
      %1452 = vrot.lane.b32.xlu0 %v1383, 40
      %v1453 = vpop.permute.xlu0 %1452
      %1454 = vrot.lane.b32.xlu0 %v1384, 40
      %v1455 = vpop.permute.xlu0 %1454
      %1456 = vrot.lane.b32.xlu0 %v1385, 40
      %v1457 = vpop.permute.xlu0 %1456
      %1458 = vrot.lane.b32.xlu0 %v1386, 40
      %v1459 = vpop.permute.xlu0 %1458
      %1460 = vrot.lane.b32.xlu0 %v1387, 40
      %v1461 = vpop.permute.xlu0 %1460
      %1462 = vrot.lane.b32.xlu0 %v1388, 40
      %v1463 = vpop.permute.xlu0 %1462
      %1464 = vrot.lane.b32.xlu0 %v1389, 40
      %v1465 = vpop.permute.xlu0 %1464
      %1466 = vrot.lane.b32.xlu0 %v1390, 40
      %v1467 = vpop.permute.xlu0 %1466
      %1468 = vrot.lane.b32.xlu0 %v1391, 40
      %v1469 = vpop.permute.xlu0 %1468
      %1470 = vrot.lane.b32.xlu0 %v1392, 40
      %v1471 = vpop.permute.xlu0 %1470
      %1472 = vrot.lane.b32.xlu0 %v1393, 40
      %v1473 = vpop.permute.xlu0 %1472
      %1474 = vrot.lane.b32.xlu0 %v1394, 40
      %v1475 = vpop.permute.xlu0 %1474
      %1476 = vrot.lane.b32.xlu0 %v1395, 40
      %v1477 = vpop.permute.xlu0 %1476
      %1478 = vrot.lane.b32.xlu0 %v1396, 40
      %v1479 = vpop.permute.xlu0 %1478
      %1480 = vrot.lane.b32.xlu0 %v1397, 40
      %v1481 = vpop.permute.xlu0 %1480
      %1482 = vrot.lane.b32.xlu0 %v1398, 40
      %v1483 = vpop.permute.xlu0 %1482
      %1484 = vrot.lane.b32.xlu0 %v1399, 40
      %v1485 = vpop.permute.xlu0 %1484
      %1486 = vrot.lane.b32.xlu0 %v1400, 40
      %v1487 = vpop.permute.xlu0 %1486
      %1488 = vrot.lane.b32.xlu0 %v1401, 40
      %v1489 = vpop.permute.xlu0 %1488
      %1490 = vrot.lane.b32.xlu0 %v1402, 40
      %v1491 = vpop.permute.xlu0 %1490
      %1492 = vrot.lane.b32.xlu0 %v1403, 40
      %v1493 = vpop.permute.xlu0 %1492
      %1494 = vrot.lane.b32.xlu0 %v1404, 40
      %v1495 = vpop.permute.xlu0 %1494
      %1496 = vrot.lane.b32.xlu0 %v1405, 40
      %v1497 = vpop.permute.xlu0 %1496
      %1498 = vrot.lane.b32.xlu0 %v1406, 40
      %v1499 = vpop.permute.xlu0 %1498
      %1500 = vrot.lane.b32.xlu0 %v1407, 40
      %v1501 = vpop.permute.xlu0 %1500
      %1502 = vrot.lane.b32.xlu0 %v1408, 40
      %v1503 = vpop.permute.xlu0 %1502
      %1504 = vrot.lane.b32.xlu0 %v1409, 40
      %v1505 = vpop.permute.xlu0 %1504
      %vm1538 = vcmask 392512
      %1539 = vst.msk [vmem:[#allocation3] sm:$0xff] %vm1538, %v1443
      %1540 = vst.msk [vmem:[#allocation3 + $0x8] sm:$0xff] %vm1538, %v1445
      %1541 = vst.msk [vmem:[#allocation3 + $0x10] sm:$0xff] %vm1538, %v1447
      %1542 = vst.msk [vmem:[#allocation3 + $0x18] sm:$0xff] %vm1538, %v1449
      %1543 = vst.msk [vmem:[#allocation3 + $0x20] sm:$0xff] %vm1538, %v1451
      %1544 = vst.msk [vmem:[#allocation3 + $0x28] sm:$0xff] %vm1538, %v1453
      %1545 = vst.msk [vmem:[#allocation3 + $0x30] sm:$0xff] %vm1538, %v1455
      %1546 = vst.msk [vmem:[#allocation3 + $0x38] sm:$0xff] %vm1538, %v1457
      %1547 = vst.msk [vmem:[#allocation3 + $0x40] sm:$0xff] %vm1538, %v1459
      %1548 = vst.msk [vmem:[#allocation3 + $0x48] sm:$0xff] %vm1538, %v1461
      %1549 = vst.msk [vmem:[#allocation3 + $0x50] sm:$0xff] %vm1538, %v1463
      %1550 = vst.msk [vmem:[#allocation3 + $0x58] sm:$0xff] %vm1538, %v1465
      %1551 = vst.msk [vmem:[#allocation3 + $0x60] sm:$0xff] %vm1538, %v1467
      %1552 = vst.msk [vmem:[#allocation3 + $0x68] sm:$0xff] %vm1538, %v1469
      %1553 = vst.msk [vmem:[#allocation3 + $0x70] sm:$0xff] %vm1538, %v1471
      %1554 = vst.msk [vmem:[#allocation3 + $0x78] sm:$0xff] %vm1538, %v1473
      %1555 = vst.msk [vmem:[#allocation3 + $0x80] sm:$0xff] %vm1538, %v1475
      %1556 = vst.msk [vmem:[#allocation3 + $0x88] sm:$0xff] %vm1538, %v1477
      %1557 = vst.msk [vmem:[#allocation3 + $0x90] sm:$0xff] %vm1538, %v1479
      %1558 = vst.msk [vmem:[#allocation3 + $0x98] sm:$0xff] %vm1538, %v1481
      %1559 = vst.msk [vmem:[#allocation3 + $0xa0] sm:$0xff] %vm1538, %v1483
      %1560 = vst.msk [vmem:[#allocation3 + $0xa8] sm:$0xff] %vm1538, %v1485
      %1561 = vst.msk [vmem:[#allocation3 + $0xb0] sm:$0xff] %vm1538, %v1487
      %1562 = vst.msk [vmem:[#allocation3 + $0xb8] sm:$0xff] %vm1538, %v1489
      %1563 = vst.msk [vmem:[#allocation3 + $0xc0] sm:$0xff] %vm1538, %v1491
      %1564 = vst.msk [vmem:[#allocation3 + $0xc8] sm:$0xff] %vm1538, %v1493
      %1565 = vst.msk [vmem:[#allocation3 + $0xd0] sm:$0xff] %vm1538, %v1495
      %1566 = vst.msk [vmem:[#allocation3 + $0xd8] sm:$0xff] %vm1538, %v1497
      %1567 = vst.msk [vmem:[#allocation3 + $0xe0] sm:$0xff] %vm1538, %v1499
      %1568 = vst.msk [vmem:[#allocation3 + $0xe8] sm:$0xff] %vm1538, %v1501
      %1569 = vst.msk [vmem:[#allocation3 + $0xf0] sm:$0xff] %vm1538, %v1503
      %1570 = vst.msk [vmem:[#allocation3 + $0xf8] sm:$0xff] %vm1538, %v1505
      %s1571 = scalar_lea.vmem [#allocation2], 48
      %v1572 = vld [vmem:[%s1571] sm:$0xff]
      %v1573 = vld [vmem:[%s1571 + $0x8] sm:$0xff]
      %v1574 = vld [vmem:[%s1571 + $0x18] sm:$0xff]
      %v1575 = vld [vmem:[%s1571 + $0x20] sm:$0xff]
      %v1576 = vld [vmem:[%s1571 + $0x30] sm:$0xff]
      %v1577 = vld [vmem:[%s1571 + $0x38] sm:$0xff]
      %v1578 = vld [vmem:[%s1571 + $0x48] sm:$0xff]
      %v1579 = vld [vmem:[%s1571 + $0x50] sm:$0xff]
      %v1580 = vld [vmem:[%s1571 + $0x60] sm:$0xff]
      %v1581 = vld [vmem:[%s1571 + $0x68] sm:$0xff]
      %v1582 = vld [vmem:[%s1571 + $0x78] sm:$0xff]
      %v1583 = vld [vmem:[%s1571 + $0x80] sm:$0xff]
      %v1584 = vld [vmem:[%s1571 + $0x90] sm:$0xff]
      %v1585 = vld [vmem:[%s1571 + $0x98] sm:$0xff]
      %v1586 = vld [vmem:[%s1571 + $0xa8] sm:$0xff]
      %v1587 = vld [vmem:[%s1571 + $0xb0] sm:$0xff]
      %v1588 = vld [vmem:[%s1571 + $0xc0] sm:$0xff]
      %v1589 = vld [vmem:[%s1571 + $0xc8] sm:$0xff]
      %v1590 = vld [vmem:[%s1571 + $0xd8] sm:$0xff]
      %v1591 = vld [vmem:[%s1571 + $0xe0] sm:$0xff]
      %v1592 = vld [vmem:[%s1571 + $0xf0] sm:$0xff]
      %v1593 = vld [vmem:[%s1571 + $0xf8] sm:$0xff]
      %v1594 = vld [vmem:[%s1571 + $0x108] sm:$0xff]
      %v1595 = vld [vmem:[%s1571 + $0x110] sm:$0xff]
      %v1596 = vld [vmem:[%s1571 + $0x120] sm:$0xff]
      %v1597 = vld [vmem:[%s1571 + $0x128] sm:$0xff]
      %v1598 = vld [vmem:[%s1571 + $0x138] sm:$0xff]
      %v1599 = vld [vmem:[%s1571 + $0x140] sm:$0xff]
      %v1600 = vld [vmem:[%s1571 + $0x150] sm:$0xff]
      %v1601 = vld [vmem:[%s1571 + $0x158] sm:$0xff]
      %v1602 = vld [vmem:[%s1571 + $0x168] sm:$0xff]
      %v1603 = vld [vmem:[%s1571 + $0x170] sm:$0xff]
      %1636 = vrot.lane.b32.xlu0 %v1572, 48
      %v1637 = vpop.permute.xlu0 %1636
      %1638 = vrot.lane.b32.xlu0 %v1573, 48
      %v1639 = vpop.permute.xlu0 %1638
      %1640 = vrot.lane.b32.xlu0 %v1574, 48
      %v1641 = vpop.permute.xlu0 %1640
      %1642 = vrot.lane.b32.xlu0 %v1575, 48
      %v1643 = vpop.permute.xlu0 %1642
      %1644 = vrot.lane.b32.xlu0 %v1576, 48
      %v1645 = vpop.permute.xlu0 %1644
      %1646 = vrot.lane.b32.xlu0 %v1577, 48
      %v1647 = vpop.permute.xlu0 %1646
      %1648 = vrot.lane.b32.xlu0 %v1578, 48
      %v1649 = vpop.permute.xlu0 %1648
      %1650 = vrot.lane.b32.xlu0 %v1579, 48
      %v1651 = vpop.permute.xlu0 %1650
      %1652 = vrot.lane.b32.xlu0 %v1580, 48
      %v1653 = vpop.permute.xlu0 %1652
      %1654 = vrot.lane.b32.xlu0 %v1581, 48
      %v1655 = vpop.permute.xlu0 %1654
      %1656 = vrot.lane.b32.xlu0 %v1582, 48
      %v1657 = vpop.permute.xlu0 %1656
      %1658 = vrot.lane.b32.xlu0 %v1583, 48
      %v1659 = vpop.permute.xlu0 %1658
      %1660 = vrot.lane.b32.xlu0 %v1584, 48
      %v1661 = vpop.permute.xlu0 %1660
      %1662 = vrot.lane.b32.xlu0 %v1585, 48
      %v1663 = vpop.permute.xlu0 %1662
      %1664 = vrot.lane.b32.xlu0 %v1586, 48
      %v1665 = vpop.permute.xlu0 %1664
      %1666 = vrot.lane.b32.xlu0 %v1587, 48
      %v1667 = vpop.permute.xlu0 %1666
      %1668 = vrot.lane.b32.xlu0 %v1588, 48
      %v1669 = vpop.permute.xlu0 %1668
      %1670 = vrot.lane.b32.xlu0 %v1589, 48
      %v1671 = vpop.permute.xlu0 %1670
      %1672 = vrot.lane.b32.xlu0 %v1590, 48
      %v1673 = vpop.permute.xlu0 %1672
      %1674 = vrot.lane.b32.xlu0 %v1591, 48
      %v1675 = vpop.permute.xlu0 %1674
      %1676 = vrot.lane.b32.xlu0 %v1592, 48
      %v1677 = vpop.permute.xlu0 %1676
      %1678 = vrot.lane.b32.xlu0 %v1593, 48
      %v1679 = vpop.permute.xlu0 %1678
      %1680 = vrot.lane.b32.xlu0 %v1594, 48
      %v1681 = vpop.permute.xlu0 %1680
      %1682 = vrot.lane.b32.xlu0 %v1595, 48
      %v1683 = vpop.permute.xlu0 %1682
      %1684 = vrot.lane.b32.xlu0 %v1596, 48
      %v1685 = vpop.permute.xlu0 %1684
      %1686 = vrot.lane.b32.xlu0 %v1597, 48
      %v1687 = vpop.permute.xlu0 %1686
      %1688 = vrot.lane.b32.xlu0 %v1598, 48
      %v1689 = vpop.permute.xlu0 %1688
      %1690 = vrot.lane.b32.xlu0 %v1599, 48
      %v1691 = vpop.permute.xlu0 %1690
      %1692 = vrot.lane.b32.xlu0 %v1600, 48
      %v1693 = vpop.permute.xlu0 %1692
      %1694 = vrot.lane.b32.xlu0 %v1601, 48
      %v1695 = vpop.permute.xlu0 %1694
      %1696 = vrot.lane.b32.xlu0 %v1602, 48
      %v1697 = vpop.permute.xlu0 %1696
      %1698 = vrot.lane.b32.xlu0 %v1603, 48
      %v1699 = vpop.permute.xlu0 %1698
      %vm1732 = vcmask 458112
      %1733 = vst.msk [vmem:[#allocation3] sm:$0xff] %vm1732, %v1637
      %1734 = vst.msk [vmem:[#allocation3 + $0x8] sm:$0xff] %vm1732, %v1639
      %1735 = vst.msk [vmem:[#allocation3 + $0x10] sm:$0xff] %vm1732, %v1641
      %1736 = vst.msk [vmem:[#allocation3 + $0x18] sm:$0xff] %vm1732, %v1643
      %1737 = vst.msk [vmem:[#allocation3 + $0x20] sm:$0xff] %vm1732, %v1645
      %1738 = vst.msk [vmem:[#allocation3 + $0x28] sm:$0xff] %vm1732, %v1647
      %1739 = vst.msk [vmem:[#allocation3 + $0x30] sm:$0xff] %vm1732, %v1649
      %1740 = vst.msk [vmem:[#allocation3 + $0x38] sm:$0xff] %vm1732, %v1651
      %1741 = vst.msk [vmem:[#allocation3 + $0x40] sm:$0xff] %vm1732, %v1653
      %1742 = vst.msk [vmem:[#allocation3 + $0x48] sm:$0xff] %vm1732, %v1655
      %1743 = vst.msk [vmem:[#allocation3 + $0x50] sm:$0xff] %vm1732, %v1657
      %1744 = vst.msk [vmem:[#allocation3 + $0x58] sm:$0xff] %vm1732, %v1659
      %1745 = vst.msk [vmem:[#allocation3 + $0x60] sm:$0xff] %vm1732, %v1661
      %1746 = vst.msk [vmem:[#allocation3 + $0x68] sm:$0xff] %vm1732, %v1663
      %1747 = vst.msk [vmem:[#allocation3 + $0x70] sm:$0xff] %vm1732, %v1665
      %1748 = vst.msk [vmem:[#allocation3 + $0x78] sm:$0xff] %vm1732, %v1667
      %1749 = vst.msk [vmem:[#allocation3 + $0x80] sm:$0xff] %vm1732, %v1669
      %1750 = vst.msk [vmem:[#allocation3 + $0x88] sm:$0xff] %vm1732, %v1671
      %1751 = vst.msk [vmem:[#allocation3 + $0x90] sm:$0xff] %vm1732, %v1673
      %1752 = vst.msk [vmem:[#allocation3 + $0x98] sm:$0xff] %vm1732, %v1675
      %1753 = vst.msk [vmem:[#allocation3 + $0xa0] sm:$0xff] %vm1732, %v1677
      %1754 = vst.msk [vmem:[#allocation3 + $0xa8] sm:$0xff] %vm1732, %v1679
      %1755 = vst.msk [vmem:[#allocation3 + $0xb0] sm:$0xff] %vm1732, %v1681
      %1756 = vst.msk [vmem:[#allocation3 + $0xb8] sm:$0xff] %vm1732, %v1683
      %1757 = vst.msk [vmem:[#allocation3 + $0xc0] sm:$0xff] %vm1732, %v1685
      %1758 = vst.msk [vmem:[#allocation3 + $0xc8] sm:$0xff] %vm1732, %v1687
      %1759 = vst.msk [vmem:[#allocation3 + $0xd0] sm:$0xff] %vm1732, %v1689
      %1760 = vst.msk [vmem:[#allocation3 + $0xd8] sm:$0xff] %vm1732, %v1691
      %1761 = vst.msk [vmem:[#allocation3 + $0xe0] sm:$0xff] %vm1732, %v1693
      %1762 = vst.msk [vmem:[#allocation3 + $0xe8] sm:$0xff] %vm1732, %v1695
      %1763 = vst.msk [vmem:[#allocation3 + $0xf0] sm:$0xff] %vm1732, %v1697
      %1764 = vst.msk [vmem:[#allocation3 + $0xf8] sm:$0xff] %vm1732, %v1699
      %v1765 = vld [vmem:[%s1571 + $0x1] sm:$0xff]
      %v1766 = vld [vmem:[%s1571 + $0x9] sm:$0xff]
      %v1767 = vld [vmem:[%s1571 + $0x19] sm:$0xff]
      %v1768 = vld [vmem:[%s1571 + $0x21] sm:$0xff]
      %v1769 = vld [vmem:[%s1571 + $0x31] sm:$0xff]
      %v1770 = vld [vmem:[%s1571 + $0x39] sm:$0xff]
      %v1771 = vld [vmem:[%s1571 + $0x49] sm:$0xff]
      %v1772 = vld [vmem:[%s1571 + $0x51] sm:$0xff]
      %v1773 = vld [vmem:[%s1571 + $0x61] sm:$0xff]
      %v1774 = vld [vmem:[%s1571 + $0x69] sm:$0xff]
      %v1775 = vld [vmem:[%s1571 + $0x79] sm:$0xff]
      %v1776 = vld [vmem:[%s1571 + $0x81] sm:$0xff]
      %v1777 = vld [vmem:[%s1571 + $0x91] sm:$0xff]
      %v1778 = vld [vmem:[%s1571 + $0x99] sm:$0xff]
      %v1779 = vld [vmem:[%s1571 + $0xa9] sm:$0xff]
      %v1780 = vld [vmem:[%s1571 + $0xb1] sm:$0xff]
      %v1781 = vld [vmem:[%s1571 + $0xc1] sm:$0xff]
      %v1782 = vld [vmem:[%s1571 + $0xc9] sm:$0xff]
      %v1783 = vld [vmem:[%s1571 + $0xd9] sm:$0xff]
      %v1784 = vld [vmem:[%s1571 + $0xe1] sm:$0xff]
      %v1785 = vld [vmem:[%s1571 + $0xf1] sm:$0xff]
      %v1786 = vld [vmem:[%s1571 + $0xf9] sm:$0xff]
      %v1787 = vld [vmem:[%s1571 + $0x109] sm:$0xff]
      %v1788 = vld [vmem:[%s1571 + $0x111] sm:$0xff]
      %v1789 = vld [vmem:[%s1571 + $0x121] sm:$0xff]
      %v1790 = vld [vmem:[%s1571 + $0x129] sm:$0xff]
      %v1791 = vld [vmem:[%s1571 + $0x139] sm:$0xff]
      %v1792 = vld [vmem:[%s1571 + $0x141] sm:$0xff]
      %v1793 = vld [vmem:[%s1571 + $0x151] sm:$0xff]
      %v1794 = vld [vmem:[%s1571 + $0x159] sm:$0xff]
      %v1795 = vld [vmem:[%s1571 + $0x169] sm:$0xff]
      %v1796 = vld [vmem:[%s1571 + $0x171] sm:$0xff]
      %1829 = vrot.lane.b32.xlu0 %v1765, 56
      %v1830 = vpop.permute.xlu0 %1829
      %1831 = vrot.lane.b32.xlu0 %v1766, 56
      %v1832 = vpop.permute.xlu0 %1831
      %1833 = vrot.lane.b32.xlu0 %v1767, 56
      %v1834 = vpop.permute.xlu0 %1833
      %1835 = vrot.lane.b32.xlu0 %v1768, 56
      %v1836 = vpop.permute.xlu0 %1835
      %1837 = vrot.lane.b32.xlu0 %v1769, 56
      %v1838 = vpop.permute.xlu0 %1837
      %1839 = vrot.lane.b32.xlu0 %v1770, 56
      %v1840 = vpop.permute.xlu0 %1839
      %1841 = vrot.lane.b32.xlu0 %v1771, 56
      %v1842 = vpop.permute.xlu0 %1841
      %1843 = vrot.lane.b32.xlu0 %v1772, 56
      %v1844 = vpop.permute.xlu0 %1843
      %1845 = vrot.lane.b32.xlu0 %v1773, 56
      %v1846 = vpop.permute.xlu0 %1845
      %1847 = vrot.lane.b32.xlu0 %v1774, 56
      %v1848 = vpop.permute.xlu0 %1847
      %1849 = vrot.lane.b32.xlu0 %v1775, 56
      %v1850 = vpop.permute.xlu0 %1849
      %1851 = vrot.lane.b32.xlu0 %v1776, 56
      %v1852 = vpop.permute.xlu0 %1851
      %1853 = vrot.lane.b32.xlu0 %v1777, 56
      %v1854 = vpop.permute.xlu0 %1853
      %1855 = vrot.lane.b32.xlu0 %v1778, 56
      %v1856 = vpop.permute.xlu0 %1855
      %1857 = vrot.lane.b32.xlu0 %v1779, 56
      %v1858 = vpop.permute.xlu0 %1857
      %1859 = vrot.lane.b32.xlu0 %v1780, 56
      %v1860 = vpop.permute.xlu0 %1859
      %1861 = vrot.lane.b32.xlu0 %v1781, 56
      %v1862 = vpop.permute.xlu0 %1861
      %1863 = vrot.lane.b32.xlu0 %v1782, 56
      %v1864 = vpop.permute.xlu0 %1863
      %1865 = vrot.lane.b32.xlu0 %v1783, 56
      %v1866 = vpop.permute.xlu0 %1865
      %1867 = vrot.lane.b32.xlu0 %v1784, 56
      %v1868 = vpop.permute.xlu0 %1867
      %1869 = vrot.lane.b32.xlu0 %v1785, 56
      %v1870 = vpop.permute.xlu0 %1869
      %1871 = vrot.lane.b32.xlu0 %v1786, 56
      %v1872 = vpop.permute.xlu0 %1871
      %1873 = vrot.lane.b32.xlu0 %v1787, 56
      %v1874 = vpop.permute.xlu0 %1873
      %1875 = vrot.lane.b32.xlu0 %v1788, 56
      %v1876 = vpop.permute.xlu0 %1875
      %1877 = vrot.lane.b32.xlu0 %v1789, 56
      %v1878 = vpop.permute.xlu0 %1877
      %1879 = vrot.lane.b32.xlu0 %v1790, 56
      %v1880 = vpop.permute.xlu0 %1879
      %1881 = vrot.lane.b32.xlu0 %v1791, 56
      %v1882 = vpop.permute.xlu0 %1881
      %1883 = vrot.lane.b32.xlu0 %v1792, 56
      %v1884 = vpop.permute.xlu0 %1883
      %1885 = vrot.lane.b32.xlu0 %v1793, 56
      %v1886 = vpop.permute.xlu0 %1885
      %1887 = vrot.lane.b32.xlu0 %v1794, 56
      %v1888 = vpop.permute.xlu0 %1887
      %1889 = vrot.lane.b32.xlu0 %v1795, 56
      %v1890 = vpop.permute.xlu0 %1889
      %1891 = vrot.lane.b32.xlu0 %v1796, 56
      %v1892 = vpop.permute.xlu0 %1891
      %vm1925 = vcmask 523712
      %1926 = vst.msk [vmem:[#allocation3] sm:$0xff] %vm1925, %v1830
      %1927 = vst.msk [vmem:[#allocation3 + $0x8] sm:$0xff] %vm1925, %v1832
      %1928 = vst.msk [vmem:[#allocation3 + $0x10] sm:$0xff] %vm1925, %v1834
      %1929 = vst.msk [vmem:[#allocation3 + $0x18] sm:$0xff] %vm1925, %v1836
      %1930 = vst.msk [vmem:[#allocation3 + $0x20] sm:$0xff] %vm1925, %v1838
      %1931 = vst.msk [vmem:[#allocation3 + $0x28] sm:$0xff] %vm1925, %v1840
      %1932 = vst.msk [vmem:[#allocation3 + $0x30] sm:$0xff] %vm1925, %v1842
      %1933 = vst.msk [vmem:[#allocation3 + $0x38] sm:$0xff] %vm1925, %v1844
      %1934 = vst.msk [vmem:[#allocation3 + $0x40] sm:$0xff] %vm1925, %v1846
      %1935 = vst.msk [vmem:[#allocation3 + $0x48] sm:$0xff] %vm1925, %v1848
      %1936 = vst.msk [vmem:[#allocation3 + $0x50] sm:$0xff] %vm1925, %v1850
      %1937 = vst.msk [vmem:[#allocation3 + $0x58] sm:$0xff] %vm1925, %v1852
      %1938 = vst.msk [vmem:[#allocation3 + $0x60] sm:$0xff] %vm1925, %v1854
      %1939 = vst.msk [vmem:[#allocation3 + $0x68] sm:$0xff] %vm1925, %v1856
      %1940 = vst.msk [vmem:[#allocation3 + $0x70] sm:$0xff] %vm1925, %v1858
      %1941 = vst.msk [vmem:[#allocation3 + $0x78] sm:$0xff] %vm1925, %v1860
      %1942 = vst.msk [vmem:[#allocation3 + $0x80] sm:$0xff] %vm1925, %v1862
      %1943 = vst.msk [vmem:[#allocation3 + $0x88] sm:$0xff] %vm1925, %v1864
      %1944 = vst.msk [vmem:[#allocation3 + $0x90] sm:$0xff] %vm1925, %v1866
      %1945 = vst.msk [vmem:[#allocation3 + $0x98] sm:$0xff] %vm1925, %v1868
      %1946 = vst.msk [vmem:[#allocation3 + $0xa0] sm:$0xff] %vm1925, %v1870
      %1947 = vst.msk [vmem:[#allocation3 + $0xa8] sm:$0xff] %vm1925, %v1872
      %1948 = vst.msk [vmem:[#allocation3 + $0xb0] sm:$0xff] %vm1925, %v1874
      %1949 = vst.msk [vmem:[#allocation3 + $0xb8] sm:$0xff] %vm1925, %v1876
      %1950 = vst.msk [vmem:[#allocation3 + $0xc0] sm:$0xff] %vm1925, %v1878
      %1951 = vst.msk [vmem:[#allocation3 + $0xc8] sm:$0xff] %vm1925, %v1880
      %1952 = vst.msk [vmem:[#allocation3 + $0xd0] sm:$0xff] %vm1925, %v1882
      %1953 = vst.msk [vmem:[#allocation3 + $0xd8] sm:$0xff] %vm1925, %v1884
      %1954 = vst.msk [vmem:[#allocation3 + $0xe0] sm:$0xff] %vm1925, %v1886
      %1955 = vst.msk [vmem:[#allocation3 + $0xe8] sm:$0xff] %vm1925, %v1888
      %1956 = vst.msk [vmem:[#allocation3 + $0xf0] sm:$0xff] %vm1925, %v1890
      %1957 = vst.msk [vmem:[#allocation3 + $0xf8] sm:$0xff] %vm1925, %v1892
      %v1958 = vld [vmem:[%s1571 + $0x2] sm:$0xff]
      %v1959 = vld [vmem:[%s1571 + $0xa] sm:$0xff]
      %v1960 = vld [vmem:[%s1571 + $0x1a] sm:$0xff]
      %v1961 = vld [vmem:[%s1571 + $0x22] sm:$0xff]
      %v1962 = vld [vmem:[%s1571 + $0x32] sm:$0xff]
      %v1963 = vld [vmem:[%s1571 + $0x3a] sm:$0xff]
      %v1964 = vld [vmem:[%s1571 + $0x4a] sm:$0xff]
      %v1965 = vld [vmem:[%s1571 + $0x52] sm:$0xff]
      %v1966 = vld [vmem:[%s1571 + $0x62] sm:$0xff]
      %v1967 = vld [vmem:[%s1571 + $0x6a] sm:$0xff]
      %v1968 = vld [vmem:[%s1571 + $0x7a] sm:$0xff]
      %v1969 = vld [vmem:[%s1571 + $0x82] sm:$0xff]
      %v1970 = vld [vmem:[%s1571 + $0x92] sm:$0xff]
      %v1971 = vld [vmem:[%s1571 + $0x9a] sm:$0xff]
      %v1972 = vld [vmem:[%s1571 + $0xaa] sm:$0xff]
      %v1973 = vld [vmem:[%s1571 + $0xb2] sm:$0xff]
      %v1974 = vld [vmem:[%s1571 + $0xc2] sm:$0xff]
      %v1975 = vld [vmem:[%s1571 + $0xca] sm:$0xff]
      %v1976 = vld [vmem:[%s1571 + $0xda] sm:$0xff]
      %v1977 = vld [vmem:[%s1571 + $0xe2] sm:$0xff]
      %v1978 = vld [vmem:[%s1571 + $0xf2] sm:$0xff]
      %v1979 = vld [vmem:[%s1571 + $0xfa] sm:$0xff]
      %v1980 = vld [vmem:[%s1571 + $0x10a] sm:$0xff]
      %v1981 = vld [vmem:[%s1571 + $0x112] sm:$0xff]
      %v1982 = vld [vmem:[%s1571 + $0x122] sm:$0xff]
      %v1983 = vld [vmem:[%s1571 + $0x12a] sm:$0xff]
      %v1984 = vld [vmem:[%s1571 + $0x13a] sm:$0xff]
      %v1985 = vld [vmem:[%s1571 + $0x142] sm:$0xff]
      %v1986 = vld [vmem:[%s1571 + $0x152] sm:$0xff]
      %v1987 = vld [vmem:[%s1571 + $0x15a] sm:$0xff]
      %v1988 = vld [vmem:[%s1571 + $0x16a] sm:$0xff]
      %v1989 = vld [vmem:[%s1571 + $0x172] sm:$0xff]
      %2022 = vrot.lane.b32.xlu0 %v1958, 64
      %v2023 = vpop.permute.xlu0 %2022
      %2024 = vrot.lane.b32.xlu0 %v1959, 64
      %v2025 = vpop.permute.xlu0 %2024
      %2026 = vrot.lane.b32.xlu0 %v1960, 64
      %v2027 = vpop.permute.xlu0 %2026
      %2028 = vrot.lane.b32.xlu0 %v1961, 64
      %v2029 = vpop.permute.xlu0 %2028
      %2030 = vrot.lane.b32.xlu0 %v1962, 64
      %v2031 = vpop.permute.xlu0 %2030
      %2032 = vrot.lane.b32.xlu0 %v1963, 64
      %v2033 = vpop.permute.xlu0 %2032
      %2034 = vrot.lane.b32.xlu0 %v1964, 64
      %v2035 = vpop.permute.xlu0 %2034
      %2036 = vrot.lane.b32.xlu0 %v1965, 64
      %v2037 = vpop.permute.xlu0 %2036
      %2038 = vrot.lane.b32.xlu0 %v1966, 64
      %v2039 = vpop.permute.xlu0 %2038
      %2040 = vrot.lane.b32.xlu0 %v1967, 64
      %v2041 = vpop.permute.xlu0 %2040
      %2042 = vrot.lane.b32.xlu0 %v1968, 64
      %v2043 = vpop.permute.xlu0 %2042
      %2044 = vrot.lane.b32.xlu0 %v1969, 64
      %v2045 = vpop.permute.xlu0 %2044
      %2046 = vrot.lane.b32.xlu0 %v1970, 64
      %v2047 = vpop.permute.xlu0 %2046
      %2048 = vrot.lane.b32.xlu0 %v1971, 64
      %v2049 = vpop.permute.xlu0 %2048
      %2050 = vrot.lane.b32.xlu0 %v1972, 64
      %v2051 = vpop.permute.xlu0 %2050
      %2052 = vrot.lane.b32.xlu0 %v1973, 64
      %v2053 = vpop.permute.xlu0 %2052
      %2054 = vrot.lane.b32.xlu0 %v1974, 64
      %v2055 = vpop.permute.xlu0 %2054
      %2056 = vrot.lane.b32.xlu0 %v1975, 64
      %v2057 = vpop.permute.xlu0 %2056
      %2058 = vrot.lane.b32.xlu0 %v1976, 64
      %v2059 = vpop.permute.xlu0 %2058
      %2060 = vrot.lane.b32.xlu0 %v1977, 64
      %v2061 = vpop.permute.xlu0 %2060
      %2062 = vrot.lane.b32.xlu0 %v1978, 64
      %v2063 = vpop.permute.xlu0 %2062
      %2064 = vrot.lane.b32.xlu0 %v1979, 64
      %v2065 = vpop.permute.xlu0 %2064
      %2066 = vrot.lane.b32.xlu0 %v1980, 64
      %v2067 = vpop.permute.xlu0 %2066
      %2068 = vrot.lane.b32.xlu0 %v1981, 64
      %v2069 = vpop.permute.xlu0 %2068
      %2070 = vrot.lane.b32.xlu0 %v1982, 64
      %v2071 = vpop.permute.xlu0 %2070
      %2072 = vrot.lane.b32.xlu0 %v1983, 64
      %v2073 = vpop.permute.xlu0 %2072
      %2074 = vrot.lane.b32.xlu0 %v1984, 64
      %v2075 = vpop.permute.xlu0 %2074
      %2076 = vrot.lane.b32.xlu0 %v1985, 64
      %v2077 = vpop.permute.xlu0 %2076
      %2078 = vrot.lane.b32.xlu0 %v1986, 64
      %v2079 = vpop.permute.xlu0 %2078
      %2080 = vrot.lane.b32.xlu0 %v1987, 64
      %v2081 = vpop.permute.xlu0 %2080
      %2082 = vrot.lane.b32.xlu0 %v1988, 64
      %v2083 = vpop.permute.xlu0 %2082
      %2084 = vrot.lane.b32.xlu0 %v1989, 64
      %v2085 = vpop.permute.xlu0 %2084
      %vm2118 = vcmask 589312
      %2119 = vst.msk [vmem:[#allocation3] sm:$0xff] %vm2118, %v2023
      %2120 = vst.msk [vmem:[#allocation3 + $0x8] sm:$0xff] %vm2118, %v2025
      %2121 = vst.msk [vmem:[#allocation3 + $0x10] sm:$0xff] %vm2118, %v2027
      %2122 = vst.msk [vmem:[#allocation3 + $0x18] sm:$0xff] %vm2118, %v2029
      %2123 = vst.msk [vmem:[#allocation3 + $0x20] sm:$0xff] %vm2118, %v2031
      %2124 = vst.msk [vmem:[#allocation3 + $0x28] sm:$0xff] %vm2118, %v2033
      %2125 = vst.msk [vmem:[#allocation3 + $0x30] sm:$0xff] %vm2118, %v2035
      %2126 = vst.msk [vmem:[#allocation3 + $0x38] sm:$0xff] %vm2118, %v2037
      %2127 = vst.msk [vmem:[#allocation3 + $0x40] sm:$0xff] %vm2118, %v2039
      %2128 = vst.msk [vmem:[#allocation3 + $0x48] sm:$0xff] %vm2118, %v2041
      %2129 = vst.msk [vmem:[#allocation3 + $0x50] sm:$0xff] %vm2118, %v2043
      %2130 = vst.msk [vmem:[#allocation3 + $0x58] sm:$0xff] %vm2118, %v2045
      %2131 = vst.msk [vmem:[#allocation3 + $0x60] sm:$0xff] %vm2118, %v2047
      %2132 = vst.msk [vmem:[#allocation3 + $0x68] sm:$0xff] %vm2118, %v2049
      %2133 = vst.msk [vmem:[#allocation3 + $0x70] sm:$0xff] %vm2118, %v2051
      %2134 = vst.msk [vmem:[#allocation3 + $0x78] sm:$0xff] %vm2118, %v2053
      %2135 = vst.msk [vmem:[#allocation3 + $0x80] sm:$0xff] %vm2118, %v2055
      %2136 = vst.msk [vmem:[#allocation3 + $0x88] sm:$0xff] %vm2118, %v2057
      %2137 = vst.msk [vmem:[#allocation3 + $0x90] sm:$0xff] %vm2118, %v2059
      %2138 = vst.msk [vmem:[#allocation3 + $0x98] sm:$0xff] %vm2118, %v2061
      %2139 = vst.msk [vmem:[#allocation3 + $0xa0] sm:$0xff] %vm2118, %v2063
      %2140 = vst.msk [vmem:[#allocation3 + $0xa8] sm:$0xff] %vm2118, %v2065
      %2141 = vst.msk [vmem:[#allocation3 + $0xb0] sm:$0xff] %vm2118, %v2067
      %2142 = vst.msk [vmem:[#allocation3 + $0xb8] sm:$0xff] %vm2118, %v2069
      %2143 = vst.msk [vmem:[#allocation3 + $0xc0] sm:$0xff] %vm2118, %v2071
      %2144 = vst.msk [vmem:[#allocation3 + $0xc8] sm:$0xff] %vm2118, %v2073
      %2145 = vst.msk [vmem:[#allocation3 + $0xd0] sm:$0xff] %vm2118, %v2075
      %2146 = vst.msk [vmem:[#allocation3 + $0xd8] sm:$0xff] %vm2118, %v2077
      %2147 = vst.msk [vmem:[#allocation3 + $0xe0] sm:$0xff] %vm2118, %v2079
      %2148 = vst.msk [vmem:[#allocation3 + $0xe8] sm:$0xff] %vm2118, %v2081
      %2149 = vst.msk [vmem:[#allocation3 + $0xf0] sm:$0xff] %vm2118, %v2083
      %2150 = vst.msk [vmem:[#allocation3 + $0xf8] sm:$0xff] %vm2118, %v2085
      %v2151 = vld [vmem:[#allocation3] sm:$0xff]
      %v2152 = vld [vmem:[#allocation3 + $0x8] sm:$0xff]
      %v2153 = vld [vmem:[#allocation3 + $0x10] sm:$0xff]
      %v2154 = vld [vmem:[#allocation3 + $0x18] sm:$0xff]
      %v2155 = vld [vmem:[#allocation3 + $0x20] sm:$0xff]
      %v2156 = vld [vmem:[#allocation3 + $0x28] sm:$0xff]
      %v2157 = vld [vmem:[#allocation3 + $0x30] sm:$0xff]
      %v2158 = vld [vmem:[#allocation3 + $0x38] sm:$0xff]
      %v2159 = vld [vmem:[#allocation3 + $0x40] sm:$0xff]
      %v2160 = vld [vmem:[#allocation3 + $0x48] sm:$0xff]
      %v2161 = vld [vmem:[#allocation3 + $0x50] sm:$0xff]
      %v2162 = vld [vmem:[#allocation3 + $0x58] sm:$0xff]
      %v2163 = vld [vmem:[#allocation3 + $0x60] sm:$0xff]
      %v2164 = vld [vmem:[#allocation3 + $0x68] sm:$0xff]
      %v2165 = vld [vmem:[#allocation3 + $0x70] sm:$0xff]
      %v2166 = vld [vmem:[#allocation3 + $0x78] sm:$0xff]
      %v2167 = vld [vmem:[#allocation3 + $0x80] sm:$0xff]
      %v2168 = vld [vmem:[#allocation3 + $0x88] sm:$0xff]
      %v2169 = vld [vmem:[#allocation3 + $0x90] sm:$0xff]
      %v2170 = vld [vmem:[#allocation3 + $0x98] sm:$0xff]
      %v2171 = vld [vmem:[#allocation3 + $0xa0] sm:$0xff]
      %v2172 = vld [vmem:[#allocation3 + $0xa8] sm:$0xff]
      %v2173 = vld [vmem:[#allocation3 + $0xb0] sm:$0xff]
      %v2174 = vld [vmem:[#allocation3 + $0xb8] sm:$0xff]
      %v2175 = vld [vmem:[#allocation3 + $0xc0] sm:$0xff]
      %v2176 = vld [vmem:[#allocation3 + $0xc8] sm:$0xff]
      %v2177 = vld [vmem:[#allocation3 + $0xd0] sm:$0xff]
      %v2178 = vld [vmem:[#allocation3 + $0xd8] sm:$0xff]
      %v2179 = vld [vmem:[#allocation3 + $0xe0] sm:$0xff]
      %v2180 = vld [vmem:[#allocation3 + $0xe8] sm:$0xff]
      %v2181 = vld [vmem:[#allocation3 + $0xf0] sm:$0xff]
      %v2182 = vld [vmem:[#allocation3 + $0xf8] sm:$0xff]
      %v2183 = vld [vmem:[%s1] sm:$0xff]
      %v2184 = vld [vmem:[%s1 + $0x8] sm:$0xff]
      %v2185 = vld [vmem:[%s1 + $0x10] sm:$0xff]
      %v2186 = vld [vmem:[%s1 + $0x18] sm:$0xff]
      %v2187 = vld [vmem:[%s1 + $0x20] sm:$0xff]
      %v2188 = vld [vmem:[%s1 + $0x28] sm:$0xff]
      %v2189 = vld [vmem:[%s1 + $0x30] sm:$0xff]
      %v2190 = vld [vmem:[%s1 + $0x38] sm:$0xff]
      %v2191 = vld [vmem:[%s1 + $0x40] sm:$0xff]
      %v2192 = vld [vmem:[%s2] sm:$0x1]
      %v2194 = vlaneseq
      %v2195 = vshrl.u32 %v2194, 7
      %v2196 = vsub.s32 0, %v2195
      %v2197 = vrot.slane %v2192, %v2196
      %vm2199 = vcmask 588800
      %v2201 = vsel %vm2199, %v2151, 0
      %v2204 = vsel %vm2199, %v2152, 0
      %v2207 = vsel %vm2199, %v2153, 0
      %v2210 = vsel %vm2199, %v2154, 0
      %v2213 = vsel %vm2199, %v2155, 0
      %v2216 = vsel %vm2199, %v2156, 0
      %v2219 = vsel %vm2199, %v2157, 0
      %v2222 = vsel %vm2199, %v2158, 0
      %v2225 = vsel %vm2199, %v2159, 0
      %v2228 = vsel %vm2199, %v2160, 0
      %v2231 = vsel %vm2199, %v2161, 0
      %v2234 = vsel %vm2199, %v2162, 0
      %v2237 = vsel %vm2199, %v2163, 0
      %v2240 = vsel %vm2199, %v2164, 0
      %v2243 = vsel %vm2199, %v2165, 0
      %v2246 = vsel %vm2199, %v2166, 0
      %v2249 = vsel %vm2199, %v2167, 0
      %v2252 = vsel %vm2199, %v2168, 0
      %v2255 = vsel %vm2199, %v2169, 0
      %v2258 = vsel %vm2199, %v2170, 0
      %v2261 = vsel %vm2199, %v2171, 0
      %v2264 = vsel %vm2199, %v2172, 0
      %v2267 = vsel %vm2199, %v2173, 0
      %v2270 = vsel %vm2199, %v2174, 0
      %v2273 = vsel %vm2199, %v2175, 0
      %v2276 = vsel %vm2199, %v2176, 0
      %v2279 = vsel %vm2199, %v2177, 0
      %v2282 = vsel %vm2199, %v2178, 0
      %v2285 = vsel %vm2199, %v2179, 0
      %v2288 = vsel %vm2199, %v2180, 0
      %v2291 = vsel %vm2199, %v2181, 0
      %v2294 = vsel %vm2199, %v2182, 0
      %2296 = vmatprep.subr.mxu0 0.0
      %2297 = vmatpush1.msra.mxu0 0.0
      %2298 = vmatprep.subr.mxu0 0.0
      %2299 = vmatpush1.msra.mxu0 0.0
      %2300 = vmatprep.subr.mxu0 0.0
      %2301 = vmatpush1.msra.mxu0 0.0
      %2302 = vmatprep.subr.mxu0 0.0
      %2303 = vmatpush1.msra.mxu0 0.0
      %2304 = vmatprep.subr.mxu0 0.0
      %2305 = vmatpush1.msra.mxu0 0.0
      %2306 = vmatprep.subr.mxu0 0.0
      %2307 = vmatpush1.msra.mxu0 0.0
      %2308 = vmatprep.subr.mxu0 0.0
      %2309 = vmatpush1.msra.mxu0 0.0
      %2310 = vmatprep.subr.mxu0 0.0
      %2311 = vmatpush1.msra.mxu0 %v2191
      %2312 = vmatprep.subr.mxu0 0.0
      %2313 = vmatpush1.msra.mxu0 %v2190
      %2314 = vmatprep.subr.mxu0 0.0
      %2315 = vmatpush1.msra.mxu0 %v2189
      %2316 = vmatprep.subr.mxu0 0.0
      %2317 = vmatpush1.msra.mxu0 %v2188
      %2318 = vmatprep.subr.mxu0 0.0
      %2319 = vmatpush1.msra.mxu0 %v2187
      %2320 = vmatprep.subr.mxu0 0.0
      %2321 = vmatpush1.msra.mxu0 %v2186
      %2322 = vmatprep.subr.mxu0 0.0
      %2323 = vmatpush1.msra.mxu0 %v2185
      %2324 = vmatprep.subr.mxu0 0.0
      %2325 = vmatpush1.msra.mxu0 %v2184
      %2326 = vmatprep.subr.mxu0 0.0
      %2327 = vmatpush1.msra.mxu0 %v2183
      %2328 = vmatprep.subr.mxu0 0.0
      %2329 = vmatpush2.msra.mxu0 0.0
      %2330 = vmatprep.subr.mxu0 0.0
      %2331 = vmatpush2.msra.mxu0 0.0
      %2332 = vmatprep.subr.mxu0 0.0
      %2333 = vmatpush2.msra.mxu0 0.0
      %2334 = vmatprep.subr.mxu0 0.0
      %2335 = vmatpush2.msra.mxu0 0.0
      %2336 = vmatprep.subr.mxu0 0.0
      %2337 = vmatpush2.msra.mxu0 0.0
      %2338 = vmatprep.subr.mxu0 0.0
      %2339 = vmatpush2.msra.mxu0 0.0
      %2340 = vmatprep.subr.mxu0 0.0
      %2341 = vmatpush2.msra.mxu0 0.0
      %2342 = vmatprep.subr.mxu0 0.0
      %2343 = vmatpush2.msra.mxu0 0.0
      %2344 = vmatprep.subr.mxu0 0.0
      %2345 = vmatpush2.msra.mxu0 0.0
      %2346 = vmatprep.subr.mxu0 0.0
      %2347 = vmatpush2.msra.mxu0 0.0
      %2348 = vmatprep.subr.mxu0 0.0
      %2349 = vmatpush2.msra.mxu0 0.0
      %2350 = vmatprep.subr.mxu0 0.0
      %2351 = vmatpush2.msra.mxu0 0.0
      %2352 = vmatprep.subr.mxu0 0.0
      %2353 = vmatpush2.msra.mxu0 0.0
      %2354 = vmatprep.subr.mxu0 0.0
      %2355 = vmatpush2.msra.mxu0 0.0
      %2356 = vmatprep.subr.mxu0 0.0
      %2357 = vmatpush2.msra.mxu0 0.0
      %2358 = vmatprep.subr.mxu0 0.0
      %2359 = vmatpush2.msra.mxu0 0.0
      %2360 = vmatprep.mubr.f32.mxu0 0.0
      %2361 = vmatmul.mubr.f32.gmra.mxu0 %v2201
      %v2362 = vpop.f32.mrf.mxu0
      %v2363 = vadd.f32 %v2197, %v2362
      %v2364 = vpop.f32.mrf.mxu0
      %2365 = vmatprep.mubr.f32.mxu0 0.0
      %2366 = vmatmul.mubr.f32.gmra.mxu0 %v2204
      %v2367 = vpop.f32.mrf.mxu0
      %v2368 = vadd.f32 %v2197, %v2367
      %v2369 = vpop.f32.mrf.mxu0
      %2370 = vmatprep.mubr.f32.mxu0 0.0
      %2371 = vmatmul.mubr.f32.gmra.mxu0 %v2207
      %v2372 = vpop.f32.mrf.mxu0
      %v2373 = vadd.f32 %v2197, %v2372
      %v2374 = vpop.f32.mrf.mxu0
      %2375 = vmatprep.mubr.f32.mxu0 0.0
      %2376 = vmatmul.mubr.f32.gmra.mxu0 %v2210
      %v2377 = vpop.f32.mrf.mxu0
      %v2378 = vadd.f32 %v2197, %v2377
      %v2379 = vpop.f32.mrf.mxu0
      %2380 = vmatprep.mubr.f32.mxu0 0.0
      %2381 = vmatmul.mubr.f32.gmra.mxu0 %v2213
      %v2382 = vpop.f32.mrf.mxu0
      %v2383 = vadd.f32 %v2197, %v2382
      %v2384 = vpop.f32.mrf.mxu0
      %2385 = vmatprep.mubr.f32.mxu0 0.0
      %2386 = vmatmul.mubr.f32.gmra.mxu0 %v2216
      %v2387 = vpop.f32.mrf.mxu0
      %v2388 = vadd.f32 %v2197, %v2387
      %v2389 = vpop.f32.mrf.mxu0
      %2390 = vmatprep.mubr.f32.mxu0 0.0
      %2391 = vmatmul.mubr.f32.gmra.mxu0 %v2219
      %v2392 = vpop.f32.mrf.mxu0
      %v2393 = vadd.f32 %v2197, %v2392
      %v2394 = vpop.f32.mrf.mxu0
      %2395 = vmatprep.mubr.f32.mxu0 0.0
      %2396 = vmatmul.mubr.f32.gmra.mxu0 %v2222
      %v2397 = vpop.f32.mrf.mxu0
      %v2398 = vadd.f32 %v2197, %v2397
      %v2399 = vpop.f32.mrf.mxu0
      %2400 = vmatprep.mubr.f32.mxu0 0.0
      %2401 = vmatmul.mubr.f32.gmra.mxu0 %v2225
      %v2402 = vpop.f32.mrf.mxu0
      %v2403 = vadd.f32 %v2197, %v2402
      %v2404 = vpop.f32.mrf.mxu0
      %2405 = vmatprep.mubr.f32.mxu0 0.0
      %2406 = vmatmul.mubr.f32.gmra.mxu0 %v2228
      %v2407 = vpop.f32.mrf.mxu0
      %v2408 = vadd.f32 %v2197, %v2407
      %v2409 = vpop.f32.mrf.mxu0
      %2410 = vmatprep.mubr.f32.mxu0 0.0
      %2411 = vmatmul.mubr.f32.gmra.mxu0 %v2231
      %v2412 = vpop.f32.mrf.mxu0
      %v2413 = vadd.f32 %v2197, %v2412
      %v2414 = vpop.f32.mrf.mxu0
      %2415 = vmatprep.mubr.f32.mxu0 0.0
      %2416 = vmatmul.mubr.f32.gmra.mxu0 %v2234
      %v2417 = vpop.f32.mrf.mxu0
      %v2418 = vadd.f32 %v2197, %v2417
      %v2419 = vpop.f32.mrf.mxu0
      %2420 = vmatprep.mubr.f32.mxu0 0.0
      %2421 = vmatmul.mubr.f32.gmra.mxu0 %v2237
      %v2422 = vpop.f32.mrf.mxu0
      %v2423 = vadd.f32 %v2197, %v2422
      %v2424 = vpop.f32.mrf.mxu0
      %2425 = vmatprep.mubr.f32.mxu0 0.0
      %2426 = vmatmul.mubr.f32.gmra.mxu0 %v2240
      %v2427 = vpop.f32.mrf.mxu0
      %v2428 = vadd.f32 %v2197, %v2427
      %v2429 = vpop.f32.mrf.mxu0
      %2430 = vmatprep.mubr.f32.mxu0 0.0
      %2431 = vmatmul.mubr.f32.gmra.mxu0 %v2243
      %v2432 = vpop.f32.mrf.mxu0
      %v2433 = vadd.f32 %v2197, %v2432
      %v2434 = vpop.f32.mrf.mxu0
      %2435 = vmatprep.mubr.f32.mxu0 0.0
      %2436 = vmatmul.mubr.f32.gmra.mxu0 %v2246
      %v2437 = vpop.f32.mrf.mxu0
      %v2438 = vadd.f32 %v2197, %v2437
      %v2439 = vpop.f32.mrf.mxu0
      %2440 = vmatprep.mubr.f32.mxu0 0.0
      %2441 = vmatmul.mubr.f32.gmra.mxu0 %v2249
      %v2442 = vpop.f32.mrf.mxu0
      %v2443 = vadd.f32 %v2197, %v2442
      %v2444 = vpop.f32.mrf.mxu0
      %2445 = vmatprep.mubr.f32.mxu0 0.0
      %2446 = vmatmul.mubr.f32.gmra.mxu0 %v2252
      %v2447 = vpop.f32.mrf.mxu0
      %v2448 = vadd.f32 %v2197, %v2447
      %v2449 = vpop.f32.mrf.mxu0
      %2450 = vmatprep.mubr.f32.mxu0 0.0
      %2451 = vmatmul.mubr.f32.gmra.mxu0 %v2255
      %v2452 = vpop.f32.mrf.mxu0
      %v2453 = vadd.f32 %v2197, %v2452
      %v2454 = vpop.f32.mrf.mxu0
      %2455 = vmatprep.mubr.f32.mxu0 0.0
      %2456 = vmatmul.mubr.f32.gmra.mxu0 %v2258
      %v2457 = vpop.f32.mrf.mxu0
      %v2458 = vadd.f32 %v2197, %v2457
      %v2459 = vpop.f32.mrf.mxu0
      %2460 = vmatprep.mubr.f32.mxu0 0.0
      %2461 = vmatmul.mubr.f32.gmra.mxu0 %v2261
      %v2462 = vpop.f32.mrf.mxu0
      %v2463 = vadd.f32 %v2197, %v2462
      %v2464 = vpop.f32.mrf.mxu0
      %2465 = vmatprep.mubr.f32.mxu0 0.0
      %2466 = vmatmul.mubr.f32.gmra.mxu0 %v2264
      %v2467 = vpop.f32.mrf.mxu0
      %v2468 = vadd.f32 %v2197, %v2467
      %v2469 = vpop.f32.mrf.mxu0
      %2470 = vmatprep.mubr.f32.mxu0 0.0
      %2471 = vmatmul.mubr.f32.gmra.mxu0 %v2267
      %v2472 = vpop.f32.mrf.mxu0
      %v2473 = vadd.f32 %v2197, %v2472
      %v2474 = vpop.f32.mrf.mxu0
      %2475 = vmatprep.mubr.f32.mxu0 0.0
      %2476 = vmatmul.mubr.f32.gmra.mxu0 %v2270
      %v2477 = vpop.f32.mrf.mxu0
      %v2478 = vadd.f32 %v2197, %v2477
      %v2479 = vpop.f32.mrf.mxu0
      %2480 = vmatprep.mubr.f32.mxu0 0.0
      %2481 = vmatmul.mubr.f32.gmra.mxu0 %v2273
      %v2482 = vpop.f32.mrf.mxu0
      %v2483 = vadd.f32 %v2197, %v2482
      %v2484 = vpop.f32.mrf.mxu0
      %2485 = vmatprep.mubr.f32.mxu0 0.0
      %2486 = vmatmul.mubr.f32.gmra.mxu0 %v2276
      %v2487 = vpop.f32.mrf.mxu0
      %v2488 = vadd.f32 %v2197, %v2487
      %v2489 = vpop.f32.mrf.mxu0
      %2490 = vmatprep.mubr.f32.mxu0 0.0
      %2491 = vmatmul.mubr.f32.gmra.mxu0 %v2279
      %v2492 = vpop.f32.mrf.mxu0
      %v2493 = vadd.f32 %v2197, %v2492
      %v2494 = vpop.f32.mrf.mxu0
      %2495 = vmatprep.mubr.f32.mxu0 0.0
      %2496 = vmatmul.mubr.f32.gmra.mxu0 %v2282
      %v2497 = vpop.f32.mrf.mxu0
      %v2498 = vadd.f32 %v2197, %v2497
      %v2499 = vpop.f32.mrf.mxu0
      %2500 = vmatprep.mubr.f32.mxu0 0.0
      %2501 = vmatmul.mubr.f32.gmra.mxu0 %v2285
      %v2502 = vpop.f32.mrf.mxu0
      %v2503 = vadd.f32 %v2197, %v2502
      %v2504 = vpop.f32.mrf.mxu0
      %2505 = vmatprep.mubr.f32.mxu0 0.0
      %2506 = vmatmul.mubr.f32.gmra.mxu0 %v2288
      %v2507 = vpop.f32.mrf.mxu0
      %v2508 = vadd.f32 %v2197, %v2507
      %v2509 = vpop.f32.mrf.mxu0
      %2510 = vmatprep.mubr.f32.mxu0 0.0
      %2511 = vmatmul.mubr.f32.gmra.mxu0 %v2291
      %v2512 = vpop.f32.mrf.mxu0
      %v2513 = vadd.f32 %v2197, %v2512
      %v2514 = vpop.f32.mrf.mxu0
      %2515 = vmatprep.mubr.f32.mxu0 0.0
      %2516 = vmatmul.mubr.f32.gmra.mxu0 %v2294
      %v2517 = vpop.f32.mrf.mxu0
      %v2518 = vadd.f32 %v2197, %v2517
      %v2519 = vpop.f32.mrf.mxu0
      %2520 = vdwg.mxu0
      %v2521 = vsub.f32 0.0, %v2363
      %v2522 = vsub.f32 0.0, %v2368
      %v2523 = vsub.f32 0.0, %v2373
      %v2524 = vsub.f32 0.0, %v2378
      %v2525 = vsub.f32 0.0, %v2383
      %v2526 = vsub.f32 0.0, %v2388
      %v2527 = vsub.f32 0.0, %v2393
      %v2528 = vsub.f32 0.0, %v2398
      %v2529 = vsub.f32 0.0, %v2403
      %v2530 = vsub.f32 0.0, %v2408
      %v2531 = vsub.f32 0.0, %v2413
      %v2532 = vsub.f32 0.0, %v2418
      %v2533 = vsub.f32 0.0, %v2423
      %v2534 = vsub.f32 0.0, %v2428
      %v2535 = vsub.f32 0.0, %v2433
      %v2536 = vsub.f32 0.0, %v2438
      %v2537 = vsub.f32 0.0, %v2443
      %v2538 = vsub.f32 0.0, %v2448
      %v2539 = vsub.f32 0.0, %v2453
      %v2540 = vsub.f32 0.0, %v2458
      %v2541 = vsub.f32 0.0, %v2463
      %v2542 = vsub.f32 0.0, %v2468
      %v2543 = vsub.f32 0.0, %v2473
      %v2544 = vsub.f32 0.0, %v2478
      %v2545 = vsub.f32 0.0, %v2483
      %v2546 = vsub.f32 0.0, %v2488
      %v2547 = vsub.f32 0.0, %v2493
      %v2548 = vsub.f32 0.0, %v2498
      %v2549 = vsub.f32 0.0, %v2503
      %v2550 = vsub.f32 0.0, %v2508
      %v2551 = vsub.f32 0.0, %v2513
      %v2552 = vsub.f32 0.0, %v2518
      %v2553 = vmul.f32 %v2521, 1.442695
      %v2554 = vpow.pop %v2553
      %v2555 = vmul.f32 %v2522, 1.442695
      %v2556 = vpow.pop %v2555
      %v2557 = vmul.f32 %v2523, 1.442695
      %v2558 = vpow.pop %v2557
      %v2559 = vmul.f32 %v2524, 1.442695
      %v2560 = vpow.pop %v2559
      %v2561 = vmul.f32 %v2525, 1.442695
      %v2562 = vpow.pop %v2561
      %v2563 = vmul.f32 %v2526, 1.442695
      %v2564 = vpow.pop %v2563
      %v2565 = vmul.f32 %v2527, 1.442695
      %v2566 = vpow.pop %v2565
      %v2567 = vmul.f32 %v2528, 1.442695
      %v2568 = vpow.pop %v2567
      %v2569 = vmul.f32 %v2529, 1.442695
      %v2570 = vpow.pop %v2569
      %v2571 = vmul.f32 %v2530, 1.442695
      %v2572 = vpow.pop %v2571
      %v2573 = vmul.f32 %v2531, 1.442695
      %v2574 = vpow.pop %v2573
      %v2575 = vmul.f32 %v2532, 1.442695
      %v2576 = vpow.pop %v2575
      %v2577 = vmul.f32 %v2533, 1.442695
      %v2578 = vpow.pop %v2577
      %v2579 = vmul.f32 %v2534, 1.442695
      %v2580 = vpow.pop %v2579
      %v2581 = vmul.f32 %v2535, 1.442695
      %v2582 = vpow.pop %v2581
      %v2583 = vmul.f32 %v2536, 1.442695
      %v2584 = vpow.pop %v2583
      %v2585 = vmul.f32 %v2537, 1.442695
      %v2586 = vpow.pop %v2585
      %v2587 = vmul.f32 %v2538, 1.442695
      %v2588 = vpow.pop %v2587
      %v2589 = vmul.f32 %v2539, 1.442695
      %v2590 = vpow.pop %v2589
      %v2591 = vmul.f32 %v2540, 1.442695
      %v2592 = vpow.pop %v2591
      %v2593 = vmul.f32 %v2541, 1.442695
      %v2594 = vpow.pop %v2593
      %v2595 = vmul.f32 %v2542, 1.442695
      %v2596 = vpow.pop %v2595
      %v2597 = vmul.f32 %v2543, 1.442695
      %v2598 = vpow.pop %v2597
      %v2599 = vmul.f32 %v2544, 1.442695
      %v2600 = vpow.pop %v2599
      %v2601 = vmul.f32 %v2545, 1.442695
      %v2602 = vpow.pop %v2601
      %v2603 = vmul.f32 %v2546, 1.442695
      %v2604 = vpow.pop %v2603
      %v2605 = vmul.f32 %v2547, 1.442695
      %v2606 = vpow.pop %v2605
      %v2607 = vmul.f32 %v2548, 1.442695
      %v2608 = vpow.pop %v2607
      %v2609 = vmul.f32 %v2549, 1.442695
      %v2610 = vpow.pop %v2609
      %v2611 = vmul.f32 %v2550, 1.442695
      %v2612 = vpow.pop %v2611
      %v2613 = vmul.f32 %v2551, 1.442695
      %v2614 = vpow.pop %v2613
      %v2615 = vmul.f32 %v2552, 1.442695
      %v2616 = vpow.pop %v2615
      %v2617 = vadd.f32 %v2554, 1.0
      %v2618 = vadd.f32 %v2556, 1.0
      %v2619 = vadd.f32 %v2558, 1.0
      %v2620 = vadd.f32 %v2560, 1.0
      %v2621 = vadd.f32 %v2562, 1.0
      %v2622 = vadd.f32 %v2564, 1.0
      %v2623 = vadd.f32 %v2566, 1.0
      %v2624 = vadd.f32 %v2568, 1.0
      %v2625 = vadd.f32 %v2570, 1.0
      %v2626 = vadd.f32 %v2572, 1.0
      %v2627 = vadd.f32 %v2574, 1.0
      %v2628 = vadd.f32 %v2576, 1.0
      %v2629 = vadd.f32 %v2578, 1.0
      %v2630 = vadd.f32 %v2580, 1.0
      %v2631 = vadd.f32 %v2582, 1.0
      %v2632 = vadd.f32 %v2584, 1.0
      %v2633 = vadd.f32 %v2586, 1.0
      %v2634 = vadd.f32 %v2588, 1.0
      %v2635 = vadd.f32 %v2590, 1.0
      %v2636 = vadd.f32 %v2592, 1.0
      %v2637 = vadd.f32 %v2594, 1.0
      %v2638 = vadd.f32 %v2596, 1.0
      %v2639 = vadd.f32 %v2598, 1.0
      %v2640 = vadd.f32 %v2600, 1.0
      %v2641 = vadd.f32 %v2602, 1.0
      %v2642 = vadd.f32 %v2604, 1.0
      %v2643 = vadd.f32 %v2606, 1.0
      %v2644 = vadd.f32 %v2608, 1.0
      %v2645 = vadd.f32 %v2610, 1.0
      %v2646 = vadd.f32 %v2612, 1.0
      %v2647 = vadd.f32 %v2614, 1.0
      %v2648 = vadd.f32 %v2616, 1.0
      %v2649 = vrcp.pop %v2617
      %v2650 = vrcp.pop %v2618
      %v2651 = vrcp.pop %v2619
      %v2652 = vrcp.pop %v2620
      %v2653 = vrcp.pop %v2621
      %v2654 = vrcp.pop %v2622
      %v2655 = vrcp.pop %v2623
      %v2656 = vrcp.pop %v2624
      %v2657 = vrcp.pop %v2625
      %v2658 = vrcp.pop %v2626
      %v2659 = vrcp.pop %v2627
      %v2660 = vrcp.pop %v2628
      %v2661 = vrcp.pop %v2629
      %v2662 = vrcp.pop %v2630
      %v2663 = vrcp.pop %v2631
      %v2664 = vrcp.pop %v2632
      %v2665 = vrcp.pop %v2633
      %v2666 = vrcp.pop %v2634
      %v2667 = vrcp.pop %v2635
      %v2668 = vrcp.pop %v2636
      %v2669 = vrcp.pop %v2637
      %v2670 = vrcp.pop %v2638
      %v2671 = vrcp.pop %v2639
      %v2672 = vrcp.pop %v2640
      %v2673 = vrcp.pop %v2641
      %v2674 = vrcp.pop %v2642
      %v2675 = vrcp.pop %v2643
      %v2676 = vrcp.pop %v2644
      %v2677 = vrcp.pop %v2645
      %v2678 = vrcp.pop %v2646
      %v2679 = vrcp.pop %v2647
      %v2680 = vrcp.pop %v2648
      %v2681 = vmul.f32 %v2363, %v2649
      %v2682 = vmul.f32 %v2368, %v2650
      %v2683 = vmul.f32 %v2373, %v2651
      %v2684 = vmul.f32 %v2378, %v2652
      %v2685 = vmul.f32 %v2383, %v2653
      %v2686 = vmul.f32 %v2388, %v2654
      %v2687 = vmul.f32 %v2393, %v2655
      %v2688 = vmul.f32 %v2398, %v2656
      %v2689 = vmul.f32 %v2403, %v2657
      %v2690 = vmul.f32 %v2408, %v2658
      %v2691 = vmul.f32 %v2413, %v2659
      %v2692 = vmul.f32 %v2418, %v2660
      %v2693 = vmul.f32 %v2423, %v2661
      %v2694 = vmul.f32 %v2428, %v2662
      %v2695 = vmul.f32 %v2433, %v2663
      %v2696 = vmul.f32 %v2438, %v2664
      %v2697 = vmul.f32 %v2443, %v2665
      %v2698 = vmul.f32 %v2448, %v2666
      %v2699 = vmul.f32 %v2453, %v2667
      %v2700 = vmul.f32 %v2458, %v2668
      %v2701 = vmul.f32 %v2463, %v2669
      %v2702 = vmul.f32 %v2468, %v2670
      %v2703 = vmul.f32 %v2473, %v2671
      %v2704 = vmul.f32 %v2478, %v2672
      %v2705 = vmul.f32 %v2483, %v2673
      %v2706 = vmul.f32 %v2488, %v2674
      %v2707 = vmul.f32 %v2493, %v2675
      %v2708 = vmul.f32 %v2498, %v2676
      %v2709 = vmul.f32 %v2503, %v2677
      %v2710 = vmul.f32 %v2508, %v2678
      %v2711 = vmul.f32 %v2513, %v2679
      %v2712 = vmul.f32 %v2518, %v2680
      %vm2713 = vcmask 261120
      %2714 = vst.msk [vmem:[#allocation4] sm:$0xff] %vm2713, 0.0
      %2715 = vst.msk [vmem:[#allocation4 + $0x8] sm:$0xff] %vm2713, 0.0
      %vm2716 = vcmask 254976
      %2717 = vst.msk [vmem:[#allocation4 + $0x10] sm:$0x3] %vm2716, 0.0
      %2718 = vst.msk [vmem:[#allocation4 + $0x18] sm:$0xff] %vm2713, 0.0
      %2719 = vst.msk [vmem:[#allocation4 + $0x20] sm:$0xff] %vm2713, 0.0
      %2720 = vst.msk [vmem:[#allocation4 + $0x28] sm:$0x3] %vm2716, 0.0
      %2721 = vst.msk [vmem:[#allocation4 + $0x30] sm:$0xff] %vm2713, 0.0
      %2722 = vst.msk [vmem:[#allocation4 + $0x38] sm:$0xff] %vm2713, 0.0
      %2723 = vst.msk [vmem:[#allocation4 + $0x40] sm:$0x3] %vm2716, 0.0
      %2724 = vst.msk [vmem:[#allocation4 + $0x48] sm:$0xff] %vm2713, 0.0
      %2725 = vst.msk [vmem:[#allocation4 + $0x50] sm:$0xff] %vm2713, 0.0
      %2726 = vst.msk [vmem:[#allocation4 + $0x58] sm:$0x3] %vm2716, 0.0
      %2727 = vst.msk [vmem:[#allocation4 + $0x60] sm:$0xff] %vm2713, 0.0
      %2728 = vst.msk [vmem:[#allocation4 + $0x68] sm:$0xff] %vm2713, 0.0
      %2729 = vst.msk [vmem:[#allocation4 + $0x70] sm:$0x3] %vm2716, 0.0
      %2730 = vst.msk [vmem:[#allocation4 + $0x78] sm:$0xff] %vm2713, 0.0
      %2731 = vst.msk [vmem:[#allocation4 + $0x80] sm:$0xff] %vm2713, 0.0
      %2732 = vst.msk [vmem:[#allocation4 + $0x88] sm:$0x3] %vm2716, 0.0
      %2733 = vst.msk [vmem:[#allocation4 + $0x90] sm:$0xff] %vm2713, 0.0
      %2734 = vst.msk [vmem:[#allocation4 + $0x98] sm:$0xff] %vm2713, 0.0
      %2735 = vst.msk [vmem:[#allocation4 + $0xa0] sm:$0x3] %vm2716, 0.0
      %2736 = vst.msk [vmem:[#allocation4 + $0xa8] sm:$0xff] %vm2713, 0.0
      %2737 = vst.msk [vmem:[#allocation4 + $0xb0] sm:$0xff] %vm2713, 0.0
      %2738 = vst.msk [vmem:[#allocation4 + $0xb8] sm:$0x3] %vm2716, 0.0
      %2739 = vst.msk [vmem:[#allocation4 + $0xc0] sm:$0xff] %vm2713, 0.0
      %2740 = vst.msk [vmem:[#allocation4 + $0xc8] sm:$0xff] %vm2713, 0.0
      %2741 = vst.msk [vmem:[#allocation4 + $0xd0] sm:$0x3] %vm2716, 0.0
      %2742 = vst.msk [vmem:[#allocation4 + $0xd8] sm:$0xff] %vm2713, 0.0
      %2743 = vst.msk [vmem:[#allocation4 + $0xe0] sm:$0xff] %vm2713, 0.0
      %2744 = vst.msk [vmem:[#allocation4 + $0xe8] sm:$0x3] %vm2716, 0.0
      %2745 = vst.msk [vmem:[#allocation4 + $0xf0] sm:$0xff] %vm2713, 0.0
      %2746 = vst.msk [vmem:[#allocation4 + $0xf8] sm:$0xff] %vm2713, 0.0
      %2747 = vst.msk [vmem:[#allocation4 + $0x100] sm:$0x3] %vm2716, 0.0
      %2748 = vst.msk [vmem:[#allocation4 + $0x108] sm:$0xff] %vm2713, 0.0
      %2749 = vst.msk [vmem:[#allocation4 + $0x110] sm:$0xff] %vm2713, 0.0
      %2750 = vst.msk [vmem:[#allocation4 + $0x118] sm:$0x3] %vm2716, 0.0
      %2751 = vst.msk [vmem:[#allocation4 + $0x120] sm:$0xff] %vm2713, 0.0
      %2752 = vst.msk [vmem:[#allocation4 + $0x128] sm:$0xff] %vm2713, 0.0
      %2753 = vst.msk [vmem:[#allocation4 + $0x130] sm:$0x3] %vm2716, 0.0
      %2754 = vst.msk [vmem:[#allocation4 + $0x138] sm:$0xff] %vm2713, 0.0
      %2755 = vst.msk [vmem:[#allocation4 + $0x140] sm:$0xff] %vm2713, 0.0
      %2756 = vst.msk [vmem:[#allocation4 + $0x148] sm:$0x3] %vm2716, 0.0
      %2757 = vst.msk [vmem:[#allocation4 + $0x150] sm:$0xff] %vm2713, 0.0
      %2758 = vst.msk [vmem:[#allocation4 + $0x158] sm:$0xff] %vm2713, 0.0
      %2759 = vst.msk [vmem:[#allocation4 + $0x160] sm:$0x3] %vm2716, 0.0
      %2760 = vst.msk [vmem:[#allocation4 + $0x168] sm:$0xff] %vm2713, 0.0
      %2761 = vst.msk [vmem:[#allocation4 + $0x170] sm:$0xff] %vm2713, 0.0
      %2762 = vst.msk [vmem:[#allocation4 + $0x178] sm:$0x3] %vm2716, 0.0
      %2763 = vst.msk [vmem:[#allocation4 + $0x180] sm:$0xff] %vm2713, 0.0
      %2764 = vst.msk [vmem:[#allocation4 + $0x188] sm:$0xff] %vm2713, 0.0
      %2765 = vst.msk [vmem:[#allocation4 + $0x190] sm:$0x3] %vm2716, 0.0
      %2766 = vst.msk [vmem:[#allocation4 + $0x198] sm:$0xff] %vm2713, 0.0
      %2767 = vst.msk [vmem:[#allocation4 + $0x1a0] sm:$0xff] %vm2713, 0.0
      %2768 = vst.msk [vmem:[#allocation4 + $0x1a8] sm:$0x3] %vm2716, 0.0
      %s2769 = scalar_lea.vmem [#allocation4], 24
      %2770 = vst.msk [vmem:[%s2769 + $0x1] sm:$0xff] %vm2713, %v2681
      %2771 = vst.msk [vmem:[%s2769 + $0x9] sm:$0xff] %vm2713, %v2682
      %2772 = vst.msk [vmem:[%s2769 + $0x19] sm:$0xff] %vm2713, %v2683
      %2773 = vst.msk [vmem:[%s2769 + $0x21] sm:$0xff] %vm2713, %v2684
      %2774 = vst.msk [vmem:[%s2769 + $0x31] sm:$0xff] %vm2713, %v2685
      %2775 = vst.msk [vmem:[%s2769 + $0x39] sm:$0xff] %vm2713, %v2686
      %2776 = vst.msk [vmem:[%s2769 + $0x49] sm:$0xff] %vm2713, %v2687
      %2777 = vst.msk [vmem:[%s2769 + $0x51] sm:$0xff] %vm2713, %v2688
      %2778 = vst.msk [vmem:[%s2769 + $0x61] sm:$0xff] %vm2713, %v2689
      %2779 = vst.msk [vmem:[%s2769 + $0x69] sm:$0xff] %vm2713, %v2690
      %2780 = vst.msk [vmem:[%s2769 + $0x79] sm:$0xff] %vm2713, %v2691
      %2781 = vst.msk [vmem:[%s2769 + $0x81] sm:$0xff] %vm2713, %v2692
      %2782 = vst.msk [vmem:[%s2769 + $0x91] sm:$0xff] %vm2713, %v2693
      %2783 = vst.msk [vmem:[%s2769 + $0x99] sm:$0xff] %vm2713, %v2694
      %2784 = vst.msk [vmem:[%s2769 + $0xa9] sm:$0xff] %vm2713, %v2695
      %2785 = vst.msk [vmem:[%s2769 + $0xb1] sm:$0xff] %vm2713, %v2696
      %2786 = vst.msk [vmem:[%s2769 + $0xc1] sm:$0xff] %vm2713, %v2697
      %2787 = vst.msk [vmem:[%s2769 + $0xc9] sm:$0xff] %vm2713, %v2698
      %2788 = vst.msk [vmem:[%s2769 + $0xd9] sm:$0xff] %vm2713, %v2699
      %2789 = vst.msk [vmem:[%s2769 + $0xe1] sm:$0xff] %vm2713, %v2700
      %2790 = vst.msk [vmem:[%s2769 + $0xf1] sm:$0xff] %vm2713, %v2701
      %2791 = vst.msk [vmem:[%s2769 + $0xf9] sm:$0xff] %vm2713, %v2702
      %2792 = vst.msk [vmem:[%s2769 + $0x109] sm:$0xff] %vm2713, %v2703
      %2793 = vst.msk [vmem:[%s2769 + $0x111] sm:$0xff] %vm2713, %v2704
      %2794 = vst.msk [vmem:[%s2769 + $0x121] sm:$0xff] %vm2713, %v2705
      %2795 = vst.msk [vmem:[%s2769 + $0x129] sm:$0xff] %vm2713, %v2706
      %2796 = vst.msk [vmem:[%s2769 + $0x139] sm:$0xff] %vm2713, %v2707
      %2797 = vst.msk [vmem:[%s2769 + $0x141] sm:$0xff] %vm2713, %v2708
      %2798 = vst.msk [vmem:[%s2769 + $0x151] sm:$0xff] %vm2713, %v2709
      %2799 = vst.msk [vmem:[%s2769 + $0x159] sm:$0xff] %vm2713, %v2710
      %2800 = vst.msk [vmem:[%s2769 + $0x169] sm:$0xff] %vm2713, %v2711
      %2801 = vst.msk [vmem:[%s2769 + $0x171] sm:$0xff] %vm2713, %v2712
      %v2802 = vld [vmem:[%s3] sm:$0x7]
      %v2803 = vld [vmem:[%s3 + $0x4] sm:$0x7]
      %v2804 = vld [vmem:[%s3 + $0x8] sm:$0x7]
      %v2805 = vld [vmem:[#allocation4] sm:$0xff]
      %v2806 = vld [vmem:[#allocation4 + $0x8] sm:$0xff]
      %v2807 = vld [vmem:[#allocation4 + $0x18] sm:$0xff]
      %v2808 = vld [vmem:[#allocation4 + $0x20] sm:$0xff]
      %v2809 = vld [vmem:[#allocation4 + $0x30] sm:$0xff]
      %v2810 = vld [vmem:[#allocation4 + $0x38] sm:$0xff]
      %v2811 = vld [vmem:[#allocation4 + $0x48] sm:$0xff]
      %v2812 = vld [vmem:[#allocation4 + $0x50] sm:$0xff]
      %v2813 = vld [vmem:[#allocation4 + $0x60] sm:$0xff]
      %v2814 = vld [vmem:[#allocation4 + $0x68] sm:$0xff]
      %v2815 = vld [vmem:[#allocation4 + $0x78] sm:$0xff]
      %v2816 = vld [vmem:[#allocation4 + $0x80] sm:$0xff]
      %v2817 = vld [vmem:[#allocation4 + $0x90] sm:$0xff]
      %v2818 = vld [vmem:[#allocation4 + $0x98] sm:$0xff]
      %v2819 = vld [vmem:[#allocation4 + $0xa8] sm:$0xff]
      %v2820 = vld [vmem:[#allocation4 + $0xb0] sm:$0xff]
      %v2821 = vld [vmem:[#allocation4 + $0xc0] sm:$0xff]
      %v2822 = vld [vmem:[#allocation4 + $0xc8] sm:$0xff]
      %v2823 = vld [vmem:[#allocation4 + $0xd8] sm:$0xff]
      %v2824 = vld [vmem:[#allocation4 + $0xe0] sm:$0xff]
      %v2825 = vld [vmem:[#allocation4 + $0xf0] sm:$0xff]
      %v2826 = vld [vmem:[#allocation4 + $0xf8] sm:$0xff]
      %v2827 = vld [vmem:[#allocation4 + $0x108] sm:$0xff]
      %v2828 = vld [vmem:[#allocation4 + $0x110] sm:$0xff]
      %v2829 = vld [vmem:[#allocation4 + $0x120] sm:$0xff]
      %v2830 = vld [vmem:[#allocation4 + $0x128] sm:$0xff]
      %v2831 = vld [vmem:[#allocation4 + $0x138] sm:$0xff]
      %v2832 = vld [vmem:[#allocation4 + $0x140] sm:$0xff]
      %v2833 = vld [vmem:[#allocation4 + $0x150] sm:$0xff]
      %v2834 = vld [vmem:[#allocation4 + $0x158] sm:$0xff]
      %v2835 = vld [vmem:[#allocation4 + $0x168] sm:$0xff]
      %v2836 = vld [vmem:[#allocation4 + $0x170] sm:$0xff]
      %v2837 = vlaneseq
      %v2838 = vshrl.u32 %v2837, 7
      %v2839 = vsub.s32 0, %v2838
      %v2840 = vrot.slane %v2802, %v2839
      %v2841 = vmul.f32 %v2805, %v2840
      %v2842 = vmul.f32 %v2806, %v2840
      %v2843 = vmul.f32 %v2807, %v2840
      %v2844 = vmul.f32 %v2808, %v2840
      %v2845 = vmul.f32 %v2809, %v2840
      %v2846 = vmul.f32 %v2810, %v2840
      %v2847 = vmul.f32 %v2811, %v2840
      %v2848 = vmul.f32 %v2812, %v2840
      %v2849 = vmul.f32 %v2813, %v2840
      %v2850 = vmul.f32 %v2814, %v2840
      %v2851 = vmul.f32 %v2815, %v2840
      %v2852 = vmul.f32 %v2816, %v2840
      %v2853 = vmul.f32 %v2817, %v2840
      %v2854 = vmul.f32 %v2818, %v2840
      %v2855 = vmul.f32 %v2819, %v2840
      %v2856 = vmul.f32 %v2820, %v2840
      %v2857 = vmul.f32 %v2821, %v2840
      %v2858 = vmul.f32 %v2822, %v2840
      %v2859 = vmul.f32 %v2823, %v2840
      %v2860 = vmul.f32 %v2824, %v2840
      %v2861 = vmul.f32 %v2825, %v2840
      %v2862 = vmul.f32 %v2826, %v2840
      %v2863 = vmul.f32 %v2827, %v2840
      %v2864 = vmul.f32 %v2828, %v2840
      %v2865 = vmul.f32 %v2829, %v2840
      %v2866 = vmul.f32 %v2830, %v2840
      %v2867 = vmul.f32 %v2831, %v2840
      %v2868 = vmul.f32 %v2832, %v2840
      %v2869 = vmul.f32 %v2833, %v2840
      %v2870 = vmul.f32 %v2834, %v2840
      %v2871 = vmul.f32 %v2835, %v2840
      %v2872 = vmul.f32 %v2836, %v2840
      %v2873 = vadd.f32 %v2841, 0.0
      %v2874 = vadd.f32 %v2842, 0.0
      %v2875 = vadd.f32 %v2843, 0.0
      %v2876 = vadd.f32 %v2844, 0.0
      %v2877 = vadd.f32 %v2845, 0.0
      %v2878 = vadd.f32 %v2846, 0.0
      %v2879 = vadd.f32 %v2847, 0.0
      %v2880 = vadd.f32 %v2848, 0.0
      %v2881 = vadd.f32 %v2849, 0.0
      %v2882 = vadd.f32 %v2850, 0.0
      %v2883 = vadd.f32 %v2851, 0.0
      %v2884 = vadd.f32 %v2852, 0.0
      %v2885 = vadd.f32 %v2853, 0.0
      %v2886 = vadd.f32 %v2854, 0.0
      %v2887 = vadd.f32 %v2855, 0.0
      %v2888 = vadd.f32 %v2856, 0.0
      %v2889 = vadd.f32 %v2857, 0.0
      %v2890 = vadd.f32 %v2858, 0.0
      %v2891 = vadd.f32 %v2859, 0.0
      %v2892 = vadd.f32 %v2860, 0.0
      %v2893 = vadd.f32 %v2861, 0.0
      %v2894 = vadd.f32 %v2862, 0.0
      %v2895 = vadd.f32 %v2863, 0.0
      %v2896 = vadd.f32 %v2864, 0.0
      %v2897 = vadd.f32 %v2865, 0.0
      %v2898 = vadd.f32 %v2866, 0.0
      %v2899 = vadd.f32 %v2867, 0.0
      %v2900 = vadd.f32 %v2868, 0.0
      %v2901 = vadd.f32 %v2869, 0.0
      %v2902 = vadd.f32 %v2870, 0.0
      %v2903 = vadd.f32 %v2871, 0.0
      %v2904 = vadd.f32 %v2872, 0.0
      %v2905 = vld [vmem:[#allocation4 + $0x1] sm:$0xff]
      %v2906 = vld [vmem:[#allocation4 + $0x9] sm:$0xff]
      %v2907 = vld [vmem:[#allocation4 + $0x19] sm:$0xff]
      %v2908 = vld [vmem:[#allocation4 + $0x21] sm:$0xff]
      %v2909 = vld [vmem:[#allocation4 + $0x31] sm:$0xff]
      %v2910 = vld [vmem:[#allocation4 + $0x39] sm:$0xff]
      %v2911 = vld [vmem:[#allocation4 + $0x49] sm:$0xff]
      %v2912 = vld [vmem:[#allocation4 + $0x51] sm:$0xff]
      %v2913 = vld [vmem:[#allocation4 + $0x61] sm:$0xff]
      %v2914 = vld [vmem:[#allocation4 + $0x69] sm:$0xff]
      %v2915 = vld [vmem:[#allocation4 + $0x79] sm:$0xff]
      %v2916 = vld [vmem:[#allocation4 + $0x81] sm:$0xff]
      %v2917 = vld [vmem:[#allocation4 + $0x91] sm:$0xff]
      %v2918 = vld [vmem:[#allocation4 + $0x99] sm:$0xff]
      %v2919 = vld [vmem:[#allocation4 + $0xa9] sm:$0xff]
      %v2920 = vld [vmem:[#allocation4 + $0xb1] sm:$0xff]
      %v2921 = vld [vmem:[#allocation4 + $0xc1] sm:$0xff]
      %v2922 = vld [vmem:[#allocation4 + $0xc9] sm:$0xff]
      %v2923 = vld [vmem:[#allocation4 + $0xd9] sm:$0xff]
      %v2924 = vld [vmem:[#allocation4 + $0xe1] sm:$0xff]
      %v2925 = vld [vmem:[#allocation4 + $0xf1] sm:$0xff]
      %v2926 = vld [vmem:[#allocation4 + $0xf9] sm:$0xff]
      %v2927 = vld [vmem:[#allocation4 + $0x109] sm:$0xff]
      %v2928 = vld [vmem:[#allocation4 + $0x111] sm:$0xff]
      %v2929 = vld [vmem:[#allocation4 + $0x121] sm:$0xff]
      %v2930 = vld [vmem:[#allocation4 + $0x129] sm:$0xff]
      %v2931 = vld [vmem:[#allocation4 + $0x139] sm:$0xff]
      %v2932 = vld [vmem:[#allocation4 + $0x141] sm:$0xff]
      %v2933 = vld [vmem:[#allocation4 + $0x151] sm:$0xff]
      %v2934 = vld [vmem:[#allocation4 + $0x159] sm:$0xff]
      %v2935 = vld [vmem:[#allocation4 + $0x169] sm:$0xff]
      %v2936 = vld [vmem:[#allocation4 + $0x171] sm:$0xff]
      %v2937 = vlaneseq
      %v2938 = vshrl.u32 %v2937, 7
      %v2939 = vsub.s32 1, %v2938
      %v2940 = vrot.slane %v2802, %v2939
      %v2941 = vmul.f32 %v2905, %v2940
      %v2942 = vmul.f32 %v2906, %v2940
      %v2943 = vmul.f32 %v2907, %v2940
      %v2944 = vmul.f32 %v2908, %v2940
      %v2945 = vmul.f32 %v2909, %v2940
      %v2946 = vmul.f32 %v2910, %v2940
      %v2947 = vmul.f32 %v2911, %v2940
      %v2948 = vmul.f32 %v2912, %v2940
      %v2949 = vmul.f32 %v2913, %v2940
      %v2950 = vmul.f32 %v2914, %v2940
      %v2951 = vmul.f32 %v2915, %v2940
      %v2952 = vmul.f32 %v2916, %v2940
      %v2953 = vmul.f32 %v2917, %v2940
      %v2954 = vmul.f32 %v2918, %v2940
      %v2955 = vmul.f32 %v2919, %v2940
      %v2956 = vmul.f32 %v2920, %v2940
      %v2957 = vmul.f32 %v2921, %v2940
      %v2958 = vmul.f32 %v2922, %v2940
      %v2959 = vmul.f32 %v2923, %v2940
      %v2960 = vmul.f32 %v2924, %v2940
      %v2961 = vmul.f32 %v2925, %v2940
      %v2962 = vmul.f32 %v2926, %v2940
      %v2963 = vmul.f32 %v2927, %v2940
      %v2964 = vmul.f32 %v2928, %v2940
      %v2965 = vmul.f32 %v2929, %v2940
      %v2966 = vmul.f32 %v2930, %v2940
      %v2967 = vmul.f32 %v2931, %v2940
      %v2968 = vmul.f32 %v2932, %v2940
      %v2969 = vmul.f32 %v2933, %v2940
      %v2970 = vmul.f32 %v2934, %v2940
      %v2971 = vmul.f32 %v2935, %v2940
      %v2972 = vmul.f32 %v2936, %v2940
      %v2973 = vadd.f32 %v2873, %v2941
      %v2974 = vadd.f32 %v2874, %v2942
      %v2975 = vadd.f32 %v2875, %v2943
      %v2976 = vadd.f32 %v2876, %v2944
      %v2977 = vadd.f32 %v2877, %v2945
      %v2978 = vadd.f32 %v2878, %v2946
      %v2979 = vadd.f32 %v2879, %v2947
      %v2980 = vadd.f32 %v2880, %v2948
      %v2981 = vadd.f32 %v2881, %v2949
      %v2982 = vadd.f32 %v2882, %v2950
      %v2983 = vadd.f32 %v2883, %v2951
      %v2984 = vadd.f32 %v2884, %v2952
      %v2985 = vadd.f32 %v2885, %v2953
      %v2986 = vadd.f32 %v2886, %v2954
      %v2987 = vadd.f32 %v2887, %v2955
      %v2988 = vadd.f32 %v2888, %v2956
      %v2989 = vadd.f32 %v2889, %v2957
      %v2990 = vadd.f32 %v2890, %v2958
      %v2991 = vadd.f32 %v2891, %v2959
      %v2992 = vadd.f32 %v2892, %v2960
      %v2993 = vadd.f32 %v2893, %v2961
      %v2994 = vadd.f32 %v2894, %v2962
      %v2995 = vadd.f32 %v2895, %v2963
      %v2996 = vadd.f32 %v2896, %v2964
      %v2997 = vadd.f32 %v2897, %v2965
      %v2998 = vadd.f32 %v2898, %v2966
      %v2999 = vadd.f32 %v2899, %v2967
      %v3000 = vadd.f32 %v2900, %v2968
      %v3001 = vadd.f32 %v2901, %v2969
      %v3002 = vadd.f32 %v2902, %v2970
      %v3003 = vadd.f32 %v2903, %v2971
      %v3004 = vadd.f32 %v2904, %v2972
      %v3005 = vld [vmem:[#allocation4 + $0x2] sm:$0xff]
      %v3006 = vld [vmem:[#allocation4 + $0xa] sm:$0xff]
      %v3007 = vld [vmem:[#allocation4 + $0x1a] sm:$0xff]
      %v3008 = vld [vmem:[#allocation4 + $0x22] sm:$0xff]
      %v3009 = vld [vmem:[#allocation4 + $0x32] sm:$0xff]
      %v3010 = vld [vmem:[#allocation4 + $0x3a] sm:$0xff]
      %v3011 = vld [vmem:[#allocation4 + $0x4a] sm:$0xff]
      %v3012 = vld [vmem:[#allocation4 + $0x52] sm:$0xff]
      %v3013 = vld [vmem:[#allocation4 + $0x62] sm:$0xff]
      %v3014 = vld [vmem:[#allocation4 + $0x6a] sm:$0xff]
      %v3015 = vld [vmem:[#allocation4 + $0x7a] sm:$0xff]
      %v3016 = vld [vmem:[#allocation4 + $0x82] sm:$0xff]
      %v3017 = vld [vmem:[#allocation4 + $0x92] sm:$0xff]
      %v3018 = vld [vmem:[#allocation4 + $0x9a] sm:$0xff]
      %v3019 = vld [vmem:[#allocation4 + $0xaa] sm:$0xff]
      %v3020 = vld [vmem:[#allocation4 + $0xb2] sm:$0xff]
      %v3021 = vld [vmem:[#allocation4 + $0xc2] sm:$0xff]
      %v3022 = vld [vmem:[#allocation4 + $0xca] sm:$0xff]
      %v3023 = vld [vmem:[#allocation4 + $0xda] sm:$0xff]
      %v3024 = vld [vmem:[#allocation4 + $0xe2] sm:$0xff]
      %v3025 = vld [vmem:[#allocation4 + $0xf2] sm:$0xff]
      %v3026 = vld [vmem:[#allocation4 + $0xfa] sm:$0xff]
      %v3027 = vld [vmem:[#allocation4 + $0x10a] sm:$0xff]
      %v3028 = vld [vmem:[#allocation4 + $0x112] sm:$0xff]
      %v3029 = vld [vmem:[#allocation4 + $0x122] sm:$0xff]
      %v3030 = vld [vmem:[#allocation4 + $0x12a] sm:$0xff]
      %v3031 = vld [vmem:[#allocation4 + $0x13a] sm:$0xff]
      %v3032 = vld [vmem:[#allocation4 + $0x142] sm:$0xff]
      %v3033 = vld [vmem:[#allocation4 + $0x152] sm:$0xff]
      %v3034 = vld [vmem:[#allocation4 + $0x15a] sm:$0xff]
      %v3035 = vld [vmem:[#allocation4 + $0x16a] sm:$0xff]
      %v3036 = vld [vmem:[#allocation4 + $0x172] sm:$0xff]
      %v3037 = vlaneseq
      %v3038 = vshrl.u32 %v3037, 7
      %v3039 = vsub.s32 2, %v3038
      %v3040 = vrot.slane %v2802, %v3039
      %v3041 = vmul.f32 %v3005, %v3040
      %v3042 = vmul.f32 %v3006, %v3040
      %v3043 = vmul.f32 %v3007, %v3040
      %v3044 = vmul.f32 %v3008, %v3040
      %v3045 = vmul.f32 %v3009, %v3040
      %v3046 = vmul.f32 %v3010, %v3040
      %v3047 = vmul.f32 %v3011, %v3040
      %v3048 = vmul.f32 %v3012, %v3040
      %v3049 = vmul.f32 %v3013, %v3040
      %v3050 = vmul.f32 %v3014, %v3040
      %v3051 = vmul.f32 %v3015, %v3040
      %v3052 = vmul.f32 %v3016, %v3040
      %v3053 = vmul.f32 %v3017, %v3040
      %v3054 = vmul.f32 %v3018, %v3040
      %v3055 = vmul.f32 %v3019, %v3040
      %v3056 = vmul.f32 %v3020, %v3040
      %v3057 = vmul.f32 %v3021, %v3040
      %v3058 = vmul.f32 %v3022, %v3040
      %v3059 = vmul.f32 %v3023, %v3040
      %v3060 = vmul.f32 %v3024, %v3040
      %v3061 = vmul.f32 %v3025, %v3040
      %v3062 = vmul.f32 %v3026, %v3040
      %v3063 = vmul.f32 %v3027, %v3040
      %v3064 = vmul.f32 %v3028, %v3040
      %v3065 = vmul.f32 %v3029, %v3040
      %v3066 = vmul.f32 %v3030, %v3040
      %v3067 = vmul.f32 %v3031, %v3040
      %v3068 = vmul.f32 %v3032, %v3040
      %v3069 = vmul.f32 %v3033, %v3040
      %v3070 = vmul.f32 %v3034, %v3040
      %v3071 = vmul.f32 %v3035, %v3040
      %v3072 = vmul.f32 %v3036, %v3040
      %v3073 = vadd.f32 %v2973, %v3041
      %v3074 = vadd.f32 %v2974, %v3042
      %v3075 = vadd.f32 %v2975, %v3043
      %v3076 = vadd.f32 %v2976, %v3044
      %v3077 = vadd.f32 %v2977, %v3045
      %v3078 = vadd.f32 %v2978, %v3046
      %v3079 = vadd.f32 %v2979, %v3047
      %v3080 = vadd.f32 %v2980, %v3048
      %v3081 = vadd.f32 %v2981, %v3049
      %v3082 = vadd.f32 %v2982, %v3050
      %v3083 = vadd.f32 %v2983, %v3051
      %v3084 = vadd.f32 %v2984, %v3052
      %v3085 = vadd.f32 %v2985, %v3053
      %v3086 = vadd.f32 %v2986, %v3054
      %v3087 = vadd.f32 %v2987, %v3055
      %v3088 = vadd.f32 %v2988, %v3056
      %v3089 = vadd.f32 %v2989, %v3057
      %v3090 = vadd.f32 %v2990, %v3058
      %v3091 = vadd.f32 %v2991, %v3059
      %v3092 = vadd.f32 %v2992, %v3060
      %v3093 = vadd.f32 %v2993, %v3061
      %v3094 = vadd.f32 %v2994, %v3062
      %v3095 = vadd.f32 %v2995, %v3063
      %v3096 = vadd.f32 %v2996, %v3064
      %v3097 = vadd.f32 %v2997, %v3065
      %v3098 = vadd.f32 %v2998, %v3066
      %v3099 = vadd.f32 %v2999, %v3067
      %v3100 = vadd.f32 %v3000, %v3068
      %v3101 = vadd.f32 %v3001, %v3069
      %v3102 = vadd.f32 %v3002, %v3070
      %v3103 = vadd.f32 %v3003, %v3071
      %v3104 = vadd.f32 %v3004, %v3072
      %v3105 = vld [vmem:[%s2769] sm:$0xff]
      %v3106 = vld [vmem:[%s2769 + $0x8] sm:$0xff]
      %v3107 = vld [vmem:[%s2769 + $0x18] sm:$0xff]
      %v3108 = vld [vmem:[%s2769 + $0x20] sm:$0xff]
      %v3109 = vld [vmem:[%s2769 + $0x30] sm:$0xff]
      %v3110 = vld [vmem:[%s2769 + $0x38] sm:$0xff]
      %v3111 = vld [vmem:[%s2769 + $0x48] sm:$0xff]
      %v3112 = vld [vmem:[%s2769 + $0x50] sm:$0xff]
      %v3113 = vld [vmem:[%s2769 + $0x60] sm:$0xff]
      %v3114 = vld [vmem:[%s2769 + $0x68] sm:$0xff]
      %v3115 = vld [vmem:[%s2769 + $0x78] sm:$0xff]
      %v3116 = vld [vmem:[%s2769 + $0x80] sm:$0xff]
      %v3117 = vld [vmem:[%s2769 + $0x90] sm:$0xff]
      %v3118 = vld [vmem:[%s2769 + $0x98] sm:$0xff]
      %v3119 = vld [vmem:[%s2769 + $0xa8] sm:$0xff]
      %v3120 = vld [vmem:[%s2769 + $0xb0] sm:$0xff]
      %v3121 = vld [vmem:[%s2769 + $0xc0] sm:$0xff]
      %v3122 = vld [vmem:[%s2769 + $0xc8] sm:$0xff]
      %v3123 = vld [vmem:[%s2769 + $0xd8] sm:$0xff]
      %v3124 = vld [vmem:[%s2769 + $0xe0] sm:$0xff]
      %v3125 = vld [vmem:[%s2769 + $0xf0] sm:$0xff]
      %v3126 = vld [vmem:[%s2769 + $0xf8] sm:$0xff]
      %v3127 = vld [vmem:[%s2769 + $0x108] sm:$0xff]
      %v3128 = vld [vmem:[%s2769 + $0x110] sm:$0xff]
      %v3129 = vld [vmem:[%s2769 + $0x120] sm:$0xff]
      %v3130 = vld [vmem:[%s2769 + $0x128] sm:$0xff]
      %v3131 = vld [vmem:[%s2769 + $0x138] sm:$0xff]
      %v3132 = vld [vmem:[%s2769 + $0x140] sm:$0xff]
      %v3133 = vld [vmem:[%s2769 + $0x150] sm:$0xff]
      %v3134 = vld [vmem:[%s2769 + $0x158] sm:$0xff]
      %v3135 = vld [vmem:[%s2769 + $0x168] sm:$0xff]
      %v3136 = vld [vmem:[%s2769 + $0x170] sm:$0xff]
      %v3137 = vlaneseq
      %v3138 = vshrl.u32 %v3137, 7
      %v3139 = vsub.s32 0, %v3138
      %v3140 = vrot.slane %v2803, %v3139
      %v3141 = vmul.f32 %v3105, %v3140
      %v3142 = vmul.f32 %v3106, %v3140
      %v3143 = vmul.f32 %v3107, %v3140
      %v3144 = vmul.f32 %v3108, %v3140
      %v3145 = vmul.f32 %v3109, %v3140
      %v3146 = vmul.f32 %v3110, %v3140
      %v3147 = vmul.f32 %v3111, %v3140
      %v3148 = vmul.f32 %v3112, %v3140
      %v3149 = vmul.f32 %v3113, %v3140
      %v3150 = vmul.f32 %v3114, %v3140
      %v3151 = vmul.f32 %v3115, %v3140
      %v3152 = vmul.f32 %v3116, %v3140
      %v3153 = vmul.f32 %v3117, %v3140
      %v3154 = vmul.f32 %v3118, %v3140
      %v3155 = vmul.f32 %v3119, %v3140
      %v3156 = vmul.f32 %v3120, %v3140
      %v3157 = vmul.f32 %v3121, %v3140
      %v3158 = vmul.f32 %v3122, %v3140
      %v3159 = vmul.f32 %v3123, %v3140
      %v3160 = vmul.f32 %v3124, %v3140
      %v3161 = vmul.f32 %v3125, %v3140
      %v3162 = vmul.f32 %v3126, %v3140
      %v3163 = vmul.f32 %v3127, %v3140
      %v3164 = vmul.f32 %v3128, %v3140
      %v3165 = vmul.f32 %v3129, %v3140
      %v3166 = vmul.f32 %v3130, %v3140
      %v3167 = vmul.f32 %v3131, %v3140
      %v3168 = vmul.f32 %v3132, %v3140
      %v3169 = vmul.f32 %v3133, %v3140
      %v3170 = vmul.f32 %v3134, %v3140
      %v3171 = vmul.f32 %v3135, %v3140
      %v3172 = vmul.f32 %v3136, %v3140
      %v3173 = vadd.f32 %v3073, %v3141
      %v3174 = vadd.f32 %v3074, %v3142
      %v3175 = vadd.f32 %v3075, %v3143
      %v3176 = vadd.f32 %v3076, %v3144
      %v3177 = vadd.f32 %v3077, %v3145
      %v3178 = vadd.f32 %v3078, %v3146
      %v3179 = vadd.f32 %v3079, %v3147
      %v3180 = vadd.f32 %v3080, %v3148
      %v3181 = vadd.f32 %v3081, %v3149
      %v3182 = vadd.f32 %v3082, %v3150
      %v3183 = vadd.f32 %v3083, %v3151
      %v3184 = vadd.f32 %v3084, %v3152
      %v3185 = vadd.f32 %v3085, %v3153
      %v3186 = vadd.f32 %v3086, %v3154
      %v3187 = vadd.f32 %v3087, %v3155
      %v3188 = vadd.f32 %v3088, %v3156
      %v3189 = vadd.f32 %v3089, %v3157
      %v3190 = vadd.f32 %v3090, %v3158
      %v3191 = vadd.f32 %v3091, %v3159
      %v3192 = vadd.f32 %v3092, %v3160
      %v3193 = vadd.f32 %v3093, %v3161
      %v3194 = vadd.f32 %v3094, %v3162
      %v3195 = vadd.f32 %v3095, %v3163
      %v3196 = vadd.f32 %v3096, %v3164
      %v3197 = vadd.f32 %v3097, %v3165
      %v3198 = vadd.f32 %v3098, %v3166
      %v3199 = vadd.f32 %v3099, %v3167
      %v3200 = vadd.f32 %v3100, %v3168
      %v3201 = vadd.f32 %v3101, %v3169
      %v3202 = vadd.f32 %v3102, %v3170
      %v3203 = vadd.f32 %v3103, %v3171
      %v3204 = vadd.f32 %v3104, %v3172
      %v3205 = vld [vmem:[%s2769 + $0x1] sm:$0xff]
      %v3206 = vld [vmem:[%s2769 + $0x9] sm:$0xff]
      %v3207 = vld [vmem:[%s2769 + $0x19] sm:$0xff]
      %v3208 = vld [vmem:[%s2769 + $0x21] sm:$0xff]
      %v3209 = vld [vmem:[%s2769 + $0x31] sm:$0xff]
      %v3210 = vld [vmem:[%s2769 + $0x39] sm:$0xff]
      %v3211 = vld [vmem:[%s2769 + $0x49] sm:$0xff]
      %v3212 = vld [vmem:[%s2769 + $0x51] sm:$0xff]
      %v3213 = vld [vmem:[%s2769 + $0x61] sm:$0xff]
      %v3214 = vld [vmem:[%s2769 + $0x69] sm:$0xff]
      %v3215 = vld [vmem:[%s2769 + $0x79] sm:$0xff]
      %v3216 = vld [vmem:[%s2769 + $0x81] sm:$0xff]
      %v3217 = vld [vmem:[%s2769 + $0x91] sm:$0xff]
      %v3218 = vld [vmem:[%s2769 + $0x99] sm:$0xff]
      %v3219 = vld [vmem:[%s2769 + $0xa9] sm:$0xff]
      %v3220 = vld [vmem:[%s2769 + $0xb1] sm:$0xff]
      %v3221 = vld [vmem:[%s2769 + $0xc1] sm:$0xff]
      %v3222 = vld [vmem:[%s2769 + $0xc9] sm:$0xff]
      %v3223 = vld [vmem:[%s2769 + $0xd9] sm:$0xff]
      %v3224 = vld [vmem:[%s2769 + $0xe1] sm:$0xff]
      %v3225 = vld [vmem:[%s2769 + $0xf1] sm:$0xff]
      %v3226 = vld [vmem:[%s2769 + $0xf9] sm:$0xff]
      %v3227 = vld [vmem:[%s2769 + $0x109] sm:$0xff]
      %v3228 = vld [vmem:[%s2769 + $0x111] sm:$0xff]
      %v3229 = vld [vmem:[%s2769 + $0x121] sm:$0xff]
      %v3230 = vld [vmem:[%s2769 + $0x129] sm:$0xff]
      %v3231 = vld [vmem:[%s2769 + $0x139] sm:$0xff]
      %v3232 = vld [vmem:[%s2769 + $0x141] sm:$0xff]
      %v3233 = vld [vmem:[%s2769 + $0x151] sm:$0xff]
      %v3234 = vld [vmem:[%s2769 + $0x159] sm:$0xff]
      %v3235 = vld [vmem:[%s2769 + $0x169] sm:$0xff]
      %v3236 = vld [vmem:[%s2769 + $0x171] sm:$0xff]
      %v3237 = vlaneseq
      %v3238 = vshrl.u32 %v3237, 7
      %v3239 = vsub.s32 1, %v3238
      %v3240 = vrot.slane %v2803, %v3239
      %v3241 = vmul.f32 %v3205, %v3240
      %v3242 = vmul.f32 %v3206, %v3240
      %v3243 = vmul.f32 %v3207, %v3240
      %v3244 = vmul.f32 %v3208, %v3240
      %v3245 = vmul.f32 %v3209, %v3240
      %v3246 = vmul.f32 %v3210, %v3240
      %v3247 = vmul.f32 %v3211, %v3240
      %v3248 = vmul.f32 %v3212, %v3240
      %v3249 = vmul.f32 %v3213, %v3240
      %v3250 = vmul.f32 %v3214, %v3240
      %v3251 = vmul.f32 %v3215, %v3240
      %v3252 = vmul.f32 %v3216, %v3240
      %v3253 = vmul.f32 %v3217, %v3240
      %v3254 = vmul.f32 %v3218, %v3240
      %v3255 = vmul.f32 %v3219, %v3240
      %v3256 = vmul.f32 %v3220, %v3240
      %v3257 = vmul.f32 %v3221, %v3240
      %v3258 = vmul.f32 %v3222, %v3240
      %v3259 = vmul.f32 %v3223, %v3240
      %v3260 = vmul.f32 %v3224, %v3240
      %v3261 = vmul.f32 %v3225, %v3240
      %v3262 = vmul.f32 %v3226, %v3240
      %v3263 = vmul.f32 %v3227, %v3240
      %v3264 = vmul.f32 %v3228, %v3240
      %v3265 = vmul.f32 %v3229, %v3240
      %v3266 = vmul.f32 %v3230, %v3240
      %v3267 = vmul.f32 %v3231, %v3240
      %v3268 = vmul.f32 %v3232, %v3240
      %v3269 = vmul.f32 %v3233, %v3240
      %v3270 = vmul.f32 %v3234, %v3240
      %v3271 = vmul.f32 %v3235, %v3240
      %v3272 = vmul.f32 %v3236, %v3240
      %v3273 = vadd.f32 %v3173, %v3241
      %v3274 = vadd.f32 %v3174, %v3242
      %v3275 = vadd.f32 %v3175, %v3243
      %v3276 = vadd.f32 %v3176, %v3244
      %v3277 = vadd.f32 %v3177, %v3245
      %v3278 = vadd.f32 %v3178, %v3246
      %v3279 = vadd.f32 %v3179, %v3247
      %v3280 = vadd.f32 %v3180, %v3248
      %v3281 = vadd.f32 %v3181, %v3249
      %v3282 = vadd.f32 %v3182, %v3250
      %v3283 = vadd.f32 %v3183, %v3251
      %v3284 = vadd.f32 %v3184, %v3252
      %v3285 = vadd.f32 %v3185, %v3253
      %v3286 = vadd.f32 %v3186, %v3254
      %v3287 = vadd.f32 %v3187, %v3255
      %v3288 = vadd.f32 %v3188, %v3256
      %v3289 = vadd.f32 %v3189, %v3257
      %v3290 = vadd.f32 %v3190, %v3258
      %v3291 = vadd.f32 %v3191, %v3259
      %v3292 = vadd.f32 %v3192, %v3260
      %v3293 = vadd.f32 %v3193, %v3261
      %v3294 = vadd.f32 %v3194, %v3262
      %v3295 = vadd.f32 %v3195, %v3263
      %v3296 = vadd.f32 %v3196, %v3264
      %v3297 = vadd.f32 %v3197, %v3265
      %v3298 = vadd.f32 %v3198, %v3266
      %v3299 = vadd.f32 %v3199, %v3267
      %v3300 = vadd.f32 %v3200, %v3268
      %v3301 = vadd.f32 %v3201, %v3269
      %v3302 = vadd.f32 %v3202, %v3270
      %v3303 = vadd.f32 %v3203, %v3271
      %v3304 = vadd.f32 %v3204, %v3272
      %v3305 = vld [vmem:[%s2769 + $0x2] sm:$0xff]
      %v3306 = vld [vmem:[%s2769 + $0xa] sm:$0xff]
      %v3307 = vld [vmem:[%s2769 + $0x1a] sm:$0xff]
      %v3308 = vld [vmem:[%s2769 + $0x22] sm:$0xff]
      %v3309 = vld [vmem:[%s2769 + $0x32] sm:$0xff]
      %v3310 = vld [vmem:[%s2769 + $0x3a] sm:$0xff]
      %v3311 = vld [vmem:[%s2769 + $0x4a] sm:$0xff]
      %v3312 = vld [vmem:[%s2769 + $0x52] sm:$0xff]
      %v3313 = vld [vmem:[%s2769 + $0x62] sm:$0xff]
      %v3314 = vld [vmem:[%s2769 + $0x6a] sm:$0xff]
      %v3315 = vld [vmem:[%s2769 + $0x7a] sm:$0xff]
      %v3316 = vld [vmem:[%s2769 + $0x82] sm:$0xff]
      %v3317 = vld [vmem:[%s2769 + $0x92] sm:$0xff]
      %v3318 = vld [vmem:[%s2769 + $0x9a] sm:$0xff]
      %v3319 = vld [vmem:[%s2769 + $0xaa] sm:$0xff]
      %v3320 = vld [vmem:[%s2769 + $0xb2] sm:$0xff]
      %v3321 = vld [vmem:[%s2769 + $0xc2] sm:$0xff]
      %v3322 = vld [vmem:[%s2769 + $0xca] sm:$0xff]
      %v3323 = vld [vmem:[%s2769 + $0xda] sm:$0xff]
      %v3324 = vld [vmem:[%s2769 + $0xe2] sm:$0xff]
      %v3325 = vld [vmem:[%s2769 + $0xf2] sm:$0xff]
      %v3326 = vld [vmem:[%s2769 + $0xfa] sm:$0xff]
      %v3327 = vld [vmem:[%s2769 + $0x10a] sm:$0xff]
      %v3328 = vld [vmem:[%s2769 + $0x112] sm:$0xff]
      %v3329 = vld [vmem:[%s2769 + $0x122] sm:$0xff]
      %v3330 = vld [vmem:[%s2769 + $0x12a] sm:$0xff]
      %v3331 = vld [vmem:[%s2769 + $0x13a] sm:$0xff]
      %v3332 = vld [vmem:[%s2769 + $0x142] sm:$0xff]
      %v3333 = vld [vmem:[%s2769 + $0x152] sm:$0xff]
      %v3334 = vld [vmem:[%s2769 + $0x15a] sm:$0xff]
      %v3335 = vld [vmem:[%s2769 + $0x16a] sm:$0xff]
      %v3336 = vld [vmem:[%s2769 + $0x172] sm:$0xff]
      %v3337 = vlaneseq
      %v3338 = vshrl.u32 %v3337, 7
      %v3339 = vsub.s32 2, %v3338
      %v3340 = vrot.slane %v2803, %v3339
      %v3341 = vmul.f32 %v3305, %v3340
      %v3342 = vmul.f32 %v3306, %v3340
      %v3343 = vmul.f32 %v3307, %v3340
      %v3344 = vmul.f32 %v3308, %v3340
      %v3345 = vmul.f32 %v3309, %v3340
      %v3346 = vmul.f32 %v3310, %v3340
      %v3347 = vmul.f32 %v3311, %v3340
      %v3348 = vmul.f32 %v3312, %v3340
      %v3349 = vmul.f32 %v3313, %v3340
      %v3350 = vmul.f32 %v3314, %v3340
      %v3351 = vmul.f32 %v3315, %v3340
      %v3352 = vmul.f32 %v3316, %v3340
      %v3353 = vmul.f32 %v3317, %v3340
      %v3354 = vmul.f32 %v3318, %v3340
      %v3355 = vmul.f32 %v3319, %v3340
      %v3356 = vmul.f32 %v3320, %v3340
      %v3357 = vmul.f32 %v3321, %v3340
      %v3358 = vmul.f32 %v3322, %v3340
      %v3359 = vmul.f32 %v3323, %v3340
      %v3360 = vmul.f32 %v3324, %v3340
      %v3361 = vmul.f32 %v3325, %v3340
      %v3362 = vmul.f32 %v3326, %v3340
      %v3363 = vmul.f32 %v3327, %v3340
      %v3364 = vmul.f32 %v3328, %v3340
      %v3365 = vmul.f32 %v3329, %v3340
      %v3366 = vmul.f32 %v3330, %v3340
      %v3367 = vmul.f32 %v3331, %v3340
      %v3368 = vmul.f32 %v3332, %v3340
      %v3369 = vmul.f32 %v3333, %v3340
      %v3370 = vmul.f32 %v3334, %v3340
      %v3371 = vmul.f32 %v3335, %v3340
      %v3372 = vmul.f32 %v3336, %v3340
      %v3373 = vadd.f32 %v3273, %v3341
      %v3374 = vadd.f32 %v3274, %v3342
      %v3375 = vadd.f32 %v3275, %v3343
      %v3376 = vadd.f32 %v3276, %v3344
      %v3377 = vadd.f32 %v3277, %v3345
      %v3378 = vadd.f32 %v3278, %v3346
      %v3379 = vadd.f32 %v3279, %v3347
      %v3380 = vadd.f32 %v3280, %v3348
      %v3381 = vadd.f32 %v3281, %v3349
      %v3382 = vadd.f32 %v3282, %v3350
      %v3383 = vadd.f32 %v3283, %v3351
      %v3384 = vadd.f32 %v3284, %v3352
      %v3385 = vadd.f32 %v3285, %v3353
      %v3386 = vadd.f32 %v3286, %v3354
      %v3387 = vadd.f32 %v3287, %v3355
      %v3388 = vadd.f32 %v3288, %v3356
      %v3389 = vadd.f32 %v3289, %v3357
      %v3390 = vadd.f32 %v3290, %v3358
      %v3391 = vadd.f32 %v3291, %v3359
      %v3392 = vadd.f32 %v3292, %v3360
      %v3393 = vadd.f32 %v3293, %v3361
      %v3394 = vadd.f32 %v3294, %v3362
      %v3395 = vadd.f32 %v3295, %v3363
      %v3396 = vadd.f32 %v3296, %v3364
      %v3397 = vadd.f32 %v3297, %v3365
      %v3398 = vadd.f32 %v3298, %v3366
      %v3399 = vadd.f32 %v3299, %v3367
      %v3400 = vadd.f32 %v3300, %v3368
      %v3401 = vadd.f32 %v3301, %v3369
      %v3402 = vadd.f32 %v3302, %v3370
      %v3403 = vadd.f32 %v3303, %v3371
      %v3404 = vadd.f32 %v3304, %v3372
      %s3405 = scalar_lea.vmem [#allocation4], 48
      %v3406 = vld [vmem:[%s3405] sm:$0xff]
      %v3407 = vld [vmem:[%s3405 + $0x8] sm:$0xff]
      %v3408 = vld [vmem:[%s3405 + $0x18] sm:$0xff]
      %v3409 = vld [vmem:[%s3405 + $0x20] sm:$0xff]
      %v3410 = vld [vmem:[%s3405 + $0x30] sm:$0xff]
      %v3411 = vld [vmem:[%s3405 + $0x38] sm:$0xff]
      %v3412 = vld [vmem:[%s3405 + $0x48] sm:$0xff]
      %v3413 = vld [vmem:[%s3405 + $0x50] sm:$0xff]
      %v3414 = vld [vmem:[%s3405 + $0x60] sm:$0xff]
      %v3415 = vld [vmem:[%s3405 + $0x68] sm:$0xff]
      %v3416 = vld [vmem:[%s3405 + $0x78] sm:$0xff]
      %v3417 = vld [vmem:[%s3405 + $0x80] sm:$0xff]
      %v3418 = vld [vmem:[%s3405 + $0x90] sm:$0xff]
      %v3419 = vld [vmem:[%s3405 + $0x98] sm:$0xff]
      %v3420 = vld [vmem:[%s3405 + $0xa8] sm:$0xff]
      %v3421 = vld [vmem:[%s3405 + $0xb0] sm:$0xff]
      %v3422 = vld [vmem:[%s3405 + $0xc0] sm:$0xff]
      %v3423 = vld [vmem:[%s3405 + $0xc8] sm:$0xff]
      %v3424 = vld [vmem:[%s3405 + $0xd8] sm:$0xff]
      %v3425 = vld [vmem:[%s3405 + $0xe0] sm:$0xff]
      %v3426 = vld [vmem:[%s3405 + $0xf0] sm:$0xff]
      %v3427 = vld [vmem:[%s3405 + $0xf8] sm:$0xff]
      %v3428 = vld [vmem:[%s3405 + $0x108] sm:$0xff]
      %v3429 = vld [vmem:[%s3405 + $0x110] sm:$0xff]
      %v3430 = vld [vmem:[%s3405 + $0x120] sm:$0xff]
      %v3431 = vld [vmem:[%s3405 + $0x128] sm:$0xff]
      %v3432 = vld [vmem:[%s3405 + $0x138] sm:$0xff]
      %v3433 = vld [vmem:[%s3405 + $0x140] sm:$0xff]
      %v3434 = vld [vmem:[%s3405 + $0x150] sm:$0xff]
      %v3435 = vld [vmem:[%s3405 + $0x158] sm:$0xff]
      %v3436 = vld [vmem:[%s3405 + $0x168] sm:$0xff]
      %v3437 = vld [vmem:[%s3405 + $0x170] sm:$0xff]
      %v3438 = vlaneseq
      %v3439 = vshrl.u32 %v3438, 7
      %v3440 = vsub.s32 0, %v3439
      %v3441 = vrot.slane %v2804, %v3440
      %v3442 = vmul.f32 %v3406, %v3441
      %v3443 = vmul.f32 %v3407, %v3441
      %v3444 = vmul.f32 %v3408, %v3441
      %v3445 = vmul.f32 %v3409, %v3441
      %v3446 = vmul.f32 %v3410, %v3441
      %v3447 = vmul.f32 %v3411, %v3441
      %v3448 = vmul.f32 %v3412, %v3441
      %v3449 = vmul.f32 %v3413, %v3441
      %v3450 = vmul.f32 %v3414, %v3441
      %v3451 = vmul.f32 %v3415, %v3441
      %v3452 = vmul.f32 %v3416, %v3441
      %v3453 = vmul.f32 %v3417, %v3441
      %v3454 = vmul.f32 %v3418, %v3441
      %v3455 = vmul.f32 %v3419, %v3441
      %v3456 = vmul.f32 %v3420, %v3441
      %v3457 = vmul.f32 %v3421, %v3441
      %v3458 = vmul.f32 %v3422, %v3441
      %v3459 = vmul.f32 %v3423, %v3441
      %v3460 = vmul.f32 %v3424, %v3441
      %v3461 = vmul.f32 %v3425, %v3441
      %v3462 = vmul.f32 %v3426, %v3441
      %v3463 = vmul.f32 %v3427, %v3441
      %v3464 = vmul.f32 %v3428, %v3441
      %v3465 = vmul.f32 %v3429, %v3441
      %v3466 = vmul.f32 %v3430, %v3441
      %v3467 = vmul.f32 %v3431, %v3441
      %v3468 = vmul.f32 %v3432, %v3441
      %v3469 = vmul.f32 %v3433, %v3441
      %v3470 = vmul.f32 %v3434, %v3441
      %v3471 = vmul.f32 %v3435, %v3441
      %v3472 = vmul.f32 %v3436, %v3441
      %v3473 = vmul.f32 %v3437, %v3441
      %v3474 = vadd.f32 %v3373, %v3442
      %v3475 = vadd.f32 %v3374, %v3443
      %v3476 = vadd.f32 %v3375, %v3444
      %v3477 = vadd.f32 %v3376, %v3445
      %v3478 = vadd.f32 %v3377, %v3446
      %v3479 = vadd.f32 %v3378, %v3447
      %v3480 = vadd.f32 %v3379, %v3448
      %v3481 = vadd.f32 %v3380, %v3449
      %v3482 = vadd.f32 %v3381, %v3450
      %v3483 = vadd.f32 %v3382, %v3451
      %v3484 = vadd.f32 %v3383, %v3452
      %v3485 = vadd.f32 %v3384, %v3453
      %v3486 = vadd.f32 %v3385, %v3454
      %v3487 = vadd.f32 %v3386, %v3455
      %v3488 = vadd.f32 %v3387, %v3456
      %v3489 = vadd.f32 %v3388, %v3457
      %v3490 = vadd.f32 %v3389, %v3458
      %v3491 = vadd.f32 %v3390, %v3459
      %v3492 = vadd.f32 %v3391, %v3460
      %v3493 = vadd.f32 %v3392, %v3461
      %v3494 = vadd.f32 %v3393, %v3462
      %v3495 = vadd.f32 %v3394, %v3463
      %v3496 = vadd.f32 %v3395, %v3464
      %v3497 = vadd.f32 %v3396, %v3465
      %v3498 = vadd.f32 %v3397, %v3466
      %v3499 = vadd.f32 %v3398, %v3467
      %v3500 = vadd.f32 %v3399, %v3468
      %v3501 = vadd.f32 %v3400, %v3469
      %v3502 = vadd.f32 %v3401, %v3470
      %v3503 = vadd.f32 %v3402, %v3471
      %v3504 = vadd.f32 %v3403, %v3472
      %v3505 = vadd.f32 %v3404, %v3473
      %v3506 = vld [vmem:[%s3405 + $0x1] sm:$0xff]
      %v3507 = vld [vmem:[%s3405 + $0x9] sm:$0xff]
      %v3508 = vld [vmem:[%s3405 + $0x19] sm:$0xff]
      %v3509 = vld [vmem:[%s3405 + $0x21] sm:$0xff]
      %v3510 = vld [vmem:[%s3405 + $0x31] sm:$0xff]
      %v3511 = vld [vmem:[%s3405 + $0x39] sm:$0xff]
      %v3512 = vld [vmem:[%s3405 + $0x49] sm:$0xff]
      %v3513 = vld [vmem:[%s3405 + $0x51] sm:$0xff]
      %v3514 = vld [vmem:[%s3405 + $0x61] sm:$0xff]
      %v3515 = vld [vmem:[%s3405 + $0x69] sm:$0xff]
      %v3516 = vld [vmem:[%s3405 + $0x79] sm:$0xff]
      %v3517 = vld [vmem:[%s3405 + $0x81] sm:$0xff]
      %v3518 = vld [vmem:[%s3405 + $0x91] sm:$0xff]
      %v3519 = vld [vmem:[%s3405 + $0x99] sm:$0xff]
      %v3520 = vld [vmem:[%s3405 + $0xa9] sm:$0xff]
      %v3521 = vld [vmem:[%s3405 + $0xb1] sm:$0xff]
      %v3522 = vld [vmem:[%s3405 + $0xc1] sm:$0xff]
      %v3523 = vld [vmem:[%s3405 + $0xc9] sm:$0xff]
      %v3524 = vld [vmem:[%s3405 + $0xd9] sm:$0xff]
      %v3525 = vld [vmem:[%s3405 + $0xe1] sm:$0xff]
      %v3526 = vld [vmem:[%s3405 + $0xf1] sm:$0xff]
      %v3527 = vld [vmem:[%s3405 + $0xf9] sm:$0xff]
      %v3528 = vld [vmem:[%s3405 + $0x109] sm:$0xff]
      %v3529 = vld [vmem:[%s3405 + $0x111] sm:$0xff]
      %v3530 = vld [vmem:[%s3405 + $0x121] sm:$0xff]
      %v3531 = vld [vmem:[%s3405 + $0x129] sm:$0xff]
      %v3532 = vld [vmem:[%s3405 + $0x139] sm:$0xff]
      %v3533 = vld [vmem:[%s3405 + $0x141] sm:$0xff]
      %v3534 = vld [vmem:[%s3405 + $0x151] sm:$0xff]
      %v3535 = vld [vmem:[%s3405 + $0x159] sm:$0xff]
      %v3536 = vld [vmem:[%s3405 + $0x169] sm:$0xff]
      %v3537 = vld [vmem:[%s3405 + $0x171] sm:$0xff]
      %v3538 = vlaneseq
      %v3539 = vshrl.u32 %v3538, 7
      %v3540 = vsub.s32 1, %v3539
      %v3541 = vrot.slane %v2804, %v3540
      %v3542 = vmul.f32 %v3506, %v3541
      %v3543 = vmul.f32 %v3507, %v3541
      %v3544 = vmul.f32 %v3508, %v3541
      %v3545 = vmul.f32 %v3509, %v3541
      %v3546 = vmul.f32 %v3510, %v3541
      %v3547 = vmul.f32 %v3511, %v3541
      %v3548 = vmul.f32 %v3512, %v3541
      %v3549 = vmul.f32 %v3513, %v3541
      %v3550 = vmul.f32 %v3514, %v3541
      %v3551 = vmul.f32 %v3515, %v3541
      %v3552 = vmul.f32 %v3516, %v3541
      %v3553 = vmul.f32 %v3517, %v3541
      %v3554 = vmul.f32 %v3518, %v3541
      %v3555 = vmul.f32 %v3519, %v3541
      %v3556 = vmul.f32 %v3520, %v3541
      %v3557 = vmul.f32 %v3521, %v3541
      %v3558 = vmul.f32 %v3522, %v3541
      %v3559 = vmul.f32 %v3523, %v3541
      %v3560 = vmul.f32 %v3524, %v3541
      %v3561 = vmul.f32 %v3525, %v3541
      %v3562 = vmul.f32 %v3526, %v3541
      %v3563 = vmul.f32 %v3527, %v3541
      %v3564 = vmul.f32 %v3528, %v3541
      %v3565 = vmul.f32 %v3529, %v3541
      %v3566 = vmul.f32 %v3530, %v3541
      %v3567 = vmul.f32 %v3531, %v3541
      %v3568 = vmul.f32 %v3532, %v3541
      %v3569 = vmul.f32 %v3533, %v3541
      %v3570 = vmul.f32 %v3534, %v3541
      %v3571 = vmul.f32 %v3535, %v3541
      %v3572 = vmul.f32 %v3536, %v3541
      %v3573 = vmul.f32 %v3537, %v3541
      %v3574 = vadd.f32 %v3474, %v3542
      %v3575 = vadd.f32 %v3475, %v3543
      %v3576 = vadd.f32 %v3476, %v3544
      %v3577 = vadd.f32 %v3477, %v3545
      %v3578 = vadd.f32 %v3478, %v3546
      %v3579 = vadd.f32 %v3479, %v3547
      %v3580 = vadd.f32 %v3480, %v3548
      %v3581 = vadd.f32 %v3481, %v3549
      %v3582 = vadd.f32 %v3482, %v3550
      %v3583 = vadd.f32 %v3483, %v3551
      %v3584 = vadd.f32 %v3484, %v3552
      %v3585 = vadd.f32 %v3485, %v3553
      %v3586 = vadd.f32 %v3486, %v3554
      %v3587 = vadd.f32 %v3487, %v3555
      %v3588 = vadd.f32 %v3488, %v3556
      %v3589 = vadd.f32 %v3489, %v3557
      %v3590 = vadd.f32 %v3490, %v3558
      %v3591 = vadd.f32 %v3491, %v3559
      %v3592 = vadd.f32 %v3492, %v3560
      %v3593 = vadd.f32 %v3493, %v3561
      %v3594 = vadd.f32 %v3494, %v3562
      %v3595 = vadd.f32 %v3495, %v3563
      %v3596 = vadd.f32 %v3496, %v3564
      %v3597 = vadd.f32 %v3497, %v3565
      %v3598 = vadd.f32 %v3498, %v3566
      %v3599 = vadd.f32 %v3499, %v3567
      %v3600 = vadd.f32 %v3500, %v3568
      %v3601 = vadd.f32 %v3501, %v3569
      %v3602 = vadd.f32 %v3502, %v3570
      %v3603 = vadd.f32 %v3503, %v3571
      %v3604 = vadd.f32 %v3504, %v3572
      %v3605 = vadd.f32 %v3505, %v3573
      %v3606 = vld [vmem:[%s3405 + $0x2] sm:$0xff]
      %v3607 = vld [vmem:[%s3405 + $0xa] sm:$0xff]
      %v3608 = vld [vmem:[%s3405 + $0x1a] sm:$0xff]
      %v3609 = vld [vmem:[%s3405 + $0x22] sm:$0xff]
      %v3610 = vld [vmem:[%s3405 + $0x32] sm:$0xff]
      %v3611 = vld [vmem:[%s3405 + $0x3a] sm:$0xff]
      %v3612 = vld [vmem:[%s3405 + $0x4a] sm:$0xff]
      %v3613 = vld [vmem:[%s3405 + $0x52] sm:$0xff]
      %v3614 = vld [vmem:[%s3405 + $0x62] sm:$0xff]
      %v3615 = vld [vmem:[%s3405 + $0x6a] sm:$0xff]
      %v3616 = vld [vmem:[%s3405 + $0x7a] sm:$0xff]
      %v3617 = vld [vmem:[%s3405 + $0x82] sm:$0xff]
      %v3618 = vld [vmem:[%s3405 + $0x92] sm:$0xff]
      %v3619 = vld [vmem:[%s3405 + $0x9a] sm:$0xff]
      %v3620 = vld [vmem:[%s3405 + $0xaa] sm:$0xff]
      %v3621 = vld [vmem:[%s3405 + $0xb2] sm:$0xff]
      %v3622 = vld [vmem:[%s3405 + $0xc2] sm:$0xff]
      %v3623 = vld [vmem:[%s3405 + $0xca] sm:$0xff]
      %v3624 = vld [vmem:[%s3405 + $0xda] sm:$0xff]
      %v3625 = vld [vmem:[%s3405 + $0xe2] sm:$0xff]
      %v3626 = vld [vmem:[%s3405 + $0xf2] sm:$0xff]
      %v3627 = vld [vmem:[%s3405 + $0xfa] sm:$0xff]
      %v3628 = vld [vmem:[%s3405 + $0x10a] sm:$0xff]
      %v3629 = vld [vmem:[%s3405 + $0x112] sm:$0xff]
      %v3630 = vld [vmem:[%s3405 + $0x122] sm:$0xff]
      %v3631 = vld [vmem:[%s3405 + $0x12a] sm:$0xff]
      %v3632 = vld [vmem:[%s3405 + $0x13a] sm:$0xff]
      %v3633 = vld [vmem:[%s3405 + $0x142] sm:$0xff]
      %v3634 = vld [vmem:[%s3405 + $0x152] sm:$0xff]
      %v3635 = vld [vmem:[%s3405 + $0x15a] sm:$0xff]
      %v3636 = vld [vmem:[%s3405 + $0x16a] sm:$0xff]
      %v3637 = vld [vmem:[%s3405 + $0x172] sm:$0xff]
      %v3638 = vlaneseq
      %v3639 = vshrl.u32 %v3638, 7
      %v3640 = vsub.s32 2, %v3639
      %v3641 = vrot.slane %v2804, %v3640
      %v3642 = vmul.f32 %v3606, %v3641
      %v3643 = vmul.f32 %v3607, %v3641
      %v3644 = vmul.f32 %v3608, %v3641
      %v3645 = vmul.f32 %v3609, %v3641
      %v3646 = vmul.f32 %v3610, %v3641
      %v3647 = vmul.f32 %v3611, %v3641
      %v3648 = vmul.f32 %v3612, %v3641
      %v3649 = vmul.f32 %v3613, %v3641
      %v3650 = vmul.f32 %v3614, %v3641
      %v3651 = vmul.f32 %v3615, %v3641
      %v3652 = vmul.f32 %v3616, %v3641
      %v3653 = vmul.f32 %v3617, %v3641
      %v3654 = vmul.f32 %v3618, %v3641
      %v3655 = vmul.f32 %v3619, %v3641
      %v3656 = vmul.f32 %v3620, %v3641
      %v3657 = vmul.f32 %v3621, %v3641
      %v3658 = vmul.f32 %v3622, %v3641
      %v3659 = vmul.f32 %v3623, %v3641
      %v3660 = vmul.f32 %v3624, %v3641
      %v3661 = vmul.f32 %v3625, %v3641
      %v3662 = vmul.f32 %v3626, %v3641
      %v3663 = vmul.f32 %v3627, %v3641
      %v3664 = vmul.f32 %v3628, %v3641
      %v3665 = vmul.f32 %v3629, %v3641
      %v3666 = vmul.f32 %v3630, %v3641
      %v3667 = vmul.f32 %v3631, %v3641
      %v3668 = vmul.f32 %v3632, %v3641
      %v3669 = vmul.f32 %v3633, %v3641
      %v3670 = vmul.f32 %v3634, %v3641
      %v3671 = vmul.f32 %v3635, %v3641
      %v3672 = vmul.f32 %v3636, %v3641
      %v3673 = vmul.f32 %v3637, %v3641
      %v3674 = vadd.f32 %v3574, %v3642
      %v3675 = vadd.f32 %v3575, %v3643
      %v3676 = vadd.f32 %v3576, %v3644
      %v3677 = vadd.f32 %v3577, %v3645
      %v3678 = vadd.f32 %v3578, %v3646
      %v3679 = vadd.f32 %v3579, %v3647
      %v3680 = vadd.f32 %v3580, %v3648
      %v3681 = vadd.f32 %v3581, %v3649
      %v3682 = vadd.f32 %v3582, %v3650
      %v3683 = vadd.f32 %v3583, %v3651
      %v3684 = vadd.f32 %v3584, %v3652
      %v3685 = vadd.f32 %v3585, %v3653
      %v3686 = vadd.f32 %v3586, %v3654
      %v3687 = vadd.f32 %v3587, %v3655
      %v3688 = vadd.f32 %v3588, %v3656
      %v3689 = vadd.f32 %v3589, %v3657
      %v3690 = vadd.f32 %v3590, %v3658
      %v3691 = vadd.f32 %v3591, %v3659
      %v3692 = vadd.f32 %v3592, %v3660
      %v3693 = vadd.f32 %v3593, %v3661
      %v3694 = vadd.f32 %v3594, %v3662
      %v3695 = vadd.f32 %v3595, %v3663
      %v3696 = vadd.f32 %v3596, %v3664
      %v3697 = vadd.f32 %v3597, %v3665
      %v3698 = vadd.f32 %v3598, %v3666
      %v3699 = vadd.f32 %v3599, %v3667
      %v3700 = vadd.f32 %v3600, %v3668
      %v3701 = vadd.f32 %v3601, %v3669
      %v3702 = vadd.f32 %v3602, %v3670
      %v3703 = vadd.f32 %v3603, %v3671
      %v3704 = vadd.f32 %v3604, %v3672
      %v3705 = vadd.f32 %v3605, %v3673
      %v3706 = vld [vmem:[%s4] sm:$0x1]
      %v3708 = vlaneseq
      %v3709 = vshrl.u32 %v3708, 7
      %v3710 = vsub.s32 0, %v3709
      %v3711 = vrot.slane %v3706, %v3710
      %v3713 = vadd.f32 %v3674, %v3711
      %v3714 = vadd.f32 %v3675, %v3711
      %v3715 = vadd.f32 %v3676, %v3711
      %v3716 = vadd.f32 %v3677, %v3711
      %v3717 = vadd.f32 %v3678, %v3711
      %v3718 = vadd.f32 %v3679, %v3711
      %v3719 = vadd.f32 %v3680, %v3711
      %v3720 = vadd.f32 %v3681, %v3711
      %v3721 = vadd.f32 %v3682, %v3711
      %v3722 = vadd.f32 %v3683, %v3711
      %v3723 = vadd.f32 %v3684, %v3711
      %v3724 = vadd.f32 %v3685, %v3711
      %v3725 = vadd.f32 %v3686, %v3711
      %v3726 = vadd.f32 %v3687, %v3711
      %v3727 = vadd.f32 %v3688, %v3711
      %v3728 = vadd.f32 %v3689, %v3711
      %v3729 = vadd.f32 %v3690, %v3711
      %v3730 = vadd.f32 %v3691, %v3711
      %v3731 = vadd.f32 %v3692, %v3711
      %v3732 = vadd.f32 %v3693, %v3711
      %v3733 = vadd.f32 %v3694, %v3711
      %v3734 = vadd.f32 %v3695, %v3711
      %v3735 = vadd.f32 %v3696, %v3711
      %v3736 = vadd.f32 %v3697, %v3711
      %v3737 = vadd.f32 %v3698, %v3711
      %v3738 = vadd.f32 %v3699, %v3711
      %v3739 = vadd.f32 %v3700, %v3711
      %v3740 = vadd.f32 %v3701, %v3711
      %v3741 = vadd.f32 %v3702, %v3711
      %v3742 = vadd.f32 %v3703, %v3711
      %v3743 = vadd.f32 %v3704, %v3711
      %v3744 = vadd.f32 %v3705, %v3711
      %v3745 = vsub.f32 0.0, %v3713
      %v3746 = vsub.f32 0.0, %v3714
      %v3747 = vsub.f32 0.0, %v3715
      %v3748 = vsub.f32 0.0, %v3716
      %v3749 = vsub.f32 0.0, %v3717
      %v3750 = vsub.f32 0.0, %v3718
      %v3751 = vsub.f32 0.0, %v3719
      %v3752 = vsub.f32 0.0, %v3720
      %v3753 = vsub.f32 0.0, %v3721
      %v3754 = vsub.f32 0.0, %v3722
      %v3755 = vsub.f32 0.0, %v3723
      %v3756 = vsub.f32 0.0, %v3724
      %v3757 = vsub.f32 0.0, %v3725
      %v3758 = vsub.f32 0.0, %v3726
      %v3759 = vsub.f32 0.0, %v3727
      %v3760 = vsub.f32 0.0, %v3728
      %v3761 = vsub.f32 0.0, %v3729
      %v3762 = vsub.f32 0.0, %v3730
      %v3763 = vsub.f32 0.0, %v3731
      %v3764 = vsub.f32 0.0, %v3732
      %v3765 = vsub.f32 0.0, %v3733
      %v3766 = vsub.f32 0.0, %v3734
      %v3767 = vsub.f32 0.0, %v3735
      %v3768 = vsub.f32 0.0, %v3736
      %v3769 = vsub.f32 0.0, %v3737
      %v3770 = vsub.f32 0.0, %v3738
      %v3771 = vsub.f32 0.0, %v3739
      %v3772 = vsub.f32 0.0, %v3740
      %v3773 = vsub.f32 0.0, %v3741
      %v3774 = vsub.f32 0.0, %v3742
      %v3775 = vsub.f32 0.0, %v3743
      %v3776 = vsub.f32 0.0, %v3744
      %v3777 = vmul.f32 %v3745, 1.442695
      %v3778 = vpow.pop %v3777
      %v3779 = vmul.f32 %v3746, 1.442695
      %v3780 = vpow.pop %v3779
      %v3781 = vmul.f32 %v3747, 1.442695
      %v3782 = vpow.pop %v3781
      %v3783 = vmul.f32 %v3748, 1.442695
      %v3784 = vpow.pop %v3783
      %v3785 = vmul.f32 %v3749, 1.442695
      %v3786 = vpow.pop %v3785
      %v3787 = vmul.f32 %v3750, 1.442695
      %v3788 = vpow.pop %v3787
      %v3789 = vmul.f32 %v3751, 1.442695
      %v3790 = vpow.pop %v3789
      %v3791 = vmul.f32 %v3752, 1.442695
      %v3792 = vpow.pop %v3791
      %v3793 = vmul.f32 %v3753, 1.442695
      %v3794 = vpow.pop %v3793
      %v3795 = vmul.f32 %v3754, 1.442695
      %v3796 = vpow.pop %v3795
      %v3797 = vmul.f32 %v3755, 1.442695
      %v3798 = vpow.pop %v3797
      %v3799 = vmul.f32 %v3756, 1.442695
      %v3800 = vpow.pop %v3799
      %v3801 = vmul.f32 %v3757, 1.442695
      %v3802 = vpow.pop %v3801
      %v3803 = vmul.f32 %v3758, 1.442695
      %v3804 = vpow.pop %v3803
      %v3805 = vmul.f32 %v3759, 1.442695
      %v3806 = vpow.pop %v3805
      %v3807 = vmul.f32 %v3760, 1.442695
      %v3808 = vpow.pop %v3807
      %v3809 = vmul.f32 %v3761, 1.442695
      %v3810 = vpow.pop %v3809
      %v3811 = vmul.f32 %v3762, 1.442695
      %v3812 = vpow.pop %v3811
      %v3813 = vmul.f32 %v3763, 1.442695
      %v3814 = vpow.pop %v3813
      %v3815 = vmul.f32 %v3764, 1.442695
      %v3816 = vpow.pop %v3815
      %v3817 = vmul.f32 %v3765, 1.442695
      %v3818 = vpow.pop %v3817
      %v3819 = vmul.f32 %v3766, 1.442695
      %v3820 = vpow.pop %v3819
      %v3821 = vmul.f32 %v3767, 1.442695
      %v3822 = vpow.pop %v3821
      %v3823 = vmul.f32 %v3768, 1.442695
      %v3824 = vpow.pop %v3823
      %v3825 = vmul.f32 %v3769, 1.442695
      %v3826 = vpow.pop %v3825
      %v3827 = vmul.f32 %v3770, 1.442695
      %v3828 = vpow.pop %v3827
      %v3829 = vmul.f32 %v3771, 1.442695
      %v3830 = vpow.pop %v3829
      %v3831 = vmul.f32 %v3772, 1.442695
      %v3832 = vpow.pop %v3831
      %v3833 = vmul.f32 %v3773, 1.442695
      %v3834 = vpow.pop %v3833
      %v3835 = vmul.f32 %v3774, 1.442695
      %v3836 = vpow.pop %v3835
      %v3837 = vmul.f32 %v3775, 1.442695
      %v3838 = vpow.pop %v3837
      %v3839 = vmul.f32 %v3776, 1.442695
      %v3840 = vpow.pop %v3839
      %v3841 = vadd.f32 %v3778, 1.0
      %v3842 = vadd.f32 %v3780, 1.0
      %v3843 = vadd.f32 %v3782, 1.0
      %v3844 = vadd.f32 %v3784, 1.0
      %v3845 = vadd.f32 %v3786, 1.0
      %v3846 = vadd.f32 %v3788, 1.0
      %v3847 = vadd.f32 %v3790, 1.0
      %v3848 = vadd.f32 %v3792, 1.0
      %v3849 = vadd.f32 %v3794, 1.0
      %v3850 = vadd.f32 %v3796, 1.0
      %v3851 = vadd.f32 %v3798, 1.0
      %v3852 = vadd.f32 %v3800, 1.0
      %v3853 = vadd.f32 %v3802, 1.0
      %v3854 = vadd.f32 %v3804, 1.0
      %v3855 = vadd.f32 %v3806, 1.0
      %v3856 = vadd.f32 %v3808, 1.0
      %v3857 = vadd.f32 %v3810, 1.0
      %v3858 = vadd.f32 %v3812, 1.0
      %v3859 = vadd.f32 %v3814, 1.0
      %v3860 = vadd.f32 %v3816, 1.0
      %v3861 = vadd.f32 %v3818, 1.0
      %v3862 = vadd.f32 %v3820, 1.0
      %v3863 = vadd.f32 %v3822, 1.0
      %v3864 = vadd.f32 %v3824, 1.0
      %v3865 = vadd.f32 %v3826, 1.0
      %v3866 = vadd.f32 %v3828, 1.0
      %v3867 = vadd.f32 %v3830, 1.0
      %v3868 = vadd.f32 %v3832, 1.0
      %v3869 = vadd.f32 %v3834, 1.0
      %v3870 = vadd.f32 %v3836, 1.0
      %v3871 = vadd.f32 %v3838, 1.0
      %v3872 = vadd.f32 %v3840, 1.0
      %v3873 = vrcp.pop %v3841
      %v3874 = vrcp.pop %v3842
      %v3875 = vrcp.pop %v3843
      %v3876 = vrcp.pop %v3844
      %v3877 = vrcp.pop %v3845
      %v3878 = vrcp.pop %v3846
      %v3879 = vrcp.pop %v3847
      %v3880 = vrcp.pop %v3848
      %v3881 = vrcp.pop %v3849
      %v3882 = vrcp.pop %v3850
      %v3883 = vrcp.pop %v3851
      %v3884 = vrcp.pop %v3852
      %v3885 = vrcp.pop %v3853
      %v3886 = vrcp.pop %v3854
      %v3887 = vrcp.pop %v3855
      %v3888 = vrcp.pop %v3856
      %v3889 = vrcp.pop %v3857
      %v3890 = vrcp.pop %v3858
      %v3891 = vrcp.pop %v3859
      %v3892 = vrcp.pop %v3860
      %v3893 = vrcp.pop %v3861
      %v3894 = vrcp.pop %v3862
      %v3895 = vrcp.pop %v3863
      %v3896 = vrcp.pop %v3864
      %v3897 = vrcp.pop %v3865
      %v3898 = vrcp.pop %v3866
      %v3899 = vrcp.pop %v3867
      %v3900 = vrcp.pop %v3868
      %v3901 = vrcp.pop %v3869
      %v3902 = vrcp.pop %v3870
      %v3903 = vrcp.pop %v3871
      %v3904 = vrcp.pop %v3872
      %v3905 = vmul.f32 %v3713, %v3873
      %v3906 = vmul.f32 %v3714, %v3874
      %v3907 = vmul.f32 %v3715, %v3875
      %v3908 = vmul.f32 %v3716, %v3876
      %v3909 = vmul.f32 %v3717, %v3877
      %v3910 = vmul.f32 %v3718, %v3878
      %v3911 = vmul.f32 %v3719, %v3879
      %v3912 = vmul.f32 %v3720, %v3880
      %v3913 = vmul.f32 %v3721, %v3881
      %v3914 = vmul.f32 %v3722, %v3882
      %v3915 = vmul.f32 %v3723, %v3883
      %v3916 = vmul.f32 %v3724, %v3884
      %v3917 = vmul.f32 %v3725, %v3885
      %v3918 = vmul.f32 %v3726, %v3886
      %v3919 = vmul.f32 %v3727, %v3887
      %v3920 = vmul.f32 %v3728, %v3888
      %v3921 = vmul.f32 %v3729, %v3889
      %v3922 = vmul.f32 %v3730, %v3890
      %v3923 = vmul.f32 %v3731, %v3891
      %v3924 = vmul.f32 %v3732, %v3892
      %v3925 = vmul.f32 %v3733, %v3893
      %v3926 = vmul.f32 %v3734, %v3894
      %v3927 = vmul.f32 %v3735, %v3895
      %v3928 = vmul.f32 %v3736, %v3896
      %v3929 = vmul.f32 %v3737, %v3897
      %v3930 = vmul.f32 %v3738, %v3898
      %v3931 = vmul.f32 %v3739, %v3899
      %v3932 = vmul.f32 %v3740, %v3900
      %v3933 = vmul.f32 %v3741, %v3901
      %v3934 = vmul.f32 %v3742, %v3902
      %v3935 = vmul.f32 %v3743, %v3903
      %v3936 = vmul.f32 %v3744, %v3904
      %v3937 = vsel %vm2713, %v3905, 0.0
      %v3938 = vsel %vm2713, %v3906, 0.0
      %v3939 = vadd.f32 %v3937, %v3938
      %v3940 = vsel %vm2713, %v3907, 0.0
      %v3941 = vadd.f32 %v3939, %v3940
      %v3942 = vsel %vm2713, %v3908, 0.0
      %v3943 = vadd.f32 %v3941, %v3942
      %v3944 = vsel %vm2713, %v3909, 0.0
      %v3945 = vadd.f32 %v3943, %v3944
      %v3946 = vsel %vm2713, %v3910, 0.0
      %v3947 = vadd.f32 %v3945, %v3946
      %v3948 = vsel %vm2713, %v3911, 0.0
      %v3949 = vadd.f32 %v3947, %v3948
      %v3950 = vsel %vm2713, %v3912, 0.0
      %v3951 = vadd.f32 %v3949, %v3950
      %v3952 = vsel %vm2713, %v3913, 0.0
      %v3953 = vadd.f32 %v3951, %v3952
      %v3954 = vsel %vm2713, %v3914, 0.0
      %v3955 = vadd.f32 %v3953, %v3954
      %v3956 = vsel %vm2713, %v3915, 0.0
      %v3957 = vadd.f32 %v3955, %v3956
      %v3958 = vsel %vm2713, %v3916, 0.0
      %v3959 = vadd.f32 %v3957, %v3958
      %v3960 = vsel %vm2713, %v3917, 0.0
      %v3961 = vadd.f32 %v3959, %v3960
      %v3962 = vsel %vm2713, %v3918, 0.0
      %v3963 = vadd.f32 %v3961, %v3962
      %v3964 = vsel %vm2713, %v3919, 0.0
      %v3965 = vadd.f32 %v3963, %v3964
      %v3966 = vsel %vm2713, %v3920, 0.0
      %v3967 = vadd.f32 %v3965, %v3966
      %v3968 = vsel %vm2713, %v3921, 0.0
      %v3969 = vadd.f32 %v3967, %v3968
      %v3970 = vsel %vm2713, %v3922, 0.0
      %v3971 = vadd.f32 %v3969, %v3970
      %v3972 = vsel %vm2713, %v3923, 0.0
      %v3973 = vadd.f32 %v3971, %v3972
      %v3974 = vsel %vm2713, %v3924, 0.0
      %v3975 = vadd.f32 %v3973, %v3974
      %v3976 = vsel %vm2713, %v3925, 0.0
      %v3977 = vadd.f32 %v3975, %v3976
      %v3978 = vsel %vm2713, %v3926, 0.0
      %v3979 = vadd.f32 %v3977, %v3978
      %v3980 = vsel %vm2713, %v3927, 0.0
      %v3981 = vadd.f32 %v3979, %v3980
      %v3982 = vsel %vm2713, %v3928, 0.0
      %v3983 = vadd.f32 %v3981, %v3982
      %v3984 = vsel %vm2713, %v3929, 0.0
      %v3985 = vadd.f32 %v3983, %v3984
      %v3986 = vsel %vm2713, %v3930, 0.0
      %v3987 = vadd.f32 %v3985, %v3986
      %v3988 = vsel %vm2713, %v3931, 0.0
      %v3989 = vadd.f32 %v3987, %v3988
      %v3990 = vsel %vm2713, %v3932, 0.0
      %v3991 = vadd.f32 %v3989, %v3990
      %v3992 = vsel %vm2713, %v3933, 0.0
      %v3993 = vadd.f32 %v3991, %v3992
      %v3994 = vsel %vm2713, %v3934, 0.0
      %v3995 = vadd.f32 %v3993, %v3994
      %v3996 = vsel %vm2713, %v3935, 0.0
      %v3997 = vadd.f32 %v3995, %v3996
      %v3998 = vsel %vm2713, %v3936, 0.0
      %v3999 = vadd.f32 %v3997, %v3998
      %v4000 = vrot.slane %v3999, 4
      %v4001 = vadd.f32 %v3999, %v4000
      %v4002 = vrot.slane %v4001, 2
      %v4003 = vadd.f32 %v4001, %v4002
      %v4004 = vrot.slane %v4003, 1
      %v4005 = vadd.f32 %v4003, %v4004
      %v4006 = vld [vmem:[%s5] sm:$0xff]
      %v4007 = vld [vmem:[%s5 + $0x8] sm:$0xff]
      %v4008 = vld [vmem:[%s5 + $0x10] sm:$0xff]
      %v4009 = vld [vmem:[%s5 + $0x18] sm:$0xff]
      %v4010 = vld [vmem:[%s6] sm:$0x1]
      %v4012 = vsel %vm2713, %v4005, 0
      %4014 = vmatprep.subr.mxu0 0.0
      %4015 = vmatpush1.msra.mxu0 0.0
      %4016 = vmatprep.subr.mxu0 0.0
      %4017 = vmatpush1.msra.mxu0 0.0
      %4018 = vmatprep.subr.mxu0 0.0
      %4019 = vmatpush1.msra.mxu0 0.0
      %4020 = vmatprep.subr.mxu0 0.0
      %4021 = vmatpush1.msra.mxu0 0.0
      %4022 = vmatprep.subr.mxu0 0.0
      %4023 = vmatpush1.msra.mxu0 0.0
      %4024 = vmatprep.subr.mxu0 0.0
      %4025 = vmatpush1.msra.mxu0 0.0
      %4026 = vmatprep.subr.mxu0 0.0
      %4027 = vmatpush1.msra.mxu0 0.0
      %4028 = vmatprep.subr.mxu0 0.0
      %4029 = vmatpush1.msra.mxu0 0.0
      %4030 = vmatprep.subr.mxu0 0.0
      %4031 = vmatpush1.msra.mxu0 0.0
      %4032 = vmatprep.subr.mxu0 0.0
      %4033 = vmatpush1.msra.mxu0 0.0
      %4034 = vmatprep.subr.mxu0 0.0
      %4035 = vmatpush1.msra.mxu0 0.0
      %4036 = vmatprep.subr.mxu0 0.0
      %4037 = vmatpush1.msra.mxu0 0.0
      %4038 = vmatprep.subr.mxu0 0.0
      %4039 = vmatpush1.msra.mxu0 %v4009
      %4040 = vmatprep.subr.mxu0 0.0
      %4041 = vmatpush1.msra.mxu0 %v4008
      %4042 = vmatprep.subr.mxu0 0.0
      %4043 = vmatpush1.msra.mxu0 %v4007
      %4044 = vmatprep.subr.mxu0 0.0
      %4045 = vmatpush1.msra.mxu0 %v4006
      %4046 = vmatprep.subr.mxu0 0.0
      %4047 = vmatpush2.msra.mxu0 0.0
      %4048 = vmatprep.subr.mxu0 0.0
      %4049 = vmatpush2.msra.mxu0 0.0
      %4050 = vmatprep.subr.mxu0 0.0
      %4051 = vmatpush2.msra.mxu0 0.0
      %4052 = vmatprep.subr.mxu0 0.0
      %4053 = vmatpush2.msra.mxu0 0.0
      %4054 = vmatprep.subr.mxu0 0.0
      %4055 = vmatpush2.msra.mxu0 0.0
      %4056 = vmatprep.subr.mxu0 0.0
      %4057 = vmatpush2.msra.mxu0 0.0
      %4058 = vmatprep.subr.mxu0 0.0
      %4059 = vmatpush2.msra.mxu0 0.0
      %4060 = vmatprep.subr.mxu0 0.0
      %4061 = vmatpush2.msra.mxu0 0.0
      %4062 = vmatprep.subr.mxu0 0.0
      %4063 = vmatpush2.msra.mxu0 0.0
      %4064 = vmatprep.subr.mxu0 0.0
      %4065 = vmatpush2.msra.mxu0 0.0
      %4066 = vmatprep.subr.mxu0 0.0
      %4067 = vmatpush2.msra.mxu0 0.0
      %4068 = vmatprep.subr.mxu0 0.0
      %4069 = vmatpush2.msra.mxu0 0.0
      %4070 = vmatprep.subr.mxu0 0.0
      %4071 = vmatpush2.msra.mxu0 0.0
      %4072 = vmatprep.subr.mxu0 0.0
      %4073 = vmatpush2.msra.mxu0 0.0
      %4074 = vmatprep.subr.mxu0 0.0
      %4075 = vmatpush2.msra.mxu0 0.0
      %4076 = vmatprep.subr.mxu0 0.0
      %4077 = vmatpush2.msra.mxu0 0.0
      %4078 = vmatprep.mubr.f32.mxu0 0.0
      %4079 = vmatmul.mubr.f32.gmra.mxu0 %v4012
      %v4080 = vpop.f32.mrf.mxu0
      %v4081 = vadd.f32 %v4010, %v4080
      %v4082 = vpop.f32.mrf.mxu0
      %4083 = vdwg.mxu0
      %v4084 = vsub.f32 0.0, %v4081
      %v4085 = vmul.f32 %v4084, 1.442695
      %v4086 = vpow.pop %v4085
      %v4087 = vadd.f32 %v4086, 1.0
      %v4088 = vrcp.pop %v4087
      %v4089 = vmul.f32 %v4081, %v4088
      %v4090 = vld [vmem:[%s7] sm:$0x3]
      %v4091 = vld [vmem:[%s8] sm:$0x1]
      %vm4092 = vcmask 15360
      %v4094 = vsel %vm4092, %v4089, 0
      %vm4096 = vcmask 1041408
      %v4098 = vsel %vm4096, %v4090, 0
      %4100 = vmatprep.subr.mxu0 0.0
      %4101 = vmatpush1.msra.mxu0 0.0
      %4102 = vmatprep.subr.mxu0 0.0
      %4103 = vmatpush1.msra.mxu0 0.0
      %4104 = vmatprep.subr.mxu0 0.0
      %4105 = vmatpush1.msra.mxu0 0.0
      %4106 = vmatprep.subr.mxu0 0.0
      %4107 = vmatpush1.msra.mxu0 0.0
      %4108 = vmatprep.subr.mxu0 0.0
      %4109 = vmatpush1.msra.mxu0 0.0
      %4110 = vmatprep.subr.mxu0 0.0
      %4111 = vmatpush1.msra.mxu0 0.0
      %4112 = vmatprep.subr.mxu0 0.0
      %4113 = vmatpush1.msra.mxu0 0.0
      %4114 = vmatprep.subr.mxu0 0.0
      %4115 = vmatpush1.msra.mxu0 0.0
      %4116 = vmatprep.subr.mxu0 0.0
      %4117 = vmatpush1.msra.mxu0 0.0
      %4118 = vmatprep.subr.mxu0 0.0
      %4119 = vmatpush1.msra.mxu0 0.0
      %4120 = vmatprep.subr.mxu0 0.0
      %4121 = vmatpush1.msra.mxu0 0.0
      %4122 = vmatprep.subr.mxu0 0.0
      %4123 = vmatpush1.msra.mxu0 0.0
      %4124 = vmatprep.subr.mxu0 0.0
      %4125 = vmatpush1.msra.mxu0 0.0
      %4126 = vmatprep.subr.mxu0 0.0
      %4127 = vmatpush1.msra.mxu0 0.0
      %4128 = vmatprep.subr.mxu0 0.0
      %4129 = vmatpush1.msra.mxu0 0.0
      %4130 = vmatprep.subr.mxu0 0.0
      %4131 = vmatpush1.msra.mxu0 %v4098
      %4132 = vmatprep.subr.mxu0 0.0
      %4133 = vmatpush2.msra.mxu0 0.0
      %4134 = vmatprep.subr.mxu0 0.0
      %4135 = vmatpush2.msra.mxu0 0.0
      %4136 = vmatprep.subr.mxu0 0.0
      %4137 = vmatpush2.msra.mxu0 0.0
      %4138 = vmatprep.subr.mxu0 0.0
      %4139 = vmatpush2.msra.mxu0 0.0
      %4140 = vmatprep.subr.mxu0 0.0
      %4141 = vmatpush2.msra.mxu0 0.0
      %4142 = vmatprep.subr.mxu0 0.0
      %4143 = vmatpush2.msra.mxu0 0.0
      %4144 = vmatprep.subr.mxu0 0.0
      %4145 = vmatpush2.msra.mxu0 0.0
      %4146 = vmatprep.subr.mxu0 0.0
      %4147 = vmatpush2.msra.mxu0 0.0
      %4148 = vmatprep.subr.mxu0 0.0
      %4149 = vmatpush2.msra.mxu0 0.0
      %4150 = vmatprep.subr.mxu0 0.0
      %4151 = vmatpush2.msra.mxu0 0.0
      %4152 = vmatprep.subr.mxu0 0.0
      %4153 = vmatpush2.msra.mxu0 0.0
      %4154 = vmatprep.subr.mxu0 0.0
      %4155 = vmatpush2.msra.mxu0 0.0
      %4156 = vmatprep.subr.mxu0 0.0
      %4157 = vmatpush2.msra.mxu0 0.0
      %4158 = vmatprep.subr.mxu0 0.0
      %4159 = vmatpush2.msra.mxu0 0.0
      %4160 = vmatprep.subr.mxu0 0.0
      %4161 = vmatpush2.msra.mxu0 0.0
      %4162 = vmatprep.subr.mxu0 0.0
      %4163 = vmatpush2.msra.mxu0 0.0
      %4164 = vmatprep.mubr.f32.mxu0 0.0
      %4165 = vmatmul.mubr.f32.gmra.mxu0 %v4094
      %v4166 = vpop.f32.mrf.mxu0
      %v4167 = vadd.f32 %v4091, %v4166
      %v4168 = vpop.f32.mrf.mxu0
      %4169 = vdwg.mxu0
      %v4170 = vsub.f32 0.0, %v4167
      %v4171 = vmul.f32 %v4170, 1.442695
      %v4172 = vpow.pop %v4171
      %v4173 = vadd.f32 %v4172, 1.0
      %v4174 = vrcp.pop %v4173
      %v4175 = vlaneseq
      %v4176 = vshrl.u32 %v4175, 7
      %v4177 = vsub.s32 0, %v4176
      %v4178 = vrot.slane %v4174, %v4177
      %v4179 = vmul.f32 %v3905, %v4178
      %v4180 = vmul.f32 %v3906, %v4178
      %v4181 = vmul.f32 %v3907, %v4178
      %v4182 = vmul.f32 %v3908, %v4178
      %v4183 = vmul.f32 %v3909, %v4178
      %v4184 = vmul.f32 %v3910, %v4178
      %v4185 = vmul.f32 %v3911, %v4178
      %v4186 = vmul.f32 %v3912, %v4178
      %v4187 = vmul.f32 %v3913, %v4178
      %v4188 = vmul.f32 %v3914, %v4178
      %v4189 = vmul.f32 %v3915, %v4178
      %v4190 = vmul.f32 %v3916, %v4178
      %v4191 = vmul.f32 %v3917, %v4178
      %v4192 = vmul.f32 %v3918, %v4178
      %v4193 = vmul.f32 %v3919, %v4178
      %v4194 = vmul.f32 %v3920, %v4178
      %v4195 = vmul.f32 %v3921, %v4178
      %v4196 = vmul.f32 %v3922, %v4178
      %v4197 = vmul.f32 %v3923, %v4178
      %v4198 = vmul.f32 %v3924, %v4178
      %v4199 = vmul.f32 %v3925, %v4178
      %v4200 = vmul.f32 %v3926, %v4178
      %v4201 = vmul.f32 %v3927, %v4178
      %v4202 = vmul.f32 %v3928, %v4178
      %v4203 = vmul.f32 %v3929, %v4178
      %v4204 = vmul.f32 %v3930, %v4178
      %v4205 = vmul.f32 %v3931, %v4178
      %v4206 = vmul.f32 %v3932, %v4178
      %v4207 = vmul.f32 %v3933, %v4178
      %v4208 = vmul.f32 %v3934, %v4178
      %v4209 = vmul.f32 %v3935, %v4178
      %v4210 = vmul.f32 %v3936, %v4178
      %v4211 = vld [vmem:[%s9] sm:$0xff]
      %v4212 = vld [vmem:[%s9 + $0x8] sm:$0xff]
      %v4213 = vld [vmem:[%s9 + $0x10] sm:$0xff]
      %v4214 = vld [vmem:[%s9 + $0x18] sm:$0xff]
      %v4215 = vld [vmem:[%s10] sm:$0x1]
      %v4217 = vlaneseq
      %v4218 = vshrl.u32 %v4217, 7
      %v4219 = vsub.s32 0, %v4218
      %v4220 = vrot.slane %v4215, %v4219
      %v4223 = vsel %vm2713, %v4179, 0
      %v4226 = vsel %vm2713, %v4180, 0
      %v4229 = vsel %vm2713, %v4181, 0
      %v4232 = vsel %vm2713, %v4182, 0
      %v4235 = vsel %vm2713, %v4183, 0
      %v4238 = vsel %vm2713, %v4184, 0
      %v4241 = vsel %vm2713, %v4185, 0
      %v4244 = vsel %vm2713, %v4186, 0
      %v4247 = vsel %vm2713, %v4187, 0
      %v4250 = vsel %vm2713, %v4188, 0
      %v4253 = vsel %vm2713, %v4189, 0
      %v4256 = vsel %vm2713, %v4190, 0
      %v4259 = vsel %vm2713, %v4191, 0
      %v4262 = vsel %vm2713, %v4192, 0
      %v4265 = vsel %vm2713, %v4193, 0
      %v4268 = vsel %vm2713, %v4194, 0
      %v4271 = vsel %vm2713, %v4195, 0
      %v4274 = vsel %vm2713, %v4196, 0
      %v4277 = vsel %vm2713, %v4197, 0
      %v4280 = vsel %vm2713, %v4198, 0
      %v4283 = vsel %vm2713, %v4199, 0
      %v4286 = vsel %vm2713, %v4200, 0
      %v4289 = vsel %vm2713, %v4201, 0
      %v4292 = vsel %vm2713, %v4202, 0
      %v4295 = vsel %vm2713, %v4203, 0
      %v4298 = vsel %vm2713, %v4204, 0
      %v4301 = vsel %vm2713, %v4205, 0
      %v4304 = vsel %vm2713, %v4206, 0
      %v4307 = vsel %vm2713, %v4207, 0
      %v4310 = vsel %vm2713, %v4208, 0
      %v4313 = vsel %vm2713, %v4209, 0
      %v4316 = vsel %vm2713, %v4210, 0
      %4318 = vmatprep.subr.mxu0 0.0
      %4319 = vmatpush1.msra.mxu0 0.0
      %4320 = vmatprep.subr.mxu0 0.0
      %4321 = vmatpush1.msra.mxu0 0.0
      %4322 = vmatprep.subr.mxu0 0.0
      %4323 = vmatpush1.msra.mxu0 0.0
      %4324 = vmatprep.subr.mxu0 0.0
      %4325 = vmatpush1.msra.mxu0 0.0
      %4326 = vmatprep.subr.mxu0 0.0
      %4327 = vmatpush1.msra.mxu0 0.0
      %4328 = vmatprep.subr.mxu0 0.0
      %4329 = vmatpush1.msra.mxu0 0.0
      %4330 = vmatprep.subr.mxu0 0.0
      %4331 = vmatpush1.msra.mxu0 0.0
      %4332 = vmatprep.subr.mxu0 0.0
      %4333 = vmatpush1.msra.mxu0 0.0
      %4334 = vmatprep.subr.mxu0 0.0
      %4335 = vmatpush1.msra.mxu0 0.0
      %4336 = vmatprep.subr.mxu0 0.0
      %4337 = vmatpush1.msra.mxu0 0.0
      %4338 = vmatprep.subr.mxu0 0.0
      %4339 = vmatpush1.msra.mxu0 0.0
      %4340 = vmatprep.subr.mxu0 0.0
      %4341 = vmatpush1.msra.mxu0 0.0
      %4342 = vmatprep.subr.mxu0 0.0
      %4343 = vmatpush1.msra.mxu0 %v4214
      %4344 = vmatprep.subr.mxu0 0.0
      %4345 = vmatpush1.msra.mxu0 %v4213
      %4346 = vmatprep.subr.mxu0 0.0
      %4347 = vmatpush1.msra.mxu0 %v4212
      %4348 = vmatprep.subr.mxu0 0.0
      %4349 = vmatpush1.msra.mxu0 %v4211
      %4350 = vmatprep.subr.mxu0 0.0
      %4351 = vmatpush2.msra.mxu0 0.0
      %4352 = vmatprep.subr.mxu0 0.0
      %4353 = vmatpush2.msra.mxu0 0.0
      %4354 = vmatprep.subr.mxu0 0.0
      %4355 = vmatpush2.msra.mxu0 0.0
      %4356 = vmatprep.subr.mxu0 0.0
      %4357 = vmatpush2.msra.mxu0 0.0
      %4358 = vmatprep.subr.mxu0 0.0
      %4359 = vmatpush2.msra.mxu0 0.0
      %4360 = vmatprep.subr.mxu0 0.0
      %4361 = vmatpush2.msra.mxu0 0.0
      %4362 = vmatprep.subr.mxu0 0.0
      %4363 = vmatpush2.msra.mxu0 0.0
      %4364 = vmatprep.subr.mxu0 0.0
      %4365 = vmatpush2.msra.mxu0 0.0
      %4366 = vmatprep.subr.mxu0 0.0
      %4367 = vmatpush2.msra.mxu0 0.0
      %4368 = vmatprep.subr.mxu0 0.0
      %4369 = vmatpush2.msra.mxu0 0.0
      %4370 = vmatprep.subr.mxu0 0.0
      %4371 = vmatpush2.msra.mxu0 0.0
      %4372 = vmatprep.subr.mxu0 0.0
      %4373 = vmatpush2.msra.mxu0 0.0
      %4374 = vmatprep.subr.mxu0 0.0
      %4375 = vmatpush2.msra.mxu0 0.0
      %4376 = vmatprep.subr.mxu0 0.0
      %4377 = vmatpush2.msra.mxu0 0.0
      %4378 = vmatprep.subr.mxu0 0.0
      %4379 = vmatpush2.msra.mxu0 0.0
      %4380 = vmatprep.subr.mxu0 0.0
      %4381 = vmatpush2.msra.mxu0 0.0
      %4382 = vmatprep.mubr.f32.mxu0 0.0
      %4383 = vmatmul.mubr.f32.gmra.mxu0 %v4223
      %v4384 = vpop.f32.mrf.mxu0
      %v4385 = vadd.f32 %v4220, %v4384
      %v4386 = vpop.f32.mrf.mxu0
      %4387 = vmatprep.mubr.f32.mxu0 0.0
      %4388 = vmatmul.mubr.f32.gmra.mxu0 %v4226
      %v4389 = vpop.f32.mrf.mxu0
      %v4390 = vadd.f32 %v4220, %v4389
      %v4391 = vpop.f32.mrf.mxu0
      %4392 = vmatprep.mubr.f32.mxu0 0.0
      %4393 = vmatmul.mubr.f32.gmra.mxu0 %v4229
      %v4394 = vpop.f32.mrf.mxu0
      %v4395 = vadd.f32 %v4220, %v4394
      %v4396 = vpop.f32.mrf.mxu0
      %4397 = vmatprep.mubr.f32.mxu0 0.0
      %4398 = vmatmul.mubr.f32.gmra.mxu0 %v4232
      %v4399 = vpop.f32.mrf.mxu0
      %v4400 = vadd.f32 %v4220, %v4399
      %v4401 = vpop.f32.mrf.mxu0
      %4402 = vmatprep.mubr.f32.mxu0 0.0
      %4403 = vmatmul.mubr.f32.gmra.mxu0 %v4235
      %v4404 = vpop.f32.mrf.mxu0
      %v4405 = vadd.f32 %v4220, %v4404
      %v4406 = vpop.f32.mrf.mxu0
      %4407 = vmatprep.mubr.f32.mxu0 0.0
      %4408 = vmatmul.mubr.f32.gmra.mxu0 %v4238
      %v4409 = vpop.f32.mrf.mxu0
      %v4410 = vadd.f32 %v4220, %v4409
      %v4411 = vpop.f32.mrf.mxu0
      %4412 = vmatprep.mubr.f32.mxu0 0.0
      %4413 = vmatmul.mubr.f32.gmra.mxu0 %v4241
      %v4414 = vpop.f32.mrf.mxu0
      %v4415 = vadd.f32 %v4220, %v4414
      %v4416 = vpop.f32.mrf.mxu0
      %4417 = vmatprep.mubr.f32.mxu0 0.0
      %4418 = vmatmul.mubr.f32.gmra.mxu0 %v4244
      %v4419 = vpop.f32.mrf.mxu0
      %v4420 = vadd.f32 %v4220, %v4419
      %v4421 = vpop.f32.mrf.mxu0
      %4422 = vmatprep.mubr.f32.mxu0 0.0
      %4423 = vmatmul.mubr.f32.gmra.mxu0 %v4247
      %v4424 = vpop.f32.mrf.mxu0
      %v4425 = vadd.f32 %v4220, %v4424
      %v4426 = vpop.f32.mrf.mxu0
      %4427 = vmatprep.mubr.f32.mxu0 0.0
      %4428 = vmatmul.mubr.f32.gmra.mxu0 %v4250
      %v4429 = vpop.f32.mrf.mxu0
      %v4430 = vadd.f32 %v4220, %v4429
      %v4431 = vpop.f32.mrf.mxu0
      %4432 = vmatprep.mubr.f32.mxu0 0.0
      %4433 = vmatmul.mubr.f32.gmra.mxu0 %v4253
      %v4434 = vpop.f32.mrf.mxu0
      %v4435 = vadd.f32 %v4220, %v4434
      %v4436 = vpop.f32.mrf.mxu0
      %4437 = vmatprep.mubr.f32.mxu0 0.0
      %4438 = vmatmul.mubr.f32.gmra.mxu0 %v4256
      %v4439 = vpop.f32.mrf.mxu0
      %v4440 = vadd.f32 %v4220, %v4439
      %v4441 = vpop.f32.mrf.mxu0
      %4442 = vmatprep.mubr.f32.mxu0 0.0
      %4443 = vmatmul.mubr.f32.gmra.mxu0 %v4259
      %v4444 = vpop.f32.mrf.mxu0
      %v4445 = vadd.f32 %v4220, %v4444
      %v4446 = vpop.f32.mrf.mxu0
      %4447 = vmatprep.mubr.f32.mxu0 0.0
      %4448 = vmatmul.mubr.f32.gmra.mxu0 %v4262
      %v4449 = vpop.f32.mrf.mxu0
      %v4450 = vadd.f32 %v4220, %v4449
      %v4451 = vpop.f32.mrf.mxu0
      %4452 = vmatprep.mubr.f32.mxu0 0.0
      %4453 = vmatmul.mubr.f32.gmra.mxu0 %v4265
      %v4454 = vpop.f32.mrf.mxu0
      %v4455 = vadd.f32 %v4220, %v4454
      %v4456 = vpop.f32.mrf.mxu0
      %4457 = vmatprep.mubr.f32.mxu0 0.0
      %4458 = vmatmul.mubr.f32.gmra.mxu0 %v4268
      %v4459 = vpop.f32.mrf.mxu0
      %v4460 = vadd.f32 %v4220, %v4459
      %v4461 = vpop.f32.mrf.mxu0
      %4462 = vmatprep.mubr.f32.mxu0 0.0
      %4463 = vmatmul.mubr.f32.gmra.mxu0 %v4271
      %v4464 = vpop.f32.mrf.mxu0
      %v4465 = vadd.f32 %v4220, %v4464
      %v4466 = vpop.f32.mrf.mxu0
      %4467 = vmatprep.mubr.f32.mxu0 0.0
      %4468 = vmatmul.mubr.f32.gmra.mxu0 %v4274
      %v4469 = vpop.f32.mrf.mxu0
      %v4470 = vadd.f32 %v4220, %v4469
      %v4471 = vpop.f32.mrf.mxu0
      %4472 = vmatprep.mubr.f32.mxu0 0.0
      %4473 = vmatmul.mubr.f32.gmra.mxu0 %v4277
      %v4474 = vpop.f32.mrf.mxu0
      %v4475 = vadd.f32 %v4220, %v4474
      %v4476 = vpop.f32.mrf.mxu0
      %4477 = vmatprep.mubr.f32.mxu0 0.0
      %4478 = vmatmul.mubr.f32.gmra.mxu0 %v4280
      %v4479 = vpop.f32.mrf.mxu0
      %v4480 = vadd.f32 %v4220, %v4479
      %v4481 = vpop.f32.mrf.mxu0
      %4482 = vmatprep.mubr.f32.mxu0 0.0
      %4483 = vmatmul.mubr.f32.gmra.mxu0 %v4283
      %v4484 = vpop.f32.mrf.mxu0
      %v4485 = vadd.f32 %v4220, %v4484
      %v4486 = vpop.f32.mrf.mxu0
      %4487 = vmatprep.mubr.f32.mxu0 0.0
      %4488 = vmatmul.mubr.f32.gmra.mxu0 %v4286
      %v4489 = vpop.f32.mrf.mxu0
      %v4490 = vadd.f32 %v4220, %v4489
      %v4491 = vpop.f32.mrf.mxu0
      %4492 = vmatprep.mubr.f32.mxu0 0.0
      %4493 = vmatmul.mubr.f32.gmra.mxu0 %v4289
      %v4494 = vpop.f32.mrf.mxu0
      %v4495 = vadd.f32 %v4220, %v4494
      %v4496 = vpop.f32.mrf.mxu0
      %4497 = vmatprep.mubr.f32.mxu0 0.0
      %4498 = vmatmul.mubr.f32.gmra.mxu0 %v4292
      %v4499 = vpop.f32.mrf.mxu0
      %v4500 = vadd.f32 %v4220, %v4499
      %v4501 = vpop.f32.mrf.mxu0
      %4502 = vmatprep.mubr.f32.mxu0 0.0
      %4503 = vmatmul.mubr.f32.gmra.mxu0 %v4295
      %v4504 = vpop.f32.mrf.mxu0
      %v4505 = vadd.f32 %v4220, %v4504
      %v4506 = vpop.f32.mrf.mxu0
      %4507 = vmatprep.mubr.f32.mxu0 0.0
      %4508 = vmatmul.mubr.f32.gmra.mxu0 %v4298
      %v4509 = vpop.f32.mrf.mxu0
      %v4510 = vadd.f32 %v4220, %v4509
      %v4511 = vpop.f32.mrf.mxu0
      %4512 = vmatprep.mubr.f32.mxu0 0.0
      %4513 = vmatmul.mubr.f32.gmra.mxu0 %v4301
      %v4514 = vpop.f32.mrf.mxu0
      %v4515 = vadd.f32 %v4220, %v4514
      %v4516 = vpop.f32.mrf.mxu0
      %4517 = vmatprep.mubr.f32.mxu0 0.0
      %4518 = vmatmul.mubr.f32.gmra.mxu0 %v4304
      %v4519 = vpop.f32.mrf.mxu0
      %v4520 = vadd.f32 %v4220, %v4519
      %v4521 = vpop.f32.mrf.mxu0
      %4522 = vmatprep.mubr.f32.mxu0 0.0
      %4523 = vmatmul.mubr.f32.gmra.mxu0 %v4307
      %v4524 = vpop.f32.mrf.mxu0
      %v4525 = vadd.f32 %v4220, %v4524
      %v4526 = vpop.f32.mrf.mxu0
      %4527 = vmatprep.mubr.f32.mxu0 0.0
      %4528 = vmatmul.mubr.f32.gmra.mxu0 %v4310
      %v4529 = vpop.f32.mrf.mxu0
      %v4530 = vadd.f32 %v4220, %v4529
      %v4531 = vpop.f32.mrf.mxu0
      %4532 = vmatprep.mubr.f32.mxu0 0.0
      %4533 = vmatmul.mubr.f32.gmra.mxu0 %v4313
      %v4534 = vpop.f32.mrf.mxu0
      %v4535 = vadd.f32 %v4220, %v4534
      %v4536 = vpop.f32.mrf.mxu0
      %4537 = vmatprep.mubr.f32.mxu0 0.0
      %4538 = vmatmul.mubr.f32.gmra.mxu0 %v4316
      %v4539 = vpop.f32.mrf.mxu0
      %v4540 = vadd.f32 %v4220, %v4539
      %v4541 = vpop.f32.mrf.mxu0
      %4542 = vdwg.mxu0
      %v4543 = vadd.f32 %v4385, %v405
      %v4544 = vadd.f32 %v4390, %v406
      %v4545 = vadd.f32 %v4395, %v407
      %v4546 = vadd.f32 %v4400, %v408
      %v4547 = vadd.f32 %v4405, %v409
      %v4548 = vadd.f32 %v4410, %v410
      %v4549 = vadd.f32 %v4415, %v411
      %v4550 = vadd.f32 %v4420, %v412
      %v4551 = vadd.f32 %v4425, %v413
      %v4552 = vadd.f32 %v4430, %v414
      %v4553 = vadd.f32 %v4435, %v415
      %v4554 = vadd.f32 %v4440, %v416
      %v4555 = vadd.f32 %v4445, %v417
      %v4556 = vadd.f32 %v4450, %v418
      %v4557 = vadd.f32 %v4455, %v419
      %v4558 = vadd.f32 %v4460, %v420
      %v4559 = vadd.f32 %v4465, %v437
      %v4560 = vadd.f32 %v4470, %v438
      %v4561 = vadd.f32 %v4475, %v439
      %v4562 = vadd.f32 %v4480, %v440
      %v4563 = vadd.f32 %v4485, %v441
      %v4564 = vadd.f32 %v4490, %v442
      %v4565 = vadd.f32 %v4495, %v443
      %v4566 = vadd.f32 %v4500, %v444
      %v4567 = vadd.f32 %v4505, %v445
      %v4568 = vadd.f32 %v4510, %v446
      %v4569 = vadd.f32 %v4515, %v447
      %v4570 = vadd.f32 %v4520, %v448
      %v4571 = vadd.f32 %v4525, %v449
      %v4572 = vadd.f32 %v4530, %v450
      %v4573 = vadd.f32 %v4535, %v451
      %v4574 = vadd.f32 %v4540, %v452
      %4575 = vxpose.xlu0.b32.start [1/16] %v4543, 128
      %4576 = vxpose.xlu0.b32.cont [2/16] %v4544, 128
      %4577 = vxpose.xlu0.b32.cont [3/16] %v4545, 128
      %4578 = vxpose.xlu0.b32.cont [4/16] %v4546, 128
      %4579 = vxpose.xlu0.b32.cont [5/16] %v4547, 128
      %4580 = vxpose.xlu0.b32.cont [6/16] %v4548, 128
      %4581 = vxpose.xlu0.b32.cont [7/16] %v4549, 128
      %4582 = vxpose.xlu0.b32.cont [8/16] %v4550, 128
      %4583 = vxpose.xlu0.b32.cont [9/16] %v4551, 128
      %4584 = vxpose.xlu0.b32.cont [10/16] %v4552, 128
      %4585 = vxpose.xlu0.b32.cont [11/16] %v4553, 128
      %4586 = vxpose.xlu0.b32.cont [12/16] %v4554, 128
      %4587 = vxpose.xlu0.b32.cont [13/16] %v4555, 128
      %4588 = vxpose.xlu0.b32.cont [14/16] %v4556, 128
      %4589 = vxpose.xlu0.b32.cont [15/16] %v4557, 128
      %4590 = vxpose.xlu0.b32.end [16/16] %v4558, 128
      %v4591 = vpop.trf.xlu0
      %v4592 = vpop.trf.xlu0
      %v4593 = vpop.trf.xlu0
      %v4594 = vpop.trf.xlu0
      %v4595 = vpop.trf.xlu0
      %v4596 = vpop.trf.xlu0
      %v4597 = vpop.trf.xlu0
      %v4598 = vpop.trf.xlu0
      %v4599 = vpop.trf.xlu0
      %v4600 = vpop.trf.xlu0
      %v4601 = vpop.trf.xlu0
      %v4602 = vpop.trf.xlu0
      %v4603 = vpop.trf.xlu0
      %v4604 = vpop.trf.xlu0
      %v4605 = vpop.trf.xlu0
      %v4606 = vpop.trf.xlu0
      %4607 = vxpose.xlu0.b32.start [1/16] %v4559, 128
      %4608 = vxpose.xlu0.b32.cont [2/16] %v4560, 128
      %4609 = vxpose.xlu0.b32.cont [3/16] %v4561, 128
      %4610 = vxpose.xlu0.b32.cont [4/16] %v4562, 128
      %4611 = vxpose.xlu0.b32.cont [5/16] %v4563, 128
      %4612 = vxpose.xlu0.b32.cont [6/16] %v4564, 128
      %4613 = vxpose.xlu0.b32.cont [7/16] %v4565, 128
      %4614 = vxpose.xlu0.b32.cont [8/16] %v4566, 128
      %4615 = vxpose.xlu0.b32.cont [9/16] %v4567, 128
      %4616 = vxpose.xlu0.b32.cont [10/16] %v4568, 128
      %4617 = vxpose.xlu0.b32.cont [11/16] %v4569, 128
      %4618 = vxpose.xlu0.b32.cont [12/16] %v4570, 128
      %4619 = vxpose.xlu0.b32.cont [13/16] %v4571, 128
      %4620 = vxpose.xlu0.b32.cont [14/16] %v4572, 128
      %4621 = vxpose.xlu0.b32.cont [15/16] %v4573, 128
      %4622 = vxpose.xlu0.b32.end [16/16] %v4574, 128
      %v4623 = vpop.trf.xlu0
      %v4624 = vpop.trf.xlu0
      %v4625 = vpop.trf.xlu0
      %v4626 = vpop.trf.xlu0
      %v4627 = vpop.trf.xlu0
      %v4628 = vpop.trf.xlu0
      %v4629 = vpop.trf.xlu0
      %v4630 = vpop.trf.xlu0
      %v4631 = vpop.trf.xlu0
      %v4632 = vpop.trf.xlu0
      %v4633 = vpop.trf.xlu0
      %v4634 = vpop.trf.xlu0
      %v4635 = vpop.trf.xlu0
      %v4636 = vpop.trf.xlu0
      %v4637 = vpop.trf.xlu0
      %v4638 = vpop.trf.xlu0
      %4639 = vst [vmem:[%s386] sm:$0xff] %v4591
      %4640 = vst [vmem:[%s386 + $0x8] sm:$0xff] %v4623
      %p4641 = scmp.lt.s32.totalorder %s22, 1
      %s4642 = scalar_select %p4641, %s22, 1
      %s4643 = smul.addr %s4642, 2
      %s4644 = smul.addr %s4643, 8
      %s4645 = scalar_lea.vmem %s11, %s4644
      // Predicated region
      $region65: #{inverted_residual_forward.1} parent=63 // pred_check
        %p4646 = pneg %p276
      $region66: #{inverted_residual_forward.1} parent=63 // pred_check_branch
        %4648 = sbr.rel (%p4646) target = $region68
      $region67: #{inverted_residual_forward.1} parent=63 // pred_region
        _
      $region68: #{inverted_residual_forward.1} parent=63 // pred_fallthru
        _
    $region64: #{inverted_residual_forward.1} parent=5 // pred_fallthru
      _
    %p4649 = scmp.le.s32.totalorder 2, %s17
    // Predicated region
    $region69: #{inverted_residual_forward.1} parent=5 // pred_check
      %p4650 = pneg %p4649
    $region70: #{inverted_residual_forward.1} parent=5 // pred_check_branch
      %4652 = sbr.rel (%p4650) target = $region72
    $region71: #{inverted_residual_forward.1} parent=5 // pred_region
      %s4653 = ssub.s32 %s17, 2
      // Predicated region
      $region73: #{inverted_residual_forward.1} parent=71 // pred_check
        %p4654 = pneg %p282
      $region74: #{inverted_residual_forward.1} parent=71 // pred_check_branch
        %4656 = sbr.rel (%p4654) target = $region76
      $region75: #{inverted_residual_forward.1} parent=71 // pred_region
        %p4657 = scmp.lt.s32.totalorder %s23, 1
        %s4658 = scalar_select %p4657, %s23, 1
        %s4659 = smul.addr %s4658, 2
        %s4660 = smul.addr %s4659, 8
        %s4661 = scalar_lea.vmem %s11, %s4660
      $region76: #{inverted_residual_forward.1} parent=71 // pred_fallthru
        _
    $region72: #{inverted_residual_forward.1} parent=5 // pred_fallthru
      _
  $region6: #{inverted_residual_forward.1} parent=0 // loop_footer
    %s21 = sadd.s32 1, %s17
  $region7: #{inverted_residual_forward.1} parent=0 // loop_footer_branch
    %16 = sbr.rel target = $region3
  $region8: #{inverted_residual_forward.1} parent=0 // loop_exit
    _

</llo_original>
